<compile_context>
chip_gen: v7x
topology: tpu7x:2x2x1
jax: 0.10.0
libtpu: 0.0.40
codegen_flags: <defaults>
</compile_context>

<pallas_src>
import functools

import jax
import jax.numpy as jnp
from jax.experimental import pallas as pl
from jax.experimental.pallas import tpu as pltpu

P_DROP = 0.1
LANE = 128          # lane width of a vreg
TR = 2048           # row-tile size (2048*128*4B = 1 MiB per f32 buffer)


def _i32_const(v):
    """Python int -> value representable as int32 (two's complement)."""
    v &= 0xFFFFFFFF
    return v - (1 << 32) if v >= (1 << 31) else v


_MIX_A = _i32_const(0x9E3779B1)
_MIX_B = _i32_const(0x85EBCA77)
_MIX_C = _i32_const(0x85EBCA6B)
_MIX_D = _i32_const(0xC2B2AE35)


def _srl(v, k):
    """Logical right shift of an int32 array by k (arith shift + mask)."""
    return (v >> k) & ((1 << (32 - k)) - 1)


def _dropout_kernel(seed_ref, x_ref, o_ref, *, threshold31, scale, block_rows):
    # Unique global element index per element of this tile (int32).
    br, lanes = x_ref.shape
    row = jax.lax.broadcasted_iota(jnp.int32, (br, lanes), 0)
    col = jax.lax.broadcasted_iota(jnp.int32, (br, lanes), 1)
    base = pl.program_id(0) * block_rows                 # tile-dependent offset
    gid = (base + row) * lanes + col

    # Stateless hash: gid + seed -> well-mixed 32-bit value (wrapping int32 math).
    h = gid * _MIX_A + seed_ref[0] * _MIX_B
    h = h ^ _srl(h, 16)
    h = h * _MIX_C
    h = h ^ _srl(h, 13)
    h = h * _MIX_D
    h = h ^ _srl(h, 16)

    # Top 31 bits -> uniform non-negative int32; keep with prob (1 - p).
    r = _srl(h, 1)
    keep = r >= threshold31

    x = x_ref[...]
    scaled = x * jnp.asarray(scale, dtype=x.dtype)       # math in input dtype
    o_ref[...] = jnp.where(keep, scaled, jnp.zeros_like(scaled))


def dropout_pallas(x, seed, p=P_DROP):
    """Dropout(p), training mode (random mask, kept values scaled by 1/(1-p)).
    Statistically matches torch.nn.Dropout; does not bit-match torch's RNG."""
    if p <= 0.0:
        return x

    orig_shape = x.shape
    n = x.size

    if n % LANE == 0:
        # Common path: free reshape, zero extra HBM traffic.
        pad = 0
        x2d = x.reshape(n // LANE, LANE)
    else:
        # TODO(synk): mask the last-tile store in-kernel instead of pad/slice copies.
        rows_p = pl.cdiv(n, LANE)
        pad = rows_p * LANE - n
        x2d = jnp.pad(x.reshape(-1), (0, pad)).reshape(rows_p, LANE)

    rows = x2d.shape[0]
    # Block rows: either a (8,128)-aligned tile or the full row extent.
    br = TR if rows > TR else rows
    grid = (pl.cdiv(rows, br),)

    seed_arr = jnp.asarray([seed], dtype=jnp.int32)
    threshold31 = int(round(p * float(1 << 31)))         # drop prob = threshold/2^31
    kernel = functools.partial(
        _dropout_kernel,
        threshold31=threshold31,
        scale=1.0 / (1.0 - p),
        block_rows=br,
    )

    out2d = pl.pallas_call(
        kernel,
        out_shape=jax.ShapeDtypeStruct(x2d.shape, x2d.dtype),
        grid=grid,
        in_specs=[
            pl.BlockSpec(memory_space=pltpu.MemorySpace.SMEM),   # seed scalar
            pl.BlockSpec((br, LANE), lambda i: (i, 0)),          # x row-tile
        ],
        out_specs=pl.BlockSpec((br, LANE), lambda i: (i, 0)),
        compiler_params=pltpu.CompilerParams(
            dimension_semantics=("parallel",),        # shard tiles across TCs (v7x)
            vmem_limit_bytes=32 * 1024 * 1024,        # explicit, safe on v5e/v6e/v7x
        ),
    )(seed_arr, x2d)

    out = out2d.reshape(-1)
    if pad:
        out = out[:n]
    return out.reshape(orig_shape)


class M:
    """JAX/Pallas port of the PyTorch module (Dropout(p=0.1), training mode)."""

    def __init__(self, p=P_DROP):
        self.p = p  # no learnable parameters

    def __call__(self, x, seed=0):
        return dropout_pallas(x, seed, self.p)


if __name__ == "__main__":
    key = jax.random.PRNGKey(0)
    # Shape implied by the module's forward: x206 = randn([1, 256, 28, 28]).
    x = jax.random.normal(key, (1, 256, 28, 28), dtype=jnp.float32)

    m = M()
    y = jax.block_until_ready(m(x, seed=42))

    # Sanity: shape/dtype preserved; kept elements scaled by 1/(1-p);
    # drop fraction statistically close to p.
    assert y.shape == x.shape and y.dtype == x.dtype
    kept = y != 0
    scale = 1.0 / (1.0 - P_DROP)
    assert jnp.allclose(jnp.where(kept, y, 0.0),
                        jnp.where(kept, x * scale, 0.0),
                        atol=1e-5, rtol=1e-5)
    drop_frac = float(1.0 - jnp.mean(kept.astype(jnp.float32)))
    assert 0.02 <= drop_frac <= 0.25, drop_frac

    print("KERNEL_OK")
</pallas_src>

<mosaic_0001>
module attributes {stable_mosaic.version = 11 : i64} {
  func.func @_dropout_kernel(%arg0: i32, %arg1: memref<1xi32, #tpu.memory_space<smem>>, %arg2: memref<1568x128xf32, #tpu.memory_space<vmem>>, %arg3: memref<1568x128xf32, #tpu.memory_space<vmem>>) attributes {dimension_semantics = [#tpu.dimension_semantics<parallel>], iteration_bounds = array<i64: 1>, scalar_prefetch = 0 : i64, scratch_operands = 0 : i64, tpu.core_type = #tpu.core_type<tc>, window_params = [{transform_indices = @transform_0, window_bounds = array<i64: 1>}, {transform_indices = @transform_1, window_bounds = array<i64: 1568, 128>}, {transform_indices = @transform_2, window_bounds = array<i64: 1568, 128>}]} {
    %0 = tpu.iota {dimensions = array<i32: 0>} : vector<1568x128xi32>
    %1 = tpu.iota {dimensions = array<i32: 1>} : vector<1568x128xi32>
    %c1568_i32 = arith.constant 1568 : i32
    %2 = arith.muli %arg0, %c1568_i32 : i32
    %3 = vector.broadcast %2 : i32 to vector<1568x128xi32>
    %4 = arith.addi %3, %0 : vector<1568x128xi32>
    %c128_i32 = arith.constant 128 : i32
    %5 = vector.broadcast %c128_i32 : i32 to vector<1568x128xi32>
    %6 = arith.muli %4, %5 : vector<1568x128xi32>
    %7 = arith.addi %6, %1 : vector<1568x128xi32>
    %c-1640531535_i32 = arith.constant -1640531535 : i32
    %8 = vector.broadcast %c-1640531535_i32 : i32 to vector<1568x128xi32>
    %9 = arith.muli %7, %8 : vector<1568x128xi32>
    %c0 = arith.constant 0 : index
    %10 = memref.load %arg1[%c0] : memref<1xi32, #tpu.memory_space<smem>>
    %c-2048144777_i32 = arith.constant -2048144777 : i32
    %11 = arith.muli %10, %c-2048144777_i32 : i32
    %12 = vector.broadcast %11 : i32 to vector<1568x128xi32>
    %13 = arith.addi %9, %12 : vector<1568x128xi32>
    %c16_i32 = arith.constant 16 : i32
    %14 = vector.broadcast %c16_i32 : i32 to vector<1568x128xi32>
    %15 = arith.shrsi %13, %14 : vector<1568x128xi32>
    %c65535_i32 = arith.constant 65535 : i32
    %16 = vector.broadcast %c65535_i32 : i32 to vector<1568x128xi32>
    %17 = arith.andi %15, %16 : vector<1568x128xi32>
    %18 = arith.xori %13, %17 : vector<1568x128xi32>
    %c-2048144789_i32 = arith.constant -2048144789 : i32
    %19 = vector.broadcast %c-2048144789_i32 : i32 to vector<1568x128xi32>
    %20 = arith.muli %18, %19 : vector<1568x128xi32>
    %c13_i32 = arith.constant 13 : i32
    %21 = vector.broadcast %c13_i32 : i32 to vector<1568x128xi32>
    %22 = arith.shrsi %20, %21 : vector<1568x128xi32>
    %c524287_i32 = arith.constant 524287 : i32
    %23 = vector.broadcast %c524287_i32 : i32 to vector<1568x128xi32>
    %24 = arith.andi %22, %23 : vector<1568x128xi32>
    %25 = arith.xori %20, %24 : vector<1568x128xi32>
    %c-1028477387_i32 = arith.constant -1028477387 : i32
    %26 = vector.broadcast %c-1028477387_i32 : i32 to vector<1568x128xi32>
    %27 = arith.muli %25, %26 : vector<1568x128xi32>
    %c16_i32_0 = arith.constant 16 : i32
    %28 = vector.broadcast %c16_i32_0 : i32 to vector<1568x128xi32>
    %29 = arith.shrsi %27, %28 : vector<1568x128xi32>
    %c65535_i32_1 = arith.constant 65535 : i32
    %30 = vector.broadcast %c65535_i32_1 : i32 to vector<1568x128xi32>
    %31 = arith.andi %29, %30 : vector<1568x128xi32>
    %32 = arith.xori %27, %31 : vector<1568x128xi32>
    %c1_i32 = arith.constant 1 : i32
    %33 = vector.broadcast %c1_i32 : i32 to vector<1568x128xi32>
    %34 = arith.shrsi %32, %33 : vector<1568x128xi32>
    %c2147483647_i32 = arith.constant 2147483647 : i32
    %35 = vector.broadcast %c2147483647_i32 : i32 to vector<1568x128xi32>
    %36 = arith.andi %34, %35 : vector<1568x128xi32>
    %c214748365_i32 = arith.constant 214748365 : i32
    %37 = vector.broadcast %c214748365_i32 : i32 to vector<1568x128xi32>
    %38 = arith.cmpi sge, %36, %37 : vector<1568x128xi32>
    %c0_2 = arith.constant 0 : index
    %c0_3 = arith.constant 0 : index
    %39 = vector.load %arg2[%c0_2, %c0_3] : memref<1568x128xf32, #tpu.memory_space<vmem>>, vector<1568x128xf32>
    %cst = arith.constant 1.11111116 : f32
    %40 = vector.broadcast %cst : f32 to vector<1568x128xf32>
    %41 = arith.mulf %39, %40 : vector<1568x128xf32>
    %cst_4 = arith.constant 0.000000e+00 : f32
    %42 = vector.broadcast %cst_4 : f32 to vector<1568x128xf32>
    %43 = arith.select %38, %41, %42 : vector<1568x128xi1>, vector<1568x128xf32>
    %c0_5 = arith.constant 0 : index
    %c0_6 = arith.constant 0 : index
    %44 = vector.load %arg3[%c0_5, %c0_6] : memref<1568x128xf32, #tpu.memory_space<vmem>>, vector<1568x128xf32>
    tpu.vector_store %arg3[%c0_5, %c0_6], %43 {strides = array<i32>} : memref<1568x128xf32, #tpu.memory_space<vmem>>, vector<1568x128xf32>,
    return
  }
  func.func @transform_0(%arg0: i32) -> i32 {
    %c0_i32 = arith.constant 0 : i32
    %c0_i32_0 = arith.constant 0 : i32
    return %c0_i32 : i32
  }
  func.func @transform_1(%arg0: i32) -> (i32, i32) {
    %c0_i32 = arith.constant 0 : i32
    %c0_i32_0 = arith.constant 0 : i32
    return %arg0, %c0_i32 : i32, i32
  }
  func.func @transform_2(%arg0: i32) -> (i32, i32) {
    %c0_i32 = arith.constant 0 : i32
    %c0_i32_0 = arith.constant 0 : i32
    return %arg0, %c0_i32 : i32, i32
  }
}

</mosaic_0001>

<llo_original>
// kernel: tpu_custom_call.1
$region0: #{tpu_custom_call.1}
  #allocation0 [shape = 'u32[]', space=smem, size = 0x4, offset = 0x4, fixed_abs, tag = 'smem constant byte address 0x4 - core index']
  #allocation1 [shape = 'u32[144,128]{1,0:T(1,128)}', space=vmem, size = 0x12000, scoped, tag = 'internal scratch']
  #allocation2 [shape = 's32[1]{0:T(128)S(6)}', space=smem, size = 0x200, scoped, tag = 'scoped memory for tpu_custom_call.1']
  %s0 = inlined_call_operand.<no memory space> [shape: s32[1], index: 0, kind: input, shape index: {}]
  %s1 = inlined_call_operand.hbm [shape: f32[1568,128], index: 1, kind: input, shape index: {}]
  %s2 = inlined_call_operand.hbm [shape: f32[1568,128], index: 2, kind: output, shape index: {}]
  %s3 = sld [smem:[#allocation0]]
  $region22: #{tpu_custom_call.1} parent=0
    _
  %s5 = ssub.s32 1, %s3
  %s6 = scalar_select 0, %s5, %s3
  %7 = sst [smem:[#allocation2]] %s0
  $region1: #{tpu_custom_call.1} parent=0
    #allocation3 [shape = 'u8[802816]{0}', space=vmem, size = 0xc4000, scoped, tag = 'input window, operand 1, single buffered']
    #allocation4 [shape = 's32[1]{0}', space=sflag, size = 0x4, scoped, tag = 'scoped memory for tpu_custom_call.1']
    #allocation5 [shape = 's32[1]{0}', space=sflag, size = 0x4, scoped, tag = 'scoped memory for tpu_custom_call.1']
    #allocation6 [shape = 'u8[802816]{0}', space=vmem, size = 0xc4000, scoped, tag = 'output window, operand 0, single buffered']
    %8 = vsyncpa [#allocation4], 0
    %9 = vsyncpa [#allocation5], 0
    // Predicated region
    $region2: #{tpu_custom_call.1} parent=1 // pred_check
      _
    $region3: #{tpu_custom_call.1} parent=1 // pred_check_branch
      %11 = sbr.rel (0) target = $region5
    $region4: #{tpu_custom_call.1} parent=1 // pred_region
      _
    $region5: #{tpu_custom_call.1} parent=1 // pred_fallthru
      _
    // Predicated region
    $region6: #{tpu_custom_call.1} parent=1 // pred_check
      _
    $region7: #{tpu_custom_call.1} parent=1 // pred_check_branch
      %13 = sbr.rel (0) target = $region9
    $region8: #{tpu_custom_call.1} parent=1 // pred_region
      %s15 = ssub.s32 25088, 25088
      %16 = vsyncadd [#allocation4], %s15
      %s17 = sshll.u32 [#allocation3], 4
      %s18 = int_to_ptr.vmem [resolvable:$true] %s17
      %23 = dma.hbm_to_vmem [thread:$0]  %s1, 25088, %s18, [#allocation4], 128, 128, 8
    $region9: #{tpu_custom_call.1} parent=1 // pred_fallthru
      _
    // Predicated region
    $region10: #{tpu_custom_call.1} parent=1 // pred_check
      _
    $region11: #{tpu_custom_call.1} parent=1 // pred_check_branch
      %25 = sbr.rel (0) target = $region13
    $region12: #{tpu_custom_call.1} parent=1 // pred_region
      %26 = dma.done [#allocation4], 25088
    $region13: #{tpu_custom_call.1} parent=1 // pred_fallthru
      _
    %v27 = vlaneseq
    %v28 = vshrl.u32 %v27, 7
    %v29 = vadd.s32 %v28, 8
    %v30 = vadd.s32 %v28, 16
    %v31 = vadd.s32 %v28, 24
    %v32 = vadd.s32 %v28, 32
    %v33 = vadd.s32 %v28, 40
    %v34 = vadd.s32 %v28, 48
    %v35 = vadd.s32 %v28, 56
    %v36 = vadd.s32 %v28, 64
    %v37 = vadd.s32 %v28, 72
    %v38 = vadd.s32 %v28, 80
    %v39 = vadd.s32 %v28, 88
    %v40 = vadd.s32 %v28, 96
    %v41 = vadd.s32 %v28, 104
    %v42 = vadd.s32 %v28, 112
    %v43 = vadd.s32 %v28, 120
    %v44 = vadd.s32 %v28, 128
    %v45 = vadd.s32 %v28, 136
    %v46 = vadd.s32 %v28, 144
    %v47 = vadd.s32 %v28, 152
    %v48 = vadd.s32 %v28, 160
    %v49 = vadd.s32 %v28, 168
    %v50 = vadd.s32 %v28, 176
    %v51 = vadd.s32 %v28, 184
    %v52 = vadd.s32 %v28, 192
    %v53 = vadd.s32 %v28, 200
    %v54 = vadd.s32 %v28, 208
    %v55 = vadd.s32 %v28, 216
    %v56 = vadd.s32 %v28, 224
    %v57 = vadd.s32 %v28, 232
    %v58 = vadd.s32 %v28, 240
    %v59 = vadd.s32 %v28, 248
    %v60 = vadd.s32 %v28, 256
    %v61 = vadd.s32 %v28, 264
    %v62 = vadd.s32 %v28, 272
    %v63 = vadd.s32 %v28, 280
    %v64 = vadd.s32 %v28, 288
    %v65 = vadd.s32 %v28, 296
    %v66 = vadd.s32 %v28, 304
    %v67 = vadd.s32 %v28, 312
    %v68 = vadd.s32 %v28, 320
    %v69 = vadd.s32 %v28, 328
    %v70 = vadd.s32 %v28, 336
    %v71 = vadd.s32 %v28, 344
    %v72 = vadd.s32 %v28, 352
    %v73 = vadd.s32 %v28, 360
    %v74 = vadd.s32 %v28, 368
    %v75 = vadd.s32 %v28, 376
    %v76 = vadd.s32 %v28, 384
    %v77 = vadd.s32 %v28, 392
    %v78 = vadd.s32 %v28, 400
    %v79 = vadd.s32 %v28, 408
    %v80 = vadd.s32 %v28, 416
    %v81 = vadd.s32 %v28, 424
    %v82 = vadd.s32 %v28, 432
    %v83 = vadd.s32 %v28, 440
    %v84 = vadd.s32 %v28, 448
    %v85 = vadd.s32 %v28, 456
    %v86 = vadd.s32 %v28, 464
    %v87 = vadd.s32 %v28, 472
    %v88 = vadd.s32 %v28, 480
    %v89 = vadd.s32 %v28, 488
    %v90 = vadd.s32 %v28, 496
    %v91 = vadd.s32 %v28, 504
    %v92 = vadd.s32 %v28, 512
    %v93 = vadd.s32 %v28, 520
    %v94 = vadd.s32 %v28, 528
    %v95 = vadd.s32 %v28, 536
    %v96 = vadd.s32 %v28, 544
    %v97 = vadd.s32 %v28, 552
    %v98 = vadd.s32 %v28, 560
    %v99 = vadd.s32 %v28, 568
    %v100 = vadd.s32 %v28, 576
    %v101 = vadd.s32 %v28, 584
    %v102 = vadd.s32 %v28, 592
    %v103 = vadd.s32 %v28, 600
    %v104 = vadd.s32 %v28, 608
    %v105 = vadd.s32 %v28, 616
    %v106 = vadd.s32 %v28, 624
    %v107 = vadd.s32 %v28, 632
    %v108 = vadd.s32 %v28, 640
    %v109 = vadd.s32 %v28, 648
    %v110 = vadd.s32 %v28, 656
    %v111 = vadd.s32 %v28, 664
    %v112 = vadd.s32 %v28, 672
    %v113 = vadd.s32 %v28, 680
    %v114 = vadd.s32 %v28, 688
    %v115 = vadd.s32 %v28, 696
    %v116 = vadd.s32 %v28, 704
    %v117 = vadd.s32 %v28, 712
    %v118 = vadd.s32 %v28, 720
    %v119 = vadd.s32 %v28, 728
    %v120 = vadd.s32 %v28, 736
    %v121 = vadd.s32 %v28, 744
    %v122 = vadd.s32 %v28, 752
    %v123 = vadd.s32 %v28, 760
    %v124 = vadd.s32 %v28, 768
    %v125 = vadd.s32 %v28, 776
    %v126 = vadd.s32 %v28, 784
    %v127 = vadd.s32 %v28, 792
    %v128 = vadd.s32 %v28, 800
    %v129 = vadd.s32 %v28, 808
    %v130 = vadd.s32 %v28, 816
    %v131 = vadd.s32 %v28, 824
    %v132 = vadd.s32 %v28, 832
    %v133 = vadd.s32 %v28, 840
    %v134 = vadd.s32 %v28, 848
    %v135 = vadd.s32 %v28, 856
    %v136 = vadd.s32 %v28, 864
    %v137 = vadd.s32 %v28, 872
    %v138 = vadd.s32 %v28, 880
    %v139 = vadd.s32 %v28, 888
    %v140 = vadd.s32 %v28, 896
    %v141 = vadd.s32 %v28, 904
    %v142 = vadd.s32 %v28, 912
    %v143 = vadd.s32 %v28, 920
    %v144 = vadd.s32 %v28, 928
    %v145 = vadd.s32 %v28, 936
    %v146 = vadd.s32 %v28, 944
    %v147 = vadd.s32 %v28, 952
    %v148 = vadd.s32 %v28, 960
    %v149 = vadd.s32 %v28, 968
    %v150 = vadd.s32 %v28, 976
    %v151 = vadd.s32 %v28, 984
    %v152 = vadd.s32 %v28, 992
    %v153 = vadd.s32 %v28, 1000
    %v154 = vadd.s32 %v28, 1008
    %v155 = vadd.s32 %v28, 1016
    %v156 = vadd.s32 %v28, 1024
    %v157 = vadd.s32 %v28, 1032
    %v158 = vadd.s32 %v28, 1040
    %v159 = vadd.s32 %v28, 1048
    %v160 = vadd.s32 %v28, 1056
    %v161 = vadd.s32 %v28, 1064
    %v162 = vadd.s32 %v28, 1072
    %v163 = vadd.s32 %v28, 1080
    %v164 = vadd.s32 %v28, 1088
    %v165 = vadd.s32 %v28, 1096
    %v166 = vadd.s32 %v28, 1104
    %v167 = vadd.s32 %v28, 1112
    %v168 = vadd.s32 %v28, 1120
    %v169 = vadd.s32 %v28, 1128
    %v170 = vadd.s32 %v28, 1136
    %v171 = vadd.s32 %v28, 1144
    %v172 = vadd.s32 %v28, 1152
    %v173 = vadd.s32 %v28, 1160
    %v174 = vadd.s32 %v28, 1168
    %v175 = vadd.s32 %v28, 1176
    %v176 = vadd.s32 %v28, 1184
    %v177 = vadd.s32 %v28, 1192
    %v178 = vadd.s32 %v28, 1200
    %v179 = vadd.s32 %v28, 1208
    %v180 = vadd.s32 %v28, 1216
    %v181 = vadd.s32 %v28, 1224
    %v182 = vadd.s32 %v28, 1232
    %v183 = vadd.s32 %v28, 1240
    %v184 = vadd.s32 %v28, 1248
    %v185 = vadd.s32 %v28, 1256
    %v186 = vadd.s32 %v28, 1264
    %v187 = vadd.s32 %v28, 1272
    %v188 = vadd.s32 %v28, 1280
    %v189 = vadd.s32 %v28, 1288
    %v190 = vadd.s32 %v28, 1296
    %v191 = vadd.s32 %v28, 1304
    %v192 = vadd.s32 %v28, 1312
    %v193 = vadd.s32 %v28, 1320
    %v194 = vadd.s32 %v28, 1328
    %v195 = vadd.s32 %v28, 1336
    %v196 = vadd.s32 %v28, 1344
    %v197 = vadd.s32 %v28, 1352
    %v198 = vadd.s32 %v28, 1360
    %v199 = vadd.s32 %v28, 1368
    %v200 = vadd.s32 %v28, 1376
    %v201 = vadd.s32 %v28, 1384
    %v202 = vadd.s32 %v28, 1392
    %v203 = vadd.s32 %v28, 1400
    %v204 = vadd.s32 %v28, 1408
    %v205 = vadd.s32 %v28, 1416
    %v206 = vadd.s32 %v28, 1424
    %v207 = vadd.s32 %v28, 1432
    %v208 = vadd.s32 %v28, 1440
    %v209 = vadd.s32 %v28, 1448
    %v210 = vadd.s32 %v28, 1456
    %v211 = vadd.s32 %v28, 1464
    %v212 = vadd.s32 %v28, 1472
    %v213 = vadd.s32 %v28, 1480
    %v214 = vadd.s32 %v28, 1488
    %v215 = vadd.s32 %v28, 1496
    %v216 = vadd.s32 %v28, 1504
    %v217 = vadd.s32 %v28, 1512
    %v218 = vadd.s32 %v28, 1520
    %v219 = vadd.s32 %v28, 1528
    %v220 = vadd.s32 %v28, 1536
    %v221 = vadd.s32 %v28, 1544
    %v222 = vadd.s32 %v28, 1552
    %v223 = vadd.s32 %v28, 1560
    %v224 = vlaneseq
    %v225 = vand.u32 %v224, 127
    %s226 = smul.u32 0, 1568
    %v227 = vstv %s226
    %v228 = vadd.s32 %v227, %v28
    %v229 = vadd.s32 %v227, %v29
    %v230 = vadd.s32 %v227, %v30
    %v231 = vadd.s32 %v227, %v31
    %v232 = vadd.s32 %v227, %v32
    %v233 = vadd.s32 %v227, %v33
    %v234 = vadd.s32 %v227, %v34
    %v235 = vadd.s32 %v227, %v35
    %v236 = vadd.s32 %v227, %v36
    %v237 = vadd.s32 %v227, %v37
    %v238 = vadd.s32 %v227, %v38
    %v239 = vadd.s32 %v227, %v39
    %v240 = vadd.s32 %v227, %v40
    %v241 = vadd.s32 %v227, %v41
    %v242 = vadd.s32 %v227, %v42
    %v243 = vadd.s32 %v227, %v43
    %v244 = vadd.s32 %v227, %v44
    %v245 = vadd.s32 %v227, %v45
    %v246 = vadd.s32 %v227, %v46
    %v247 = vadd.s32 %v227, %v47
    %v248 = vadd.s32 %v227, %v48
    %v249 = vadd.s32 %v227, %v49
    %v250 = vadd.s32 %v227, %v50
    %v251 = vadd.s32 %v227, %v51
    %v252 = vadd.s32 %v227, %v52
    %v253 = vadd.s32 %v227, %v53
    %v254 = vadd.s32 %v227, %v54
    %v255 = vadd.s32 %v227, %v55
    %v256 = vadd.s32 %v227, %v56
    %v257 = vadd.s32 %v227, %v57
    %v258 = vadd.s32 %v227, %v58
    %v259 = vadd.s32 %v227, %v59
    %v260 = vadd.s32 %v227, %v60
    %v261 = vadd.s32 %v227, %v61
    %v262 = vadd.s32 %v227, %v62
    %v263 = vadd.s32 %v227, %v63
    %v264 = vadd.s32 %v227, %v64
    %v265 = vadd.s32 %v227, %v65
    %v266 = vadd.s32 %v227, %v66
    %v267 = vadd.s32 %v227, %v67
    %v268 = vadd.s32 %v227, %v68
    %v269 = vadd.s32 %v227, %v69
    %v270 = vadd.s32 %v227, %v70
    %v271 = vadd.s32 %v227, %v71
    %v272 = vadd.s32 %v227, %v72
    %v273 = vadd.s32 %v227, %v73
    %v274 = vadd.s32 %v227, %v74
    %v275 = vadd.s32 %v227, %v75
    %v276 = vadd.s32 %v227, %v76
    %v277 = vadd.s32 %v227, %v77
    %v278 = vadd.s32 %v227, %v78
    %v279 = vadd.s32 %v227, %v79
    %v280 = vadd.s32 %v227, %v80
    %v281 = vadd.s32 %v227, %v81
    %v282 = vadd.s32 %v227, %v82
    %v283 = vadd.s32 %v227, %v83
    %v284 = vadd.s32 %v227, %v84
    %v285 = vadd.s32 %v227, %v85
    %v286 = vadd.s32 %v227, %v86
    %v287 = vadd.s32 %v227, %v87
    %v288 = vadd.s32 %v227, %v88
    %v289 = vadd.s32 %v227, %v89
    %v290 = vadd.s32 %v227, %v90
    %v291 = vadd.s32 %v227, %v91
    %v292 = vadd.s32 %v227, %v92
    %v293 = vadd.s32 %v227, %v93
    %v294 = vadd.s32 %v227, %v94
    %v295 = vadd.s32 %v227, %v95
    %v296 = vadd.s32 %v227, %v96
    %v297 = vadd.s32 %v227, %v97
    %v298 = vadd.s32 %v227, %v98
    %v299 = vadd.s32 %v227, %v99
    %v300 = vadd.s32 %v227, %v100
    %v301 = vadd.s32 %v227, %v101
    %v302 = vadd.s32 %v227, %v102
    %v303 = vadd.s32 %v227, %v103
    %v304 = vadd.s32 %v227, %v104
    %v305 = vadd.s32 %v227, %v105
    %v306 = vadd.s32 %v227, %v106
    %v307 = vadd.s32 %v227, %v107
    %v308 = vadd.s32 %v227, %v108
    %v309 = vadd.s32 %v227, %v109
    %v310 = vadd.s32 %v227, %v110
    %v311 = vadd.s32 %v227, %v111
    %v312 = vadd.s32 %v227, %v112
    %v313 = vadd.s32 %v227, %v113
    %v314 = vadd.s32 %v227, %v114
    %v315 = vadd.s32 %v227, %v115
    %v316 = vadd.s32 %v227, %v116
    %v317 = vadd.s32 %v227, %v117
    %v318 = vadd.s32 %v227, %v118
    %v319 = vadd.s32 %v227, %v119
    %v320 = vadd.s32 %v227, %v120
    %v321 = vadd.s32 %v227, %v121
    %v322 = vadd.s32 %v227, %v122
    %v323 = vadd.s32 %v227, %v123
    %v324 = vadd.s32 %v227, %v124
    %v325 = vadd.s32 %v227, %v125
    %v326 = vadd.s32 %v227, %v126
    %v327 = vadd.s32 %v227, %v127
    %v328 = vadd.s32 %v227, %v128
    %v329 = vadd.s32 %v227, %v129
    %v330 = vadd.s32 %v227, %v130
    %v331 = vadd.s32 %v227, %v131
    %v332 = vadd.s32 %v227, %v132
    %v333 = vadd.s32 %v227, %v133
    %v334 = vadd.s32 %v227, %v134
    %v335 = vadd.s32 %v227, %v135
    %v336 = vadd.s32 %v227, %v136
    %v337 = vadd.s32 %v227, %v137
    %v338 = vadd.s32 %v227, %v138
    %v339 = vadd.s32 %v227, %v139
    %v340 = vadd.s32 %v227, %v140
    %v341 = vadd.s32 %v227, %v141
    %v342 = vadd.s32 %v227, %v142
    %v343 = vadd.s32 %v227, %v143
    %v344 = vadd.s32 %v227, %v144
    %v345 = vadd.s32 %v227, %v145
    %v346 = vadd.s32 %v227, %v146
    %v347 = vadd.s32 %v227, %v147
    %v348 = vadd.s32 %v227, %v148
    %v349 = vadd.s32 %v227, %v149
    %v350 = vadd.s32 %v227, %v150
    %v351 = vadd.s32 %v227, %v151
    %v352 = vadd.s32 %v227, %v152
    %v353 = vadd.s32 %v227, %v153
    %v354 = vadd.s32 %v227, %v154
    %v355 = vadd.s32 %v227, %v155
    %v356 = vadd.s32 %v227, %v156
    %v357 = vadd.s32 %v227, %v157
    %v358 = vadd.s32 %v227, %v158
    %v359 = vadd.s32 %v227, %v159
    %v360 = vadd.s32 %v227, %v160
    %v361 = vadd.s32 %v227, %v161
    %v362 = vadd.s32 %v227, %v162
    %v363 = vadd.s32 %v227, %v163
    %v364 = vadd.s32 %v227, %v164
    %v365 = vadd.s32 %v227, %v165
    %v366 = vadd.s32 %v227, %v166
    %v367 = vadd.s32 %v227, %v167
    %v368 = vadd.s32 %v227, %v168
    %v369 = vadd.s32 %v227, %v169
    %v370 = vadd.s32 %v227, %v170
    %v371 = vadd.s32 %v227, %v171
    %v372 = vadd.s32 %v227, %v172
    %v373 = vadd.s32 %v227, %v173
    %v374 = vadd.s32 %v227, %v174
    %v375 = vadd.s32 %v227, %v175
    %v376 = vadd.s32 %v227, %v176
    %v377 = vadd.s32 %v227, %v177
    %v378 = vadd.s32 %v227, %v178
    %v379 = vadd.s32 %v227, %v179
    %v380 = vadd.s32 %v227, %v180
    %v381 = vadd.s32 %v227, %v181
    %v382 = vadd.s32 %v227, %v182
    %v383 = vadd.s32 %v227, %v183
    %v384 = vadd.s32 %v227, %v184
    %v385 = vadd.s32 %v227, %v185
    %v386 = vadd.s32 %v227, %v186
    %v387 = vadd.s32 %v227, %v187
    %v388 = vadd.s32 %v227, %v188
    %v389 = vadd.s32 %v227, %v189
    %v390 = vadd.s32 %v227, %v190
    %v391 = vadd.s32 %v227, %v191
    %v392 = vadd.s32 %v227, %v192
    %v393 = vadd.s32 %v227, %v193
    %v394 = vadd.s32 %v227, %v194
    %v395 = vadd.s32 %v227, %v195
    %v396 = vadd.s32 %v227, %v196
    %v397 = vadd.s32 %v227, %v197
    %v398 = vadd.s32 %v227, %v198
    %v399 = vadd.s32 %v227, %v199
    %v400 = vadd.s32 %v227, %v200
    %v401 = vadd.s32 %v227, %v201
    %v402 = vadd.s32 %v227, %v202
    %v403 = vadd.s32 %v227, %v203
    %v404 = vadd.s32 %v227, %v204
    %v405 = vadd.s32 %v227, %v205
    %v406 = vadd.s32 %v227, %v206
    %v407 = vadd.s32 %v227, %v207
    %v408 = vadd.s32 %v227, %v208
    %v409 = vadd.s32 %v227, %v209
    %v410 = vadd.s32 %v227, %v210
    %v411 = vadd.s32 %v227, %v211
    %v412 = vadd.s32 %v227, %v212
    %v413 = vadd.s32 %v227, %v213
    %v414 = vadd.s32 %v227, %v214
    %v415 = vadd.s32 %v227, %v215
    %v416 = vadd.s32 %v227, %v216
    %v417 = vadd.s32 %v227, %v217
    %v418 = vadd.s32 %v227, %v218
    %v419 = vadd.s32 %v227, %v219
    %v420 = vadd.s32 %v227, %v220
    %v421 = vadd.s32 %v227, %v221
    %v422 = vadd.s32 %v227, %v222
    %v423 = vadd.s32 %v227, %v223
    %v424 = vmul.u32 %v228, 128
    %v425 = vmul.u32 %v229, 128
    %v426 = vmul.u32 %v230, 128
    %v427 = vmul.u32 %v231, 128
    %v428 = vmul.u32 %v232, 128
    %v429 = vmul.u32 %v233, 128
    %v430 = vmul.u32 %v234, 128
    %v431 = vmul.u32 %v235, 128
    %v432 = vmul.u32 %v236, 128
    %v433 = vmul.u32 %v237, 128
    %v434 = vmul.u32 %v238, 128
    %v435 = vmul.u32 %v239, 128
    %v436 = vmul.u32 %v240, 128
    %v437 = vmul.u32 %v241, 128
    %v438 = vmul.u32 %v242, 128
    %v439 = vmul.u32 %v243, 128
    %v440 = vmul.u32 %v244, 128
    %v441 = vmul.u32 %v245, 128
    %v442 = vmul.u32 %v246, 128
    %v443 = vmul.u32 %v247, 128
    %v444 = vmul.u32 %v248, 128
    %v445 = vmul.u32 %v249, 128
    %v446 = vmul.u32 %v250, 128
    %v447 = vmul.u32 %v251, 128
    %v448 = vmul.u32 %v252, 128
    %v449 = vmul.u32 %v253, 128
    %v450 = vmul.u32 %v254, 128
    %v451 = vmul.u32 %v255, 128
    %v452 = vmul.u32 %v256, 128
    %v453 = vmul.u32 %v257, 128
    %v454 = vmul.u32 %v258, 128
    %v455 = vmul.u32 %v259, 128
    %v456 = vmul.u32 %v260, 128
    %v457 = vmul.u32 %v261, 128
    %v458 = vmul.u32 %v262, 128
    %v459 = vmul.u32 %v263, 128
    %v460 = vmul.u32 %v264, 128
    %v461 = vmul.u32 %v265, 128
    %v462 = vmul.u32 %v266, 128
    %v463 = vmul.u32 %v267, 128
    %v464 = vmul.u32 %v268, 128
    %v465 = vmul.u32 %v269, 128
    %v466 = vmul.u32 %v270, 128
    %v467 = vmul.u32 %v271, 128
    %v468 = vmul.u32 %v272, 128
    %v469 = vmul.u32 %v273, 128
    %v470 = vmul.u32 %v274, 128
    %v471 = vmul.u32 %v275, 128
    %v472 = vmul.u32 %v276, 128
    %v473 = vmul.u32 %v277, 128
    %v474 = vmul.u32 %v278, 128
    %v475 = vmul.u32 %v279, 128
    %v476 = vmul.u32 %v280, 128
    %v477 = vmul.u32 %v281, 128
    %v478 = vmul.u32 %v282, 128
    %v479 = vmul.u32 %v283, 128
    %v480 = vmul.u32 %v284, 128
    %v481 = vmul.u32 %v285, 128
    %v482 = vmul.u32 %v286, 128
    %v483 = vmul.u32 %v287, 128
    %v484 = vmul.u32 %v288, 128
    %v485 = vmul.u32 %v289, 128
    %v486 = vmul.u32 %v290, 128
    %v487 = vmul.u32 %v291, 128
    %v488 = vmul.u32 %v292, 128
    %v489 = vmul.u32 %v293, 128
    %v490 = vmul.u32 %v294, 128
    %v491 = vmul.u32 %v295, 128
    %v492 = vmul.u32 %v296, 128
    %v493 = vmul.u32 %v297, 128
    %v494 = vmul.u32 %v298, 128
    %v495 = vmul.u32 %v299, 128
    %v496 = vmul.u32 %v300, 128
    %v497 = vmul.u32 %v301, 128
    %v498 = vmul.u32 %v302, 128
    %v499 = vmul.u32 %v303, 128
    %v500 = vmul.u32 %v304, 128
    %v501 = vmul.u32 %v305, 128
    %v502 = vmul.u32 %v306, 128
    %v503 = vmul.u32 %v307, 128
    %v504 = vmul.u32 %v308, 128
    %v505 = vmul.u32 %v309, 128
    %v506 = vmul.u32 %v310, 128
    %v507 = vmul.u32 %v311, 128
    %v508 = vmul.u32 %v312, 128
    %v509 = vmul.u32 %v313, 128
    %v510 = vmul.u32 %v314, 128
    %v511 = vmul.u32 %v315, 128
    %v512 = vmul.u32 %v316, 128
    %v513 = vmul.u32 %v317, 128
    %v514 = vmul.u32 %v318, 128
    %v515 = vmul.u32 %v319, 128
    %v516 = vmul.u32 %v320, 128
    %v517 = vmul.u32 %v321, 128
    %v518 = vmul.u32 %v322, 128
    %v519 = vmul.u32 %v323, 128
    %v520 = vmul.u32 %v324, 128
    %v521 = vmul.u32 %v325, 128
    %v522 = vmul.u32 %v326, 128
    %v523 = vmul.u32 %v327, 128
    %v524 = vmul.u32 %v328, 128
    %v525 = vmul.u32 %v329, 128
    %v526 = vmul.u32 %v330, 128
    %v527 = vmul.u32 %v331, 128
    %v528 = vmul.u32 %v332, 128
    %v529 = vmul.u32 %v333, 128
    %v530 = vmul.u32 %v334, 128
    %v531 = vmul.u32 %v335, 128
    %v532 = vmul.u32 %v336, 128
    %v533 = vmul.u32 %v337, 128
    %v534 = vmul.u32 %v338, 128
    %v535 = vmul.u32 %v339, 128
    %v536 = vmul.u32 %v340, 128
    %v537 = vmul.u32 %v341, 128
    %v538 = vmul.u32 %v342, 128
    %v539 = vmul.u32 %v343, 128
    %v540 = vmul.u32 %v344, 128
    %v541 = vmul.u32 %v345, 128
    %v542 = vmul.u32 %v346, 128
    %v543 = vmul.u32 %v347, 128
    %v544 = vmul.u32 %v348, 128
    %v545 = vmul.u32 %v349, 128
    %v546 = vmul.u32 %v350, 128
    %v547 = vmul.u32 %v351, 128
    %v548 = vmul.u32 %v352, 128
    %v549 = vmul.u32 %v353, 128
    %v550 = vmul.u32 %v354, 128
    %v551 = vmul.u32 %v355, 128
    %v552 = vmul.u32 %v356, 128
    %v553 = vmul.u32 %v357, 128
    %v554 = vmul.u32 %v358, 128
    %v555 = vmul.u32 %v359, 128
    %v556 = vmul.u32 %v360, 128
    %v557 = vmul.u32 %v361, 128
    %v558 = vmul.u32 %v362, 128
    %v559 = vmul.u32 %v363, 128
    %v560 = vmul.u32 %v364, 128
    %v561 = vmul.u32 %v365, 128
    %v562 = vmul.u32 %v366, 128
    %v563 = vmul.u32 %v367, 128
    %v564 = vmul.u32 %v368, 128
    %v565 = vmul.u32 %v369, 128
    %v566 = vmul.u32 %v370, 128
    %v567 = vmul.u32 %v371, 128
    %v568 = vmul.u32 %v372, 128
    %v569 = vmul.u32 %v373, 128
    %v570 = vmul.u32 %v374, 128
    %v571 = vmul.u32 %v375, 128
    %v572 = vmul.u32 %v376, 128
    %v573 = vmul.u32 %v377, 128
    %v574 = vmul.u32 %v378, 128
    %v575 = vmul.u32 %v379, 128
    %v576 = vmul.u32 %v380, 128
    %v577 = vmul.u32 %v381, 128
    %v578 = vmul.u32 %v382, 128
    %v579 = vmul.u32 %v383, 128
    %v580 = vmul.u32 %v384, 128
    %v581 = vmul.u32 %v385, 128
    %v582 = vmul.u32 %v386, 128
    %v583 = vmul.u32 %v387, 128
    %v584 = vmul.u32 %v388, 128
    %v585 = vmul.u32 %v389, 128
    %v586 = vmul.u32 %v390, 128
    %v587 = vmul.u32 %v391, 128
    %v588 = vmul.u32 %v392, 128
    %v589 = vmul.u32 %v393, 128
    %v590 = vmul.u32 %v394, 128
    %v591 = vmul.u32 %v395, 128
    %v592 = vmul.u32 %v396, 128
    %v593 = vmul.u32 %v397, 128
    %v594 = vmul.u32 %v398, 128
    %v595 = vmul.u32 %v399, 128
    %v596 = vmul.u32 %v400, 128
    %v597 = vmul.u32 %v401, 128
    %v598 = vmul.u32 %v402, 128
    %v599 = vmul.u32 %v403, 128
    %v600 = vmul.u32 %v404, 128
    %v601 = vmul.u32 %v405, 128
    %v602 = vmul.u32 %v406, 128
    %v603 = vmul.u32 %v407, 128
    %v604 = vmul.u32 %v408, 128
    %v605 = vmul.u32 %v409, 128
    %v606 = vmul.u32 %v410, 128
    %v607 = vmul.u32 %v411, 128
    %v608 = vmul.u32 %v412, 128
    %v609 = vmul.u32 %v413, 128
    %v610 = vmul.u32 %v414, 128
    %v611 = vmul.u32 %v415, 128
    %v612 = vmul.u32 %v416, 128
    %v613 = vmul.u32 %v417, 128
    %v614 = vmul.u32 %v418, 128
    %v615 = vmul.u32 %v419, 128
    %v616 = vmul.u32 %v420, 128
    %v617 = vmul.u32 %v421, 128
    %v618 = vmul.u32 %v422, 128
    %v619 = vmul.u32 %v423, 128
    %v620 = vadd.s32 %v424, %v225
    %v621 = vadd.s32 %v425, %v225
    %v622 = vadd.s32 %v426, %v225
    %v623 = vadd.s32 %v427, %v225
    %v624 = vadd.s32 %v428, %v225
    %v625 = vadd.s32 %v429, %v225
    %v626 = vadd.s32 %v430, %v225
    %v627 = vadd.s32 %v431, %v225
    %v628 = vadd.s32 %v432, %v225
    %v629 = vadd.s32 %v433, %v225
    %v630 = vadd.s32 %v434, %v225
    %v631 = vadd.s32 %v435, %v225
    %v632 = vadd.s32 %v436, %v225
    %v633 = vadd.s32 %v437, %v225
    %v634 = vadd.s32 %v438, %v225
    %v635 = vadd.s32 %v439, %v225
    %v636 = vadd.s32 %v440, %v225
    %v637 = vadd.s32 %v441, %v225
    %v638 = vadd.s32 %v442, %v225
    %v639 = vadd.s32 %v443, %v225
    %v640 = vadd.s32 %v444, %v225
    %v641 = vadd.s32 %v445, %v225
    %v642 = vadd.s32 %v446, %v225
    %v643 = vadd.s32 %v447, %v225
    %v644 = vadd.s32 %v448, %v225
    %v645 = vadd.s32 %v449, %v225
    %v646 = vadd.s32 %v450, %v225
    %v647 = vadd.s32 %v451, %v225
    %v648 = vadd.s32 %v452, %v225
    %v649 = vadd.s32 %v453, %v225
    %v650 = vadd.s32 %v454, %v225
    %v651 = vadd.s32 %v455, %v225
    %v652 = vadd.s32 %v456, %v225
    %v653 = vadd.s32 %v457, %v225
    %v654 = vadd.s32 %v458, %v225
    %v655 = vadd.s32 %v459, %v225
    %v656 = vadd.s32 %v460, %v225
    %v657 = vadd.s32 %v461, %v225
    %v658 = vadd.s32 %v462, %v225
    %v659 = vadd.s32 %v463, %v225
    %v660 = vadd.s32 %v464, %v225
    %v661 = vadd.s32 %v465, %v225
    %v662 = vadd.s32 %v466, %v225
    %v663 = vadd.s32 %v467, %v225
    %v664 = vadd.s32 %v468, %v225
    %v665 = vadd.s32 %v469, %v225
    %v666 = vadd.s32 %v470, %v225
    %v667 = vadd.s32 %v471, %v225
    %v668 = vadd.s32 %v472, %v225
    %v669 = vadd.s32 %v473, %v225
    %v670 = vadd.s32 %v474, %v225
    %v671 = vadd.s32 %v475, %v225
    %v672 = vadd.s32 %v476, %v225
    %v673 = vadd.s32 %v477, %v225
    %v674 = vadd.s32 %v478, %v225
    %v675 = vadd.s32 %v479, %v225
    %v676 = vadd.s32 %v480, %v225
    %v677 = vadd.s32 %v481, %v225
    %v678 = vadd.s32 %v482, %v225
    %v679 = vadd.s32 %v483, %v225
    %v680 = vadd.s32 %v484, %v225
    %v681 = vadd.s32 %v485, %v225
    %v682 = vadd.s32 %v486, %v225
    %v683 = vadd.s32 %v487, %v225
    %v684 = vadd.s32 %v488, %v225
    %v685 = vadd.s32 %v489, %v225
    %v686 = vadd.s32 %v490, %v225
    %v687 = vadd.s32 %v491, %v225
    %v688 = vadd.s32 %v492, %v225
    %v689 = vadd.s32 %v493, %v225
    %v690 = vadd.s32 %v494, %v225
    %v691 = vadd.s32 %v495, %v225
    %v692 = vadd.s32 %v496, %v225
    %v693 = vadd.s32 %v497, %v225
    %v694 = vadd.s32 %v498, %v225
    %v695 = vadd.s32 %v499, %v225
    %v696 = vadd.s32 %v500, %v225
    %v697 = vadd.s32 %v501, %v225
    %v698 = vadd.s32 %v502, %v225
    %v699 = vadd.s32 %v503, %v225
    %v700 = vadd.s32 %v504, %v225
    %v701 = vadd.s32 %v505, %v225
    %v702 = vadd.s32 %v506, %v225
    %v703 = vadd.s32 %v507, %v225
    %v704 = vadd.s32 %v508, %v225
    %v705 = vadd.s32 %v509, %v225
    %v706 = vadd.s32 %v510, %v225
    %v707 = vadd.s32 %v511, %v225
    %v708 = vadd.s32 %v512, %v225
    %v709 = vadd.s32 %v513, %v225
    %v710 = vadd.s32 %v514, %v225
    %v711 = vadd.s32 %v515, %v225
    %v712 = vadd.s32 %v516, %v225
    %v713 = vadd.s32 %v517, %v225
    %v714 = vadd.s32 %v518, %v225
    %v715 = vadd.s32 %v519, %v225
    %v716 = vadd.s32 %v520, %v225
    %v717 = vadd.s32 %v521, %v225
    %v718 = vadd.s32 %v522, %v225
    %v719 = vadd.s32 %v523, %v225
    %v720 = vadd.s32 %v524, %v225
    %v721 = vadd.s32 %v525, %v225
    %v722 = vadd.s32 %v526, %v225
    %v723 = vadd.s32 %v527, %v225
    %v724 = vadd.s32 %v528, %v225
    %v725 = vadd.s32 %v529, %v225
    %v726 = vadd.s32 %v530, %v225
    %v727 = vadd.s32 %v531, %v225
    %v728 = vadd.s32 %v532, %v225
    %v729 = vadd.s32 %v533, %v225
    %v730 = vadd.s32 %v534, %v225
    %v731 = vadd.s32 %v535, %v225
    %v732 = vadd.s32 %v536, %v225
    %v733 = vadd.s32 %v537, %v225
    %v734 = vadd.s32 %v538, %v225
    %v735 = vadd.s32 %v539, %v225
    %v736 = vadd.s32 %v540, %v225
    %v737 = vadd.s32 %v541, %v225
    %v738 = vadd.s32 %v542, %v225
    %v739 = vadd.s32 %v543, %v225
    %v740 = vadd.s32 %v544, %v225
    %v741 = vadd.s32 %v545, %v225
    %v742 = vadd.s32 %v546, %v225
    %v743 = vadd.s32 %v547, %v225
    %v744 = vadd.s32 %v548, %v225
    %v745 = vadd.s32 %v549, %v225
    %v746 = vadd.s32 %v550, %v225
    %v747 = vadd.s32 %v551, %v225
    %v748 = vadd.s32 %v552, %v225
    %v749 = vadd.s32 %v553, %v225
    %v750 = vadd.s32 %v554, %v225
    %v751 = vadd.s32 %v555, %v225
    %v752 = vadd.s32 %v556, %v225
    %v753 = vadd.s32 %v557, %v225
    %v754 = vadd.s32 %v558, %v225
    %v755 = vadd.s32 %v559, %v225
    %v756 = vadd.s32 %v560, %v225
    %v757 = vadd.s32 %v561, %v225
    %v758 = vadd.s32 %v562, %v225
    %v759 = vadd.s32 %v563, %v225
    %v760 = vadd.s32 %v564, %v225
    %v761 = vadd.s32 %v565, %v225
    %v762 = vadd.s32 %v566, %v225
    %v763 = vadd.s32 %v567, %v225
    %v764 = vadd.s32 %v568, %v225
    %v765 = vadd.s32 %v569, %v225
    %v766 = vadd.s32 %v570, %v225
    %v767 = vadd.s32 %v571, %v225
    %v768 = vadd.s32 %v572, %v225
    %v769 = vadd.s32 %v573, %v225
    %v770 = vadd.s32 %v574, %v225
    %v771 = vadd.s32 %v575, %v225
    %v772 = vadd.s32 %v576, %v225
    %v773 = vadd.s32 %v577, %v225
    %v774 = vadd.s32 %v578, %v225
    %v775 = vadd.s32 %v579, %v225
    %v776 = vadd.s32 %v580, %v225
    %v777 = vadd.s32 %v581, %v225
    %v778 = vadd.s32 %v582, %v225
    %v779 = vadd.s32 %v583, %v225
    %v780 = vadd.s32 %v584, %v225
    %v781 = vadd.s32 %v585, %v225
    %v782 = vadd.s32 %v586, %v225
    %v783 = vadd.s32 %v587, %v225
    %v784 = vadd.s32 %v588, %v225
    %v785 = vadd.s32 %v589, %v225
    %v786 = vadd.s32 %v590, %v225
    %v787 = vadd.s32 %v591, %v225
    %v788 = vadd.s32 %v592, %v225
    %v789 = vadd.s32 %v593, %v225
    %v790 = vadd.s32 %v594, %v225
    %v791 = vadd.s32 %v595, %v225
    %v792 = vadd.s32 %v596, %v225
    %v793 = vadd.s32 %v597, %v225
    %v794 = vadd.s32 %v598, %v225
    %v795 = vadd.s32 %v599, %v225
    %v796 = vadd.s32 %v600, %v225
    %v797 = vadd.s32 %v601, %v225
    %v798 = vadd.s32 %v602, %v225
    %v799 = vadd.s32 %v603, %v225
    %v800 = vadd.s32 %v604, %v225
    %v801 = vadd.s32 %v605, %v225
    %v802 = vadd.s32 %v606, %v225
    %v803 = vadd.s32 %v607, %v225
    %v804 = vadd.s32 %v608, %v225
    %v805 = vadd.s32 %v609, %v225
    %v806 = vadd.s32 %v610, %v225
    %v807 = vadd.s32 %v611, %v225
    %v808 = vadd.s32 %v612, %v225
    %v809 = vadd.s32 %v613, %v225
    %v810 = vadd.s32 %v614, %v225
    %v811 = vadd.s32 %v615, %v225
    %v812 = vadd.s32 %v616, %v225
    %v813 = vadd.s32 %v617, %v225
    %v814 = vadd.s32 %v618, %v225
    %v815 = vadd.s32 %v619, %v225
    %v816 = vmul.u32 %v620, 2654435761
    %v817 = vmul.u32 %v621, 2654435761
    %v818 = vmul.u32 %v622, 2654435761
    %v819 = vmul.u32 %v623, 2654435761
    %v820 = vmul.u32 %v624, 2654435761
    %v821 = vmul.u32 %v625, 2654435761
    %v822 = vmul.u32 %v626, 2654435761
    %v823 = vmul.u32 %v627, 2654435761
    %v824 = vmul.u32 %v628, 2654435761
    %v825 = vmul.u32 %v629, 2654435761
    %v826 = vmul.u32 %v630, 2654435761
    %v827 = vmul.u32 %v631, 2654435761
    %v828 = vmul.u32 %v632, 2654435761
    %v829 = vmul.u32 %v633, 2654435761
    %v830 = vmul.u32 %v634, 2654435761
    %v831 = vmul.u32 %v635, 2654435761
    %v832 = vmul.u32 %v636, 2654435761
    %v833 = vmul.u32 %v637, 2654435761
    %v834 = vmul.u32 %v638, 2654435761
    %v835 = vmul.u32 %v639, 2654435761
    %v836 = vmul.u32 %v640, 2654435761
    %v837 = vmul.u32 %v641, 2654435761
    %v838 = vmul.u32 %v642, 2654435761
    %v839 = vmul.u32 %v643, 2654435761
    %v840 = vmul.u32 %v644, 2654435761
    %v841 = vmul.u32 %v645, 2654435761
    %v842 = vmul.u32 %v646, 2654435761
    %v843 = vmul.u32 %v647, 2654435761
    %v844 = vmul.u32 %v648, 2654435761
    %v845 = vmul.u32 %v649, 2654435761
    %v846 = vmul.u32 %v650, 2654435761
    %v847 = vmul.u32 %v651, 2654435761
    %v848 = vmul.u32 %v652, 2654435761
    %v849 = vmul.u32 %v653, 2654435761
    %v850 = vmul.u32 %v654, 2654435761
    %v851 = vmul.u32 %v655, 2654435761
    %v852 = vmul.u32 %v656, 2654435761
    %v853 = vmul.u32 %v657, 2654435761
    %v854 = vmul.u32 %v658, 2654435761
    %v855 = vmul.u32 %v659, 2654435761
    %v856 = vmul.u32 %v660, 2654435761
    %v857 = vmul.u32 %v661, 2654435761
    %v858 = vmul.u32 %v662, 2654435761
    %v859 = vmul.u32 %v663, 2654435761
    %v860 = vmul.u32 %v664, 2654435761
    %v861 = vmul.u32 %v665, 2654435761
    %v862 = vmul.u32 %v666, 2654435761
    %v863 = vmul.u32 %v667, 2654435761
    %v864 = vmul.u32 %v668, 2654435761
    %v865 = vmul.u32 %v669, 2654435761
    %v866 = vmul.u32 %v670, 2654435761
    %v867 = vmul.u32 %v671, 2654435761
    %v868 = vmul.u32 %v672, 2654435761
    %v869 = vmul.u32 %v673, 2654435761
    %v870 = vmul.u32 %v674, 2654435761
    %v871 = vmul.u32 %v675, 2654435761
    %v872 = vmul.u32 %v676, 2654435761
    %v873 = vmul.u32 %v677, 2654435761
    %v874 = vmul.u32 %v678, 2654435761
    %v875 = vmul.u32 %v679, 2654435761
    %v876 = vmul.u32 %v680, 2654435761
    %v877 = vmul.u32 %v681, 2654435761
    %v878 = vmul.u32 %v682, 2654435761
    %v879 = vmul.u32 %v683, 2654435761
    %v880 = vmul.u32 %v684, 2654435761
    %v881 = vmul.u32 %v685, 2654435761
    %v882 = vmul.u32 %v686, 2654435761
    %v883 = vmul.u32 %v687, 2654435761
    %v884 = vmul.u32 %v688, 2654435761
    %v885 = vmul.u32 %v689, 2654435761
    %v886 = vmul.u32 %v690, 2654435761
    %v887 = vmul.u32 %v691, 2654435761
    %v888 = vmul.u32 %v692, 2654435761
    %v889 = vmul.u32 %v693, 2654435761
    %v890 = vmul.u32 %v694, 2654435761
    %v891 = vmul.u32 %v695, 2654435761
    %v892 = vmul.u32 %v696, 2654435761
    %v893 = vmul.u32 %v697, 2654435761
    %v894 = vmul.u32 %v698, 2654435761
    %v895 = vmul.u32 %v699, 2654435761
    %v896 = vmul.u32 %v700, 2654435761
    %v897 = vmul.u32 %v701, 2654435761
    %v898 = vmul.u32 %v702, 2654435761
    %v899 = vmul.u32 %v703, 2654435761
    %v900 = vmul.u32 %v704, 2654435761
    %v901 = vmul.u32 %v705, 2654435761
    %v902 = vmul.u32 %v706, 2654435761
    %v903 = vmul.u32 %v707, 2654435761
    %v904 = vmul.u32 %v708, 2654435761
    %v905 = vmul.u32 %v709, 2654435761
    %v906 = vmul.u32 %v710, 2654435761
    %v907 = vmul.u32 %v711, 2654435761
    %v908 = vmul.u32 %v712, 2654435761
    %v909 = vmul.u32 %v713, 2654435761
    %v910 = vmul.u32 %v714, 2654435761
    %v911 = vmul.u32 %v715, 2654435761
    %v912 = vmul.u32 %v716, 2654435761
    %v913 = vmul.u32 %v717, 2654435761
    %v914 = vmul.u32 %v718, 2654435761
    %v915 = vmul.u32 %v719, 2654435761
    %v916 = vmul.u32 %v720, 2654435761
    %v917 = vmul.u32 %v721, 2654435761
    %v918 = vmul.u32 %v722, 2654435761
    %v919 = vmul.u32 %v723, 2654435761
    %v920 = vmul.u32 %v724, 2654435761
    %v921 = vmul.u32 %v725, 2654435761
    %v922 = vmul.u32 %v726, 2654435761
    %v923 = vmul.u32 %v727, 2654435761
    %v924 = vmul.u32 %v728, 2654435761
    %v925 = vmul.u32 %v729, 2654435761
    %v926 = vmul.u32 %v730, 2654435761
    %v927 = vmul.u32 %v731, 2654435761
    %v928 = vmul.u32 %v732, 2654435761
    %v929 = vmul.u32 %v733, 2654435761
    %v930 = vmul.u32 %v734, 2654435761
    %v931 = vmul.u32 %v735, 2654435761
    %v932 = vmul.u32 %v736, 2654435761
    %v933 = vmul.u32 %v737, 2654435761
    %v934 = vmul.u32 %v738, 2654435761
    %v935 = vmul.u32 %v739, 2654435761
    %v936 = vmul.u32 %v740, 2654435761
    %v937 = vmul.u32 %v741, 2654435761
    %v938 = vmul.u32 %v742, 2654435761
    %v939 = vmul.u32 %v743, 2654435761
    %v940 = vmul.u32 %v744, 2654435761
    %v941 = vmul.u32 %v745, 2654435761
    %v942 = vmul.u32 %v746, 2654435761
    %v943 = vmul.u32 %v747, 2654435761
    %v944 = vmul.u32 %v748, 2654435761
    %v945 = vmul.u32 %v749, 2654435761
    %v946 = vmul.u32 %v750, 2654435761
    %v947 = vmul.u32 %v751, 2654435761
    %v948 = vmul.u32 %v752, 2654435761
    %v949 = vmul.u32 %v753, 2654435761
    %v950 = vmul.u32 %v754, 2654435761
    %v951 = vmul.u32 %v755, 2654435761
    %v952 = vmul.u32 %v756, 2654435761
    %v953 = vmul.u32 %v757, 2654435761
    %v954 = vmul.u32 %v758, 2654435761
    %v955 = vmul.u32 %v759, 2654435761
    %v956 = vmul.u32 %v760, 2654435761
    %v957 = vmul.u32 %v761, 2654435761
    %v958 = vmul.u32 %v762, 2654435761
    %v959 = vmul.u32 %v763, 2654435761
    %v960 = vmul.u32 %v764, 2654435761
    %v961 = vmul.u32 %v765, 2654435761
    %v962 = vmul.u32 %v766, 2654435761
    %v963 = vmul.u32 %v767, 2654435761
    %v964 = vmul.u32 %v768, 2654435761
    %v965 = vmul.u32 %v769, 2654435761
    %v966 = vmul.u32 %v770, 2654435761
    %v967 = vmul.u32 %v771, 2654435761
    %v968 = vmul.u32 %v772, 2654435761
    %v969 = vmul.u32 %v773, 2654435761
    %v970 = vmul.u32 %v774, 2654435761
    %v971 = vmul.u32 %v775, 2654435761
    %v972 = vmul.u32 %v776, 2654435761
    %v973 = vmul.u32 %v777, 2654435761
    %v974 = vmul.u32 %v778, 2654435761
    %v975 = vmul.u32 %v779, 2654435761
    %v976 = vmul.u32 %v780, 2654435761
    %v977 = vmul.u32 %v781, 2654435761
    %v978 = vmul.u32 %v782, 2654435761
    %v979 = vmul.u32 %v783, 2654435761
    %v980 = vmul.u32 %v784, 2654435761
    %v981 = vmul.u32 %v785, 2654435761
    %v982 = vmul.u32 %v786, 2654435761
    %v983 = vmul.u32 %v787, 2654435761
    %v984 = vmul.u32 %v788, 2654435761
    %v985 = vmul.u32 %v789, 2654435761
    %v986 = vmul.u32 %v790, 2654435761
    %v987 = vmul.u32 %v791, 2654435761
    %v988 = vmul.u32 %v792, 2654435761
    %v989 = vmul.u32 %v793, 2654435761
    %v990 = vmul.u32 %v794, 2654435761
    %v991 = vmul.u32 %v795, 2654435761
    %v992 = vmul.u32 %v796, 2654435761
    %v993 = vmul.u32 %v797, 2654435761
    %v994 = vmul.u32 %v798, 2654435761
    %v995 = vmul.u32 %v799, 2654435761
    %v996 = vmul.u32 %v800, 2654435761
    %v997 = vmul.u32 %v801, 2654435761
    %v998 = vmul.u32 %v802, 2654435761
    %v999 = vmul.u32 %v803, 2654435761
    %v1000 = vmul.u32 %v804, 2654435761
    %v1001 = vmul.u32 %v805, 2654435761
    %v1002 = vmul.u32 %v806, 2654435761
    %v1003 = vmul.u32 %v807, 2654435761
    %v1004 = vmul.u32 %v808, 2654435761
    %v1005 = vmul.u32 %v809, 2654435761
    %v1006 = vmul.u32 %v810, 2654435761
    %v1007 = vmul.u32 %v811, 2654435761
    %v1008 = vmul.u32 %v812, 2654435761
    %v1009 = vmul.u32 %v813, 2654435761
    %v1010 = vmul.u32 %v814, 2654435761
    %v1011 = vmul.u32 %v815, 2654435761
    %s1012 = sld [smem:[#allocation2]]
    %s1013 = smul.u32 %s1012, 2246822519
    %v1014 = vstv %s1013
    %v1015 = vadd.s32 %v816, %v1014
    %v1016 = vadd.s32 %v817, %v1014
    %v1017 = vadd.s32 %v818, %v1014
    %v1018 = vadd.s32 %v819, %v1014
    %v1019 = vadd.s32 %v820, %v1014
    %v1020 = vadd.s32 %v821, %v1014
    %v1021 = vadd.s32 %v822, %v1014
    %v1022 = vadd.s32 %v823, %v1014
    %v1023 = vadd.s32 %v824, %v1014
    %v1024 = vadd.s32 %v825, %v1014
    %v1025 = vadd.s32 %v826, %v1014
    %v1026 = vadd.s32 %v827, %v1014
    %v1027 = vadd.s32 %v828, %v1014
    %v1028 = vadd.s32 %v829, %v1014
    %v1029 = vadd.s32 %v830, %v1014
    %v1030 = vadd.s32 %v831, %v1014
    %v1031 = vadd.s32 %v832, %v1014
    %v1032 = vadd.s32 %v833, %v1014
    %v1033 = vadd.s32 %v834, %v1014
    %v1034 = vadd.s32 %v835, %v1014
    %v1035 = vadd.s32 %v836, %v1014
    %v1036 = vadd.s32 %v837, %v1014
    %v1037 = vadd.s32 %v838, %v1014
    %v1038 = vadd.s32 %v839, %v1014
    %v1039 = vadd.s32 %v840, %v1014
    %v1040 = vadd.s32 %v841, %v1014
    %v1041 = vadd.s32 %v842, %v1014
    %v1042 = vadd.s32 %v843, %v1014
    %v1043 = vadd.s32 %v844, %v1014
    %v1044 = vadd.s32 %v845, %v1014
    %v1045 = vadd.s32 %v846, %v1014
    %v1046 = vadd.s32 %v847, %v1014
    %v1047 = vadd.s32 %v848, %v1014
    %v1048 = vadd.s32 %v849, %v1014
    %v1049 = vadd.s32 %v850, %v1014
    %v1050 = vadd.s32 %v851, %v1014
    %v1051 = vadd.s32 %v852, %v1014
    %v1052 = vadd.s32 %v853, %v1014
    %v1053 = vadd.s32 %v854, %v1014
    %v1054 = vadd.s32 %v855, %v1014
    %v1055 = vadd.s32 %v856, %v1014
    %v1056 = vadd.s32 %v857, %v1014
    %v1057 = vadd.s32 %v858, %v1014
    %v1058 = vadd.s32 %v859, %v1014
    %v1059 = vadd.s32 %v860, %v1014
    %v1060 = vadd.s32 %v861, %v1014
    %v1061 = vadd.s32 %v862, %v1014
    %v1062 = vadd.s32 %v863, %v1014
    %v1063 = vadd.s32 %v864, %v1014
    %v1064 = vadd.s32 %v865, %v1014
    %v1065 = vadd.s32 %v866, %v1014
    %v1066 = vadd.s32 %v867, %v1014
    %v1067 = vadd.s32 %v868, %v1014
    %v1068 = vadd.s32 %v869, %v1014
    %v1069 = vadd.s32 %v870, %v1014
    %v1070 = vadd.s32 %v871, %v1014
    %v1071 = vadd.s32 %v872, %v1014
    %v1072 = vadd.s32 %v873, %v1014
    %v1073 = vadd.s32 %v874, %v1014
    %v1074 = vadd.s32 %v875, %v1014
    %v1075 = vadd.s32 %v876, %v1014
    %v1076 = vadd.s32 %v877, %v1014
    %v1077 = vadd.s32 %v878, %v1014
    %v1078 = vadd.s32 %v879, %v1014
    %v1079 = vadd.s32 %v880, %v1014
    %v1080 = vadd.s32 %v881, %v1014
    %v1081 = vadd.s32 %v882, %v1014
    %v1082 = vadd.s32 %v883, %v1014
    %v1083 = vadd.s32 %v884, %v1014
    %v1084 = vadd.s32 %v885, %v1014
    %v1085 = vadd.s32 %v886, %v1014
    %v1086 = vadd.s32 %v887, %v1014
    %v1087 = vadd.s32 %v888, %v1014
    %v1088 = vadd.s32 %v889, %v1014
    %v1089 = vadd.s32 %v890, %v1014
    %v1090 = vadd.s32 %v891, %v1014
    %v1091 = vadd.s32 %v892, %v1014
    %v1092 = vadd.s32 %v893, %v1014
    %v1093 = vadd.s32 %v894, %v1014
    %v1094 = vadd.s32 %v895, %v1014
    %v1095 = vadd.s32 %v896, %v1014
    %v1096 = vadd.s32 %v897, %v1014
    %v1097 = vadd.s32 %v898, %v1014
    %v1098 = vadd.s32 %v899, %v1014
    %v1099 = vadd.s32 %v900, %v1014
    %v1100 = vadd.s32 %v901, %v1014
    %v1101 = vadd.s32 %v902, %v1014
    %v1102 = vadd.s32 %v903, %v1014
    %v1103 = vadd.s32 %v904, %v1014
    %v1104 = vadd.s32 %v905, %v1014
    %v1105 = vadd.s32 %v906, %v1014
    %v1106 = vadd.s32 %v907, %v1014
    %v1107 = vadd.s32 %v908, %v1014
    %v1108 = vadd.s32 %v909, %v1014
    %v1109 = vadd.s32 %v910, %v1014
    %v1110 = vadd.s32 %v911, %v1014
    %v1111 = vadd.s32 %v912, %v1014
    %v1112 = vadd.s32 %v913, %v1014
    %v1113 = vadd.s32 %v914, %v1014
    %v1114 = vadd.s32 %v915, %v1014
    %v1115 = vadd.s32 %v916, %v1014
    %v1116 = vadd.s32 %v917, %v1014
    %v1117 = vadd.s32 %v918, %v1014
    %v1118 = vadd.s32 %v919, %v1014
    %v1119 = vadd.s32 %v920, %v1014
    %v1120 = vadd.s32 %v921, %v1014
    %v1121 = vadd.s32 %v922, %v1014
    %v1122 = vadd.s32 %v923, %v1014
    %v1123 = vadd.s32 %v924, %v1014
    %v1124 = vadd.s32 %v925, %v1014
    %v1125 = vadd.s32 %v926, %v1014
    %v1126 = vadd.s32 %v927, %v1014
    %v1127 = vadd.s32 %v928, %v1014
    %v1128 = vadd.s32 %v929, %v1014
    %v1129 = vadd.s32 %v930, %v1014
    %v1130 = vadd.s32 %v931, %v1014
    %v1131 = vadd.s32 %v932, %v1014
    %v1132 = vadd.s32 %v933, %v1014
    %v1133 = vadd.s32 %v934, %v1014
    %v1134 = vadd.s32 %v935, %v1014
    %v1135 = vadd.s32 %v936, %v1014
    %v1136 = vadd.s32 %v937, %v1014
    %v1137 = vadd.s32 %v938, %v1014
    %v1138 = vadd.s32 %v939, %v1014
    %v1139 = vadd.s32 %v940, %v1014
    %v1140 = vadd.s32 %v941, %v1014
    %v1141 = vadd.s32 %v942, %v1014
    %v1142 = vadd.s32 %v943, %v1014
    %v1143 = vadd.s32 %v944, %v1014
    %v1144 = vadd.s32 %v945, %v1014
    %v1145 = vadd.s32 %v946, %v1014
    %v1146 = vadd.s32 %v947, %v1014
    %v1147 = vadd.s32 %v948, %v1014
    %v1148 = vadd.s32 %v949, %v1014
    %v1149 = vadd.s32 %v950, %v1014
    %v1150 = vadd.s32 %v951, %v1014
    %v1151 = vadd.s32 %v952, %v1014
    %v1152 = vadd.s32 %v953, %v1014
    %v1153 = vadd.s32 %v954, %v1014
    %v1154 = vadd.s32 %v955, %v1014
    %v1155 = vadd.s32 %v956, %v1014
    %v1156 = vadd.s32 %v957, %v1014
    %v1157 = vadd.s32 %v958, %v1014
    %v1158 = vadd.s32 %v959, %v1014
    %v1159 = vadd.s32 %v960, %v1014
    %v1160 = vadd.s32 %v961, %v1014
    %v1161 = vadd.s32 %v962, %v1014
    %v1162 = vadd.s32 %v963, %v1014
    %v1163 = vadd.s32 %v964, %v1014
    %v1164 = vadd.s32 %v965, %v1014
    %v1165 = vadd.s32 %v966, %v1014
    %v1166 = vadd.s32 %v967, %v1014
    %v1167 = vadd.s32 %v968, %v1014
    %v1168 = vadd.s32 %v969, %v1014
    %v1169 = vadd.s32 %v970, %v1014
    %v1170 = vadd.s32 %v971, %v1014
    %v1171 = vadd.s32 %v972, %v1014
    %v1172 = vadd.s32 %v973, %v1014
    %v1173 = vadd.s32 %v974, %v1014
    %v1174 = vadd.s32 %v975, %v1014
    %v1175 = vadd.s32 %v976, %v1014
    %v1176 = vadd.s32 %v977, %v1014
    %v1177 = vadd.s32 %v978, %v1014
    %v1178 = vadd.s32 %v979, %v1014
    %v1179 = vadd.s32 %v980, %v1014
    %v1180 = vadd.s32 %v981, %v1014
    %v1181 = vadd.s32 %v982, %v1014
    %v1182 = vadd.s32 %v983, %v1014
    %v1183 = vadd.s32 %v984, %v1014
    %v1184 = vadd.s32 %v985, %v1014
    %v1185 = vadd.s32 %v986, %v1014
    %v1186 = vadd.s32 %v987, %v1014
    %v1187 = vadd.s32 %v988, %v1014
    %v1188 = vadd.s32 %v989, %v1014
    %v1189 = vadd.s32 %v990, %v1014
    %v1190 = vadd.s32 %v991, %v1014
    %v1191 = vadd.s32 %v992, %v1014
    %v1192 = vadd.s32 %v993, %v1014
    %v1193 = vadd.s32 %v994, %v1014
    %v1194 = vadd.s32 %v995, %v1014
    %v1195 = vadd.s32 %v996, %v1014
    %v1196 = vadd.s32 %v997, %v1014
    %v1197 = vadd.s32 %v998, %v1014
    %v1198 = vadd.s32 %v999, %v1014
    %v1199 = vadd.s32 %v1000, %v1014
    %v1200 = vadd.s32 %v1001, %v1014
    %v1201 = vadd.s32 %v1002, %v1014
    %v1202 = vadd.s32 %v1003, %v1014
    %v1203 = vadd.s32 %v1004, %v1014
    %v1204 = vadd.s32 %v1005, %v1014
    %v1205 = vadd.s32 %v1006, %v1014
    %v1206 = vadd.s32 %v1007, %v1014
    %v1207 = vadd.s32 %v1008, %v1014
    %v1208 = vadd.s32 %v1009, %v1014
    %v1209 = vadd.s32 %v1010, %v1014
    %v1210 = vadd.s32 %v1011, %v1014
    %v1211 = vshra.s32 %v1015, 16
    %v1212 = vshra.s32 %v1016, 16
    %v1213 = vshra.s32 %v1017, 16
    %v1214 = vshra.s32 %v1018, 16
    %v1215 = vshra.s32 %v1019, 16
    %v1216 = vshra.s32 %v1020, 16
    %v1217 = vshra.s32 %v1021, 16
    %v1218 = vshra.s32 %v1022, 16
    %v1219 = vshra.s32 %v1023, 16
    %v1220 = vshra.s32 %v1024, 16
    %v1221 = vshra.s32 %v1025, 16
    %v1222 = vshra.s32 %v1026, 16
    %v1223 = vshra.s32 %v1027, 16
    %v1224 = vshra.s32 %v1028, 16
    %v1225 = vshra.s32 %v1029, 16
    %v1226 = vshra.s32 %v1030, 16
    %v1227 = vshra.s32 %v1031, 16
    %v1228 = vshra.s32 %v1032, 16
    %v1229 = vshra.s32 %v1033, 16
    %v1230 = vshra.s32 %v1034, 16
    %v1231 = vshra.s32 %v1035, 16
    %v1232 = vshra.s32 %v1036, 16
    %v1233 = vshra.s32 %v1037, 16
    %v1234 = vshra.s32 %v1038, 16
    %v1235 = vshra.s32 %v1039, 16
    %v1236 = vshra.s32 %v1040, 16
    %v1237 = vshra.s32 %v1041, 16
    %v1238 = vshra.s32 %v1042, 16
    %v1239 = vshra.s32 %v1043, 16
    %v1240 = vshra.s32 %v1044, 16
    %v1241 = vshra.s32 %v1045, 16
    %v1242 = vshra.s32 %v1046, 16
    %v1243 = vshra.s32 %v1047, 16
    %v1244 = vshra.s32 %v1048, 16
    %v1245 = vshra.s32 %v1049, 16
    %v1246 = vshra.s32 %v1050, 16
    %v1247 = vshra.s32 %v1051, 16
    %v1248 = vshra.s32 %v1052, 16
    %v1249 = vshra.s32 %v1053, 16
    %v1250 = vshra.s32 %v1054, 16
    %v1251 = vshra.s32 %v1055, 16
    %v1252 = vshra.s32 %v1056, 16
    %v1253 = vshra.s32 %v1057, 16
    %v1254 = vshra.s32 %v1058, 16
    %v1255 = vshra.s32 %v1059, 16
    %v1256 = vshra.s32 %v1060, 16
    %v1257 = vshra.s32 %v1061, 16
    %v1258 = vshra.s32 %v1062, 16
    %v1259 = vshra.s32 %v1063, 16
    %v1260 = vshra.s32 %v1064, 16
    %v1261 = vshra.s32 %v1065, 16
    %v1262 = vshra.s32 %v1066, 16
    %v1263 = vshra.s32 %v1067, 16
    %v1264 = vshra.s32 %v1068, 16
    %v1265 = vshra.s32 %v1069, 16
    %v1266 = vshra.s32 %v1070, 16
    %v1267 = vshra.s32 %v1071, 16
    %v1268 = vshra.s32 %v1072, 16
    %v1269 = vshra.s32 %v1073, 16
    %v1270 = vshra.s32 %v1074, 16
    %v1271 = vshra.s32 %v1075, 16
    %v1272 = vshra.s32 %v1076, 16
    %v1273 = vshra.s32 %v1077, 16
    %v1274 = vshra.s32 %v1078, 16
    %v1275 = vshra.s32 %v1079, 16
    %v1276 = vshra.s32 %v1080, 16
    %v1277 = vshra.s32 %v1081, 16
    %v1278 = vshra.s32 %v1082, 16
    %v1279 = vshra.s32 %v1083, 16
    %v1280 = vshra.s32 %v1084, 16
    %v1281 = vshra.s32 %v1085, 16
    %v1282 = vshra.s32 %v1086, 16
    %v1283 = vshra.s32 %v1087, 16
    %v1284 = vshra.s32 %v1088, 16
    %v1285 = vshra.s32 %v1089, 16
    %v1286 = vshra.s32 %v1090, 16
    %v1287 = vshra.s32 %v1091, 16
    %v1288 = vshra.s32 %v1092, 16
    %v1289 = vshra.s32 %v1093, 16
    %v1290 = vshra.s32 %v1094, 16
    %v1291 = vshra.s32 %v1095, 16
    %v1292 = vshra.s32 %v1096, 16
    %v1293 = vshra.s32 %v1097, 16
    %v1294 = vshra.s32 %v1098, 16
    %v1295 = vshra.s32 %v1099, 16
    %v1296 = vshra.s32 %v1100, 16
    %v1297 = vshra.s32 %v1101, 16
    %v1298 = vshra.s32 %v1102, 16
    %v1299 = vshra.s32 %v1103, 16
    %v1300 = vshra.s32 %v1104, 16
    %v1301 = vshra.s32 %v1105, 16
    %v1302 = vshra.s32 %v1106, 16
    %v1303 = vshra.s32 %v1107, 16
    %v1304 = vshra.s32 %v1108, 16
    %v1305 = vshra.s32 %v1109, 16
    %v1306 = vshra.s32 %v1110, 16
    %v1307 = vshra.s32 %v1111, 16
    %v1308 = vshra.s32 %v1112, 16
    %v1309 = vshra.s32 %v1113, 16
    %v1310 = vshra.s32 %v1114, 16
    %v1311 = vshra.s32 %v1115, 16
    %v1312 = vshra.s32 %v1116, 16
    %v1313 = vshra.s32 %v1117, 16
    %v1314 = vshra.s32 %v1118, 16
    %v1315 = vshra.s32 %v1119, 16
    %v1316 = vshra.s32 %v1120, 16
    %v1317 = vshra.s32 %v1121, 16
    %v1318 = vshra.s32 %v1122, 16
    %v1319 = vshra.s32 %v1123, 16
    %v1320 = vshra.s32 %v1124, 16
    %v1321 = vshra.s32 %v1125, 16
    %v1322 = vshra.s32 %v1126, 16
    %v1323 = vshra.s32 %v1127, 16
    %v1324 = vshra.s32 %v1128, 16
    %v1325 = vshra.s32 %v1129, 16
    %v1326 = vshra.s32 %v1130, 16
    %v1327 = vshra.s32 %v1131, 16
    %v1328 = vshra.s32 %v1132, 16
    %v1329 = vshra.s32 %v1133, 16
    %v1330 = vshra.s32 %v1134, 16
    %v1331 = vshra.s32 %v1135, 16
    %v1332 = vshra.s32 %v1136, 16
    %v1333 = vshra.s32 %v1137, 16
    %v1334 = vshra.s32 %v1138, 16
    %v1335 = vshra.s32 %v1139, 16
    %v1336 = vshra.s32 %v1140, 16
    %v1337 = vshra.s32 %v1141, 16
    %v1338 = vshra.s32 %v1142, 16
    %v1339 = vshra.s32 %v1143, 16
    %v1340 = vshra.s32 %v1144, 16
    %v1341 = vshra.s32 %v1145, 16
    %v1342 = vshra.s32 %v1146, 16
    %v1343 = vshra.s32 %v1147, 16
    %v1344 = vshra.s32 %v1148, 16
    %v1345 = vshra.s32 %v1149, 16
    %v1346 = vshra.s32 %v1150, 16
    %v1347 = vshra.s32 %v1151, 16
    %v1348 = vshra.s32 %v1152, 16
    %v1349 = vshra.s32 %v1153, 16
    %v1350 = vshra.s32 %v1154, 16
    %v1351 = vshra.s32 %v1155, 16
    %v1352 = vshra.s32 %v1156, 16
    %v1353 = vshra.s32 %v1157, 16
    %v1354 = vshra.s32 %v1158, 16
    %v1355 = vshra.s32 %v1159, 16
    %v1356 = vshra.s32 %v1160, 16
    %v1357 = vshra.s32 %v1161, 16
    %v1358 = vshra.s32 %v1162, 16
    %v1359 = vshra.s32 %v1163, 16
    %v1360 = vshra.s32 %v1164, 16
    %v1361 = vshra.s32 %v1165, 16
    %v1362 = vshra.s32 %v1166, 16
    %v1363 = vshra.s32 %v1167, 16
    %v1364 = vshra.s32 %v1168, 16
    %v1365 = vshra.s32 %v1169, 16
    %v1366 = vshra.s32 %v1170, 16
    %v1367 = vshra.s32 %v1171, 16
    %v1368 = vshra.s32 %v1172, 16
    %v1369 = vshra.s32 %v1173, 16
    %v1370 = vshra.s32 %v1174, 16
    %v1371 = vshra.s32 %v1175, 16
    %v1372 = vshra.s32 %v1176, 16
    %v1373 = vshra.s32 %v1177, 16
    %v1374 = vshra.s32 %v1178, 16
    %v1375 = vshra.s32 %v1179, 16
    %v1376 = vshra.s32 %v1180, 16
    %v1377 = vshra.s32 %v1181, 16
    %v1378 = vshra.s32 %v1182, 16
    %v1379 = vshra.s32 %v1183, 16
    %v1380 = vshra.s32 %v1184, 16
    %v1381 = vshra.s32 %v1185, 16
    %v1382 = vshra.s32 %v1186, 16
    %v1383 = vshra.s32 %v1187, 16
    %v1384 = vshra.s32 %v1188, 16
    %v1385 = vshra.s32 %v1189, 16
    %v1386 = vshra.s32 %v1190, 16
    %v1387 = vshra.s32 %v1191, 16
    %v1388 = vshra.s32 %v1192, 16
    %v1389 = vshra.s32 %v1193, 16
    %v1390 = vshra.s32 %v1194, 16
    %v1391 = vshra.s32 %v1195, 16
    %v1392 = vshra.s32 %v1196, 16
    %v1393 = vshra.s32 %v1197, 16
    %v1394 = vshra.s32 %v1198, 16
    %v1395 = vshra.s32 %v1199, 16
    %v1396 = vshra.s32 %v1200, 16
    %v1397 = vshra.s32 %v1201, 16
    %v1398 = vshra.s32 %v1202, 16
    %v1399 = vshra.s32 %v1203, 16
    %v1400 = vshra.s32 %v1204, 16
    %v1401 = vshra.s32 %v1205, 16
    %v1402 = vshra.s32 %v1206, 16
    %v1403 = vshra.s32 %v1207, 16
    %v1404 = vshra.s32 %v1208, 16
    %v1405 = vshra.s32 %v1209, 16
    %v1406 = vshra.s32 %v1210, 16
    %v1407 = vand.u32 %v1211, 65535
    %v1408 = vand.u32 %v1212, 65535
    %v1409 = vand.u32 %v1213, 65535
    %v1410 = vand.u32 %v1214, 65535
    %v1411 = vand.u32 %v1215, 65535
    %v1412 = vand.u32 %v1216, 65535
    %v1413 = vand.u32 %v1217, 65535
    %v1414 = vand.u32 %v1218, 65535
    %v1415 = vand.u32 %v1219, 65535
    %v1416 = vand.u32 %v1220, 65535
    %v1417 = vand.u32 %v1221, 65535
    %v1418 = vand.u32 %v1222, 65535
    %v1419 = vand.u32 %v1223, 65535
    %v1420 = vand.u32 %v1224, 65535
    %v1421 = vand.u32 %v1225, 65535
    %v1422 = vand.u32 %v1226, 65535
    %v1423 = vand.u32 %v1227, 65535
    %v1424 = vand.u32 %v1228, 65535
    %v1425 = vand.u32 %v1229, 65535
    %v1426 = vand.u32 %v1230, 65535
    %v1427 = vand.u32 %v1231, 65535
    %v1428 = vand.u32 %v1232, 65535
    %v1429 = vand.u32 %v1233, 65535
    %v1430 = vand.u32 %v1234, 65535
    %v1431 = vand.u32 %v1235, 65535
    %v1432 = vand.u32 %v1236, 65535
    %v1433 = vand.u32 %v1237, 65535
    %v1434 = vand.u32 %v1238, 65535
    %v1435 = vand.u32 %v1239, 65535
    %v1436 = vand.u32 %v1240, 65535
    %v1437 = vand.u32 %v1241, 65535
    %v1438 = vand.u32 %v1242, 65535
    %v1439 = vand.u32 %v1243, 65535
    %v1440 = vand.u32 %v1244, 65535
    %v1441 = vand.u32 %v1245, 65535
    %v1442 = vand.u32 %v1246, 65535
    %v1443 = vand.u32 %v1247, 65535
    %v1444 = vand.u32 %v1248, 65535
    %v1445 = vand.u32 %v1249, 65535
    %v1446 = vand.u32 %v1250, 65535
    %v1447 = vand.u32 %v1251, 65535
    %v1448 = vand.u32 %v1252, 65535
    %v1449 = vand.u32 %v1253, 65535
    %v1450 = vand.u32 %v1254, 65535
    %v1451 = vand.u32 %v1255, 65535
    %v1452 = vand.u32 %v1256, 65535
    %v1453 = vand.u32 %v1257, 65535
    %v1454 = vand.u32 %v1258, 65535
    %v1455 = vand.u32 %v1259, 65535
    %v1456 = vand.u32 %v1260, 65535
    %v1457 = vand.u32 %v1261, 65535
    %v1458 = vand.u32 %v1262, 65535
    %v1459 = vand.u32 %v1263, 65535
    %v1460 = vand.u32 %v1264, 65535
    %v1461 = vand.u32 %v1265, 65535
    %v1462 = vand.u32 %v1266, 65535
    %v1463 = vand.u32 %v1267, 65535
    %v1464 = vand.u32 %v1268, 65535
    %v1465 = vand.u32 %v1269, 65535
    %v1466 = vand.u32 %v1270, 65535
    %v1467 = vand.u32 %v1271, 65535
    %v1468 = vand.u32 %v1272, 65535
    %v1469 = vand.u32 %v1273, 65535
    %v1470 = vand.u32 %v1274, 65535
    %v1471 = vand.u32 %v1275, 65535
    %v1472 = vand.u32 %v1276, 65535
    %v1473 = vand.u32 %v1277, 65535
    %v1474 = vand.u32 %v1278, 65535
    %v1475 = vand.u32 %v1279, 65535
    %v1476 = vand.u32 %v1280, 65535
    %v1477 = vand.u32 %v1281, 65535
    %v1478 = vand.u32 %v1282, 65535
    %v1479 = vand.u32 %v1283, 65535
    %v1480 = vand.u32 %v1284, 65535
    %v1481 = vand.u32 %v1285, 65535
    %v1482 = vand.u32 %v1286, 65535
    %v1483 = vand.u32 %v1287, 65535
    %v1484 = vand.u32 %v1288, 65535
    %v1485 = vand.u32 %v1289, 65535
    %v1486 = vand.u32 %v1290, 65535
    %v1487 = vand.u32 %v1291, 65535
    %v1488 = vand.u32 %v1292, 65535
    %v1489 = vand.u32 %v1293, 65535
    %v1490 = vand.u32 %v1294, 65535
    %v1491 = vand.u32 %v1295, 65535
    %v1492 = vand.u32 %v1296, 65535
    %v1493 = vand.u32 %v1297, 65535
    %v1494 = vand.u32 %v1298, 65535
    %v1495 = vand.u32 %v1299, 65535
    %v1496 = vand.u32 %v1300, 65535
    %v1497 = vand.u32 %v1301, 65535
    %v1498 = vand.u32 %v1302, 65535
    %v1499 = vand.u32 %v1303, 65535
    %v1500 = vand.u32 %v1304, 65535
    %v1501 = vand.u32 %v1305, 65535
    %v1502 = vand.u32 %v1306, 65535
    %v1503 = vand.u32 %v1307, 65535
    %v1504 = vand.u32 %v1308, 65535
    %v1505 = vand.u32 %v1309, 65535
    %v1506 = vand.u32 %v1310, 65535
    %v1507 = vand.u32 %v1311, 65535
    %v1508 = vand.u32 %v1312, 65535
    %v1509 = vand.u32 %v1313, 65535
    %v1510 = vand.u32 %v1314, 65535
    %v1511 = vand.u32 %v1315, 65535
    %v1512 = vand.u32 %v1316, 65535
    %v1513 = vand.u32 %v1317, 65535
    %v1514 = vand.u32 %v1318, 65535
    %v1515 = vand.u32 %v1319, 65535
    %v1516 = vand.u32 %v1320, 65535
    %v1517 = vand.u32 %v1321, 65535
    %v1518 = vand.u32 %v1322, 65535
    %v1519 = vand.u32 %v1323, 65535
    %v1520 = vand.u32 %v1324, 65535
    %v1521 = vand.u32 %v1325, 65535
    %v1522 = vand.u32 %v1326, 65535
    %v1523 = vand.u32 %v1327, 65535
    %v1524 = vand.u32 %v1328, 65535
    %v1525 = vand.u32 %v1329, 65535
    %v1526 = vand.u32 %v1330, 65535
    %v1527 = vand.u32 %v1331, 65535
    %v1528 = vand.u32 %v1332, 65535
    %v1529 = vand.u32 %v1333, 65535
    %v1530 = vand.u32 %v1334, 65535
    %v1531 = vand.u32 %v1335, 65535
    %v1532 = vand.u32 %v1336, 65535
    %v1533 = vand.u32 %v1337, 65535
    %v1534 = vand.u32 %v1338, 65535
    %v1535 = vand.u32 %v1339, 65535
    %v1536 = vand.u32 %v1340, 65535
    %v1537 = vand.u32 %v1341, 65535
    %v1538 = vand.u32 %v1342, 65535
    %v1539 = vand.u32 %v1343, 65535
    %v1540 = vand.u32 %v1344, 65535
    %v1541 = vand.u32 %v1345, 65535
    %v1542 = vand.u32 %v1346, 65535
    %v1543 = vand.u32 %v1347, 65535
    %v1544 = vand.u32 %v1348, 65535
    %v1545 = vand.u32 %v1349, 65535
    %v1546 = vand.u32 %v1350, 65535
    %v1547 = vand.u32 %v1351, 65535
    %v1548 = vand.u32 %v1352, 65535
    %v1549 = vand.u32 %v1353, 65535
    %v1550 = vand.u32 %v1354, 65535
    %v1551 = vand.u32 %v1355, 65535
    %v1552 = vand.u32 %v1356, 65535
    %v1553 = vand.u32 %v1357, 65535
    %v1554 = vand.u32 %v1358, 65535
    %v1555 = vand.u32 %v1359, 65535
    %v1556 = vand.u32 %v1360, 65535
    %v1557 = vand.u32 %v1361, 65535
    %v1558 = vand.u32 %v1362, 65535
    %v1559 = vand.u32 %v1363, 65535
    %v1560 = vand.u32 %v1364, 65535
    %v1561 = vand.u32 %v1365, 65535
    %v1562 = vand.u32 %v1366, 65535
    %v1563 = vand.u32 %v1367, 65535
    %v1564 = vand.u32 %v1368, 65535
    %v1565 = vand.u32 %v1369, 65535
    %v1566 = vand.u32 %v1370, 65535
    %v1567 = vand.u32 %v1371, 65535
    %v1568 = vand.u32 %v1372, 65535
    %v1569 = vand.u32 %v1373, 65535
    %v1570 = vand.u32 %v1374, 65535
    %v1571 = vand.u32 %v1375, 65535
    %v1572 = vand.u32 %v1376, 65535
    %v1573 = vand.u32 %v1377, 65535
    %v1574 = vand.u32 %v1378, 65535
    %v1575 = vand.u32 %v1379, 65535
    %v1576 = vand.u32 %v1380, 65535
    %v1577 = vand.u32 %v1381, 65535
    %v1578 = vand.u32 %v1382, 65535
    %v1579 = vand.u32 %v1383, 65535
    %v1580 = vand.u32 %v1384, 65535
    %v1581 = vand.u32 %v1385, 65535
    %v1582 = vand.u32 %v1386, 65535
    %v1583 = vand.u32 %v1387, 65535
    %v1584 = vand.u32 %v1388, 65535
    %v1585 = vand.u32 %v1389, 65535
    %v1586 = vand.u32 %v1390, 65535
    %v1587 = vand.u32 %v1391, 65535
    %v1588 = vand.u32 %v1392, 65535
    %v1589 = vand.u32 %v1393, 65535
    %v1590 = vand.u32 %v1394, 65535
    %v1591 = vand.u32 %v1395, 65535
    %v1592 = vand.u32 %v1396, 65535
    %v1593 = vand.u32 %v1397, 65535
    %v1594 = vand.u32 %v1398, 65535
    %v1595 = vand.u32 %v1399, 65535
    %v1596 = vand.u32 %v1400, 65535
    %v1597 = vand.u32 %v1401, 65535
    %v1598 = vand.u32 %v1402, 65535
    %v1599 = vand.u32 %v1403, 65535
    %v1600 = vand.u32 %v1404, 65535
    %v1601 = vand.u32 %v1405, 65535
    %v1602 = vand.u32 %v1406, 65535
    %v1603 = vxor.u32 %v1015, %v1407
    %v1604 = vxor.u32 %v1016, %v1408
    %v1605 = vxor.u32 %v1017, %v1409
    %v1606 = vxor.u32 %v1018, %v1410
    %v1607 = vxor.u32 %v1019, %v1411
    %v1608 = vxor.u32 %v1020, %v1412
    %v1609 = vxor.u32 %v1021, %v1413
    %v1610 = vxor.u32 %v1022, %v1414
    %v1611 = vxor.u32 %v1023, %v1415
    %v1612 = vxor.u32 %v1024, %v1416
    %v1613 = vxor.u32 %v1025, %v1417
    %v1614 = vxor.u32 %v1026, %v1418
    %v1615 = vxor.u32 %v1027, %v1419
    %v1616 = vxor.u32 %v1028, %v1420
    %v1617 = vxor.u32 %v1029, %v1421
    %v1618 = vxor.u32 %v1030, %v1422
    %v1619 = vxor.u32 %v1031, %v1423
    %v1620 = vxor.u32 %v1032, %v1424
    %v1621 = vxor.u32 %v1033, %v1425
    %v1622 = vxor.u32 %v1034, %v1426
    %v1623 = vxor.u32 %v1035, %v1427
    %v1624 = vxor.u32 %v1036, %v1428
    %v1625 = vxor.u32 %v1037, %v1429
    %v1626 = vxor.u32 %v1038, %v1430
    %v1627 = vxor.u32 %v1039, %v1431
    %v1628 = vxor.u32 %v1040, %v1432
    %v1629 = vxor.u32 %v1041, %v1433
    %v1630 = vxor.u32 %v1042, %v1434
    %v1631 = vxor.u32 %v1043, %v1435
    %v1632 = vxor.u32 %v1044, %v1436
    %v1633 = vxor.u32 %v1045, %v1437
    %v1634 = vxor.u32 %v1046, %v1438
    %v1635 = vxor.u32 %v1047, %v1439
    %v1636 = vxor.u32 %v1048, %v1440
    %v1637 = vxor.u32 %v1049, %v1441
    %v1638 = vxor.u32 %v1050, %v1442
    %v1639 = vxor.u32 %v1051, %v1443
    %v1640 = vxor.u32 %v1052, %v1444
    %v1641 = vxor.u32 %v1053, %v1445
    %v1642 = vxor.u32 %v1054, %v1446
    %v1643 = vxor.u32 %v1055, %v1447
    %v1644 = vxor.u32 %v1056, %v1448
    %v1645 = vxor.u32 %v1057, %v1449
    %v1646 = vxor.u32 %v1058, %v1450
    %v1647 = vxor.u32 %v1059, %v1451
    %v1648 = vxor.u32 %v1060, %v1452
    %v1649 = vxor.u32 %v1061, %v1453
    %v1650 = vxor.u32 %v1062, %v1454
    %v1651 = vxor.u32 %v1063, %v1455
    %v1652 = vxor.u32 %v1064, %v1456
    %v1653 = vxor.u32 %v1065, %v1457
    %v1654 = vxor.u32 %v1066, %v1458
    %v1655 = vxor.u32 %v1067, %v1459
    %v1656 = vxor.u32 %v1068, %v1460
    %v1657 = vxor.u32 %v1069, %v1461
    %v1658 = vxor.u32 %v1070, %v1462
    %v1659 = vxor.u32 %v1071, %v1463
    %v1660 = vxor.u32 %v1072, %v1464
    %v1661 = vxor.u32 %v1073, %v1465
    %v1662 = vxor.u32 %v1074, %v1466
    %v1663 = vxor.u32 %v1075, %v1467
    %v1664 = vxor.u32 %v1076, %v1468
    %v1665 = vxor.u32 %v1077, %v1469
    %v1666 = vxor.u32 %v1078, %v1470
    %v1667 = vxor.u32 %v1079, %v1471
    %v1668 = vxor.u32 %v1080, %v1472
    %v1669 = vxor.u32 %v1081, %v1473
    %v1670 = vxor.u32 %v1082, %v1474
    %v1671 = vxor.u32 %v1083, %v1475
    %v1672 = vxor.u32 %v1084, %v1476
    %v1673 = vxor.u32 %v1085, %v1477
    %v1674 = vxor.u32 %v1086, %v1478
    %v1675 = vxor.u32 %v1087, %v1479
    %v1676 = vxor.u32 %v1088, %v1480
    %v1677 = vxor.u32 %v1089, %v1481
    %v1678 = vxor.u32 %v1090, %v1482
    %v1679 = vxor.u32 %v1091, %v1483
    %v1680 = vxor.u32 %v1092, %v1484
    %v1681 = vxor.u32 %v1093, %v1485
    %v1682 = vxor.u32 %v1094, %v1486
    %v1683 = vxor.u32 %v1095, %v1487
    %v1684 = vxor.u32 %v1096, %v1488
    %v1685 = vxor.u32 %v1097, %v1489
    %v1686 = vxor.u32 %v1098, %v1490
    %v1687 = vxor.u32 %v1099, %v1491
    %v1688 = vxor.u32 %v1100, %v1492
    %v1689 = vxor.u32 %v1101, %v1493
    %v1690 = vxor.u32 %v1102, %v1494
    %v1691 = vxor.u32 %v1103, %v1495
    %v1692 = vxor.u32 %v1104, %v1496
    %v1693 = vxor.u32 %v1105, %v1497
    %v1694 = vxor.u32 %v1106, %v1498
    %v1695 = vxor.u32 %v1107, %v1499
    %v1696 = vxor.u32 %v1108, %v1500
    %v1697 = vxor.u32 %v1109, %v1501
    %v1698 = vxor.u32 %v1110, %v1502
    %v1699 = vxor.u32 %v1111, %v1503
    %v1700 = vxor.u32 %v1112, %v1504
    %v1701 = vxor.u32 %v1113, %v1505
    %v1702 = vxor.u32 %v1114, %v1506
    %v1703 = vxor.u32 %v1115, %v1507
    %v1704 = vxor.u32 %v1116, %v1508
    %v1705 = vxor.u32 %v1117, %v1509
    %v1706 = vxor.u32 %v1118, %v1510
    %v1707 = vxor.u32 %v1119, %v1511
    %v1708 = vxor.u32 %v1120, %v1512
    %v1709 = vxor.u32 %v1121, %v1513
    %v1710 = vxor.u32 %v1122, %v1514
    %v1711 = vxor.u32 %v1123, %v1515
    %v1712 = vxor.u32 %v1124, %v1516
    %v1713 = vxor.u32 %v1125, %v1517
    %v1714 = vxor.u32 %v1126, %v1518
    %v1715 = vxor.u32 %v1127, %v1519
    %v1716 = vxor.u32 %v1128, %v1520
    %v1717 = vxor.u32 %v1129, %v1521
    %v1718 = vxor.u32 %v1130, %v1522
    %v1719 = vxor.u32 %v1131, %v1523
    %v1720 = vxor.u32 %v1132, %v1524
    %v1721 = vxor.u32 %v1133, %v1525
    %v1722 = vxor.u32 %v1134, %v1526
    %v1723 = vxor.u32 %v1135, %v1527
    %v1724 = vxor.u32 %v1136, %v1528
    %v1725 = vxor.u32 %v1137, %v1529
    %v1726 = vxor.u32 %v1138, %v1530
    %v1727 = vxor.u32 %v1139, %v1531
    %v1728 = vxor.u32 %v1140, %v1532
    %v1729 = vxor.u32 %v1141, %v1533
    %v1730 = vxor.u32 %v1142, %v1534
    %v1731 = vxor.u32 %v1143, %v1535
    %v1732 = vxor.u32 %v1144, %v1536
    %v1733 = vxor.u32 %v1145, %v1537
    %v1734 = vxor.u32 %v1146, %v1538
    %v1735 = vxor.u32 %v1147, %v1539
    %v1736 = vxor.u32 %v1148, %v1540
    %v1737 = vxor.u32 %v1149, %v1541
    %v1738 = vxor.u32 %v1150, %v1542
    %v1739 = vxor.u32 %v1151, %v1543
    %v1740 = vxor.u32 %v1152, %v1544
    %v1741 = vxor.u32 %v1153, %v1545
    %v1742 = vxor.u32 %v1154, %v1546
    %v1743 = vxor.u32 %v1155, %v1547
    %v1744 = vxor.u32 %v1156, %v1548
    %v1745 = vxor.u32 %v1157, %v1549
    %v1746 = vxor.u32 %v1158, %v1550
    %v1747 = vxor.u32 %v1159, %v1551
    %v1748 = vxor.u32 %v1160, %v1552
    %v1749 = vxor.u32 %v1161, %v1553
    %v1750 = vxor.u32 %v1162, %v1554
    %v1751 = vxor.u32 %v1163, %v1555
    %v1752 = vxor.u32 %v1164, %v1556
    %v1753 = vxor.u32 %v1165, %v1557
    %v1754 = vxor.u32 %v1166, %v1558
    %v1755 = vxor.u32 %v1167, %v1559
    %v1756 = vxor.u32 %v1168, %v1560
    %v1757 = vxor.u32 %v1169, %v1561
    %v1758 = vxor.u32 %v1170, %v1562
    %v1759 = vxor.u32 %v1171, %v1563
    %v1760 = vxor.u32 %v1172, %v1564
    %v1761 = vxor.u32 %v1173, %v1565
    %v1762 = vxor.u32 %v1174, %v1566
    %v1763 = vxor.u32 %v1175, %v1567
    %v1764 = vxor.u32 %v1176, %v1568
    %v1765 = vxor.u32 %v1177, %v1569
    %v1766 = vxor.u32 %v1178, %v1570
    %v1767 = vxor.u32 %v1179, %v1571
    %v1768 = vxor.u32 %v1180, %v1572
    %v1769 = vxor.u32 %v1181, %v1573
    %v1770 = vxor.u32 %v1182, %v1574
    %v1771 = vxor.u32 %v1183, %v1575
    %v1772 = vxor.u32 %v1184, %v1576
    %v1773 = vxor.u32 %v1185, %v1577
    %v1774 = vxor.u32 %v1186, %v1578
    %v1775 = vxor.u32 %v1187, %v1579
    %v1776 = vxor.u32 %v1188, %v1580
    %v1777 = vxor.u32 %v1189, %v1581
    %v1778 = vxor.u32 %v1190, %v1582
    %v1779 = vxor.u32 %v1191, %v1583
    %v1780 = vxor.u32 %v1192, %v1584
    %v1781 = vxor.u32 %v1193, %v1585
    %v1782 = vxor.u32 %v1194, %v1586
    %v1783 = vxor.u32 %v1195, %v1587
    %v1784 = vxor.u32 %v1196, %v1588
    %v1785 = vxor.u32 %v1197, %v1589
    %v1786 = vxor.u32 %v1198, %v1590
    %v1787 = vxor.u32 %v1199, %v1591
    %v1788 = vxor.u32 %v1200, %v1592
    %v1789 = vxor.u32 %v1201, %v1593
    %v1790 = vxor.u32 %v1202, %v1594
    %v1791 = vxor.u32 %v1203, %v1595
    %v1792 = vxor.u32 %v1204, %v1596
    %v1793 = vxor.u32 %v1205, %v1597
    %v1794 = vxor.u32 %v1206, %v1598
    %v1795 = vxor.u32 %v1207, %v1599
    %v1796 = vxor.u32 %v1208, %v1600
    %v1797 = vxor.u32 %v1209, %v1601
    %v1798 = vxor.u32 %v1210, %v1602
    %v1799 = vmul.u32 %v1603, 2246822507
    %v1800 = vmul.u32 %v1604, 2246822507
    %v1801 = vmul.u32 %v1605, 2246822507
    %v1802 = vmul.u32 %v1606, 2246822507
    %v1803 = vmul.u32 %v1607, 2246822507
    %v1804 = vmul.u32 %v1608, 2246822507
    %v1805 = vmul.u32 %v1609, 2246822507
    %v1806 = vmul.u32 %v1610, 2246822507
    %v1807 = vmul.u32 %v1611, 2246822507
    %v1808 = vmul.u32 %v1612, 2246822507
    %v1809 = vmul.u32 %v1613, 2246822507
    %v1810 = vmul.u32 %v1614, 2246822507
    %v1811 = vmul.u32 %v1615, 2246822507
    %v1812 = vmul.u32 %v1616, 2246822507
    %v1813 = vmul.u32 %v1617, 2246822507
    %v1814 = vmul.u32 %v1618, 2246822507
    %v1815 = vmul.u32 %v1619, 2246822507
    %v1816 = vmul.u32 %v1620, 2246822507
    %v1817 = vmul.u32 %v1621, 2246822507
    %v1818 = vmul.u32 %v1622, 2246822507
    %v1819 = vmul.u32 %v1623, 2246822507
    %v1820 = vmul.u32 %v1624, 2246822507
    %v1821 = vmul.u32 %v1625, 2246822507
    %v1822 = vmul.u32 %v1626, 2246822507
    %v1823 = vmul.u32 %v1627, 2246822507
    %v1824 = vmul.u32 %v1628, 2246822507
    %v1825 = vmul.u32 %v1629, 2246822507
    %v1826 = vmul.u32 %v1630, 2246822507
    %v1827 = vmul.u32 %v1631, 2246822507
    %v1828 = vmul.u32 %v1632, 2246822507
    %v1829 = vmul.u32 %v1633, 2246822507
    %v1830 = vmul.u32 %v1634, 2246822507
    %v1831 = vmul.u32 %v1635, 2246822507
    %v1832 = vmul.u32 %v1636, 2246822507
    %v1833 = vmul.u32 %v1637, 2246822507
    %v1834 = vmul.u32 %v1638, 2246822507
    %v1835 = vmul.u32 %v1639, 2246822507
    %v1836 = vmul.u32 %v1640, 2246822507
    %v1837 = vmul.u32 %v1641, 2246822507
    %v1838 = vmul.u32 %v1642, 2246822507
    %v1839 = vmul.u32 %v1643, 2246822507
    %v1840 = vmul.u32 %v1644, 2246822507
    %v1841 = vmul.u32 %v1645, 2246822507
    %v1842 = vmul.u32 %v1646, 2246822507
    %v1843 = vmul.u32 %v1647, 2246822507
    %v1844 = vmul.u32 %v1648, 2246822507
    %v1845 = vmul.u32 %v1649, 2246822507
    %v1846 = vmul.u32 %v1650, 2246822507
    %v1847 = vmul.u32 %v1651, 2246822507
    %v1848 = vmul.u32 %v1652, 2246822507
    %v1849 = vmul.u32 %v1653, 2246822507
    %v1850 = vmul.u32 %v1654, 2246822507
    %v1851 = vmul.u32 %v1655, 2246822507
    %v1852 = vmul.u32 %v1656, 2246822507
    %v1853 = vmul.u32 %v1657, 2246822507
    %v1854 = vmul.u32 %v1658, 2246822507
    %v1855 = vmul.u32 %v1659, 2246822507
    %v1856 = vmul.u32 %v1660, 2246822507
    %v1857 = vmul.u32 %v1661, 2246822507
    %v1858 = vmul.u32 %v1662, 2246822507
    %v1859 = vmul.u32 %v1663, 2246822507
    %v1860 = vmul.u32 %v1664, 2246822507
    %v1861 = vmul.u32 %v1665, 2246822507
    %v1862 = vmul.u32 %v1666, 2246822507
    %v1863 = vmul.u32 %v1667, 2246822507
    %v1864 = vmul.u32 %v1668, 2246822507
    %v1865 = vmul.u32 %v1669, 2246822507
    %v1866 = vmul.u32 %v1670, 2246822507
    %v1867 = vmul.u32 %v1671, 2246822507
    %v1868 = vmul.u32 %v1672, 2246822507
    %v1869 = vmul.u32 %v1673, 2246822507
    %v1870 = vmul.u32 %v1674, 2246822507
    %v1871 = vmul.u32 %v1675, 2246822507
    %v1872 = vmul.u32 %v1676, 2246822507
    %v1873 = vmul.u32 %v1677, 2246822507
    %v1874 = vmul.u32 %v1678, 2246822507
    %v1875 = vmul.u32 %v1679, 2246822507
    %v1876 = vmul.u32 %v1680, 2246822507
    %v1877 = vmul.u32 %v1681, 2246822507
    %v1878 = vmul.u32 %v1682, 2246822507
    %v1879 = vmul.u32 %v1683, 2246822507
    %v1880 = vmul.u32 %v1684, 2246822507
    %v1881 = vmul.u32 %v1685, 2246822507
    %v1882 = vmul.u32 %v1686, 2246822507
    %v1883 = vmul.u32 %v1687, 2246822507
    %v1884 = vmul.u32 %v1688, 2246822507
    %v1885 = vmul.u32 %v1689, 2246822507
    %v1886 = vmul.u32 %v1690, 2246822507
    %v1887 = vmul.u32 %v1691, 2246822507
    %v1888 = vmul.u32 %v1692, 2246822507
    %v1889 = vmul.u32 %v1693, 2246822507
    %v1890 = vmul.u32 %v1694, 2246822507
    %v1891 = vmul.u32 %v1695, 2246822507
    %v1892 = vmul.u32 %v1696, 2246822507
    %v1893 = vmul.u32 %v1697, 2246822507
    %v1894 = vmul.u32 %v1698, 2246822507
    %v1895 = vmul.u32 %v1699, 2246822507
    %v1896 = vmul.u32 %v1700, 2246822507
    %v1897 = vmul.u32 %v1701, 2246822507
    %v1898 = vmul.u32 %v1702, 2246822507
    %v1899 = vmul.u32 %v1703, 2246822507
    %v1900 = vmul.u32 %v1704, 2246822507
    %v1901 = vmul.u32 %v1705, 2246822507
    %v1902 = vmul.u32 %v1706, 2246822507
    %v1903 = vmul.u32 %v1707, 2246822507
    %v1904 = vmul.u32 %v1708, 2246822507
    %v1905 = vmul.u32 %v1709, 2246822507
    %v1906 = vmul.u32 %v1710, 2246822507
    %v1907 = vmul.u32 %v1711, 2246822507
    %v1908 = vmul.u32 %v1712, 2246822507
    %v1909 = vmul.u32 %v1713, 2246822507
    %v1910 = vmul.u32 %v1714, 2246822507
    %v1911 = vmul.u32 %v1715, 2246822507
    %v1912 = vmul.u32 %v1716, 2246822507
    %v1913 = vmul.u32 %v1717, 2246822507
    %v1914 = vmul.u32 %v1718, 2246822507
    %v1915 = vmul.u32 %v1719, 2246822507
    %v1916 = vmul.u32 %v1720, 2246822507
    %v1917 = vmul.u32 %v1721, 2246822507
    %v1918 = vmul.u32 %v1722, 2246822507
    %v1919 = vmul.u32 %v1723, 2246822507
    %v1920 = vmul.u32 %v1724, 2246822507
    %v1921 = vmul.u32 %v1725, 2246822507
    %v1922 = vmul.u32 %v1726, 2246822507
    %v1923 = vmul.u32 %v1727, 2246822507
    %v1924 = vmul.u32 %v1728, 2246822507
    %v1925 = vmul.u32 %v1729, 2246822507
    %v1926 = vmul.u32 %v1730, 2246822507
    %v1927 = vmul.u32 %v1731, 2246822507
    %v1928 = vmul.u32 %v1732, 2246822507
    %v1929 = vmul.u32 %v1733, 2246822507
    %v1930 = vmul.u32 %v1734, 2246822507
    %v1931 = vmul.u32 %v1735, 2246822507
    %v1932 = vmul.u32 %v1736, 2246822507
    %v1933 = vmul.u32 %v1737, 2246822507
    %v1934 = vmul.u32 %v1738, 2246822507
    %v1935 = vmul.u32 %v1739, 2246822507
    %v1936 = vmul.u32 %v1740, 2246822507
    %v1937 = vmul.u32 %v1741, 2246822507
    %v1938 = vmul.u32 %v1742, 2246822507
    %v1939 = vmul.u32 %v1743, 2246822507
    %v1940 = vmul.u32 %v1744, 2246822507
    %v1941 = vmul.u32 %v1745, 2246822507
    %v1942 = vmul.u32 %v1746, 2246822507
    %v1943 = vmul.u32 %v1747, 2246822507
    %v1944 = vmul.u32 %v1748, 2246822507
    %v1945 = vmul.u32 %v1749, 2246822507
    %v1946 = vmul.u32 %v1750, 2246822507
    %v1947 = vmul.u32 %v1751, 2246822507
    %v1948 = vmul.u32 %v1752, 2246822507
    %v1949 = vmul.u32 %v1753, 2246822507
    %v1950 = vmul.u32 %v1754, 2246822507
    %v1951 = vmul.u32 %v1755, 2246822507
    %v1952 = vmul.u32 %v1756, 2246822507
    %v1953 = vmul.u32 %v1757, 2246822507
    %v1954 = vmul.u32 %v1758, 2246822507
    %v1955 = vmul.u32 %v1759, 2246822507
    %v1956 = vmul.u32 %v1760, 2246822507
    %v1957 = vmul.u32 %v1761, 2246822507
    %v1958 = vmul.u32 %v1762, 2246822507
    %v1959 = vmul.u32 %v1763, 2246822507
    %v1960 = vmul.u32 %v1764, 2246822507
    %v1961 = vmul.u32 %v1765, 2246822507
    %v1962 = vmul.u32 %v1766, 2246822507
    %v1963 = vmul.u32 %v1767, 2246822507
    %v1964 = vmul.u32 %v1768, 2246822507
    %v1965 = vmul.u32 %v1769, 2246822507
    %v1966 = vmul.u32 %v1770, 2246822507
    %v1967 = vmul.u32 %v1771, 2246822507
    %v1968 = vmul.u32 %v1772, 2246822507
    %v1969 = vmul.u32 %v1773, 2246822507
    %v1970 = vmul.u32 %v1774, 2246822507
    %v1971 = vmul.u32 %v1775, 2246822507
    %v1972 = vmul.u32 %v1776, 2246822507
    %v1973 = vmul.u32 %v1777, 2246822507
    %v1974 = vmul.u32 %v1778, 2246822507
    %v1975 = vmul.u32 %v1779, 2246822507
    %v1976 = vmul.u32 %v1780, 2246822507
    %v1977 = vmul.u32 %v1781, 2246822507
    %v1978 = vmul.u32 %v1782, 2246822507
    %v1979 = vmul.u32 %v1783, 2246822507
    %v1980 = vmul.u32 %v1784, 2246822507
    %v1981 = vmul.u32 %v1785, 2246822507
    %v1982 = vmul.u32 %v1786, 2246822507
    %v1983 = vmul.u32 %v1787, 2246822507
    %v1984 = vmul.u32 %v1788, 2246822507
    %v1985 = vmul.u32 %v1789, 2246822507
    %v1986 = vmul.u32 %v1790, 2246822507
    %v1987 = vmul.u32 %v1791, 2246822507
    %v1988 = vmul.u32 %v1792, 2246822507
    %v1989 = vmul.u32 %v1793, 2246822507
    %v1990 = vmul.u32 %v1794, 2246822507
    %v1991 = vmul.u32 %v1795, 2246822507
    %v1992 = vmul.u32 %v1796, 2246822507
    %v1993 = vmul.u32 %v1797, 2246822507
    %v1994 = vmul.u32 %v1798, 2246822507
    %v1995 = vshra.s32 %v1799, 13
    %v1996 = vshra.s32 %v1800, 13
    %v1997 = vshra.s32 %v1801, 13
    %v1998 = vshra.s32 %v1802, 13
    %v1999 = vshra.s32 %v1803, 13
    %v2000 = vshra.s32 %v1804, 13
    %v2001 = vshra.s32 %v1805, 13
    %v2002 = vshra.s32 %v1806, 13
    %v2003 = vshra.s32 %v1807, 13
    %v2004 = vshra.s32 %v1808, 13
    %v2005 = vshra.s32 %v1809, 13
    %v2006 = vshra.s32 %v1810, 13
    %v2007 = vshra.s32 %v1811, 13
    %v2008 = vshra.s32 %v1812, 13
    %v2009 = vshra.s32 %v1813, 13
    %v2010 = vshra.s32 %v1814, 13
    %v2011 = vshra.s32 %v1815, 13
    %v2012 = vshra.s32 %v1816, 13
    %v2013 = vshra.s32 %v1817, 13
    %v2014 = vshra.s32 %v1818, 13
    %v2015 = vshra.s32 %v1819, 13
    %v2016 = vshra.s32 %v1820, 13
    %v2017 = vshra.s32 %v1821, 13
    %v2018 = vshra.s32 %v1822, 13
    %v2019 = vshra.s32 %v1823, 13
    %v2020 = vshra.s32 %v1824, 13
    %v2021 = vshra.s32 %v1825, 13
    %v2022 = vshra.s32 %v1826, 13
    %v2023 = vshra.s32 %v1827, 13
    %v2024 = vshra.s32 %v1828, 13
    %v2025 = vshra.s32 %v1829, 13
    %v2026 = vshra.s32 %v1830, 13
    %v2027 = vshra.s32 %v1831, 13
    %v2028 = vshra.s32 %v1832, 13
    %v2029 = vshra.s32 %v1833, 13
    %v2030 = vshra.s32 %v1834, 13
    %v2031 = vshra.s32 %v1835, 13
    %v2032 = vshra.s32 %v1836, 13
    %v2033 = vshra.s32 %v1837, 13
    %v2034 = vshra.s32 %v1838, 13
    %v2035 = vshra.s32 %v1839, 13
    %v2036 = vshra.s32 %v1840, 13
    %v2037 = vshra.s32 %v1841, 13
    %v2038 = vshra.s32 %v1842, 13
    %v2039 = vshra.s32 %v1843, 13
    %v2040 = vshra.s32 %v1844, 13
    %v2041 = vshra.s32 %v1845, 13
    %v2042 = vshra.s32 %v1846, 13
    %v2043 = vshra.s32 %v1847, 13
    %v2044 = vshra.s32 %v1848, 13
    %v2045 = vshra.s32 %v1849, 13
    %v2046 = vshra.s32 %v1850, 13
    %v2047 = vshra.s32 %v1851, 13
    %v2048 = vshra.s32 %v1852, 13
    %v2049 = vshra.s32 %v1853, 13
    %v2050 = vshra.s32 %v1854, 13
    %v2051 = vshra.s32 %v1855, 13
    %v2052 = vshra.s32 %v1856, 13
    %v2053 = vshra.s32 %v1857, 13
    %v2054 = vshra.s32 %v1858, 13
    %v2055 = vshra.s32 %v1859, 13
    %v2056 = vshra.s32 %v1860, 13
    %v2057 = vshra.s32 %v1861, 13
    %v2058 = vshra.s32 %v1862, 13
    %v2059 = vshra.s32 %v1863, 13
    %v2060 = vshra.s32 %v1864, 13
    %v2061 = vshra.s32 %v1865, 13
    %v2062 = vshra.s32 %v1866, 13
    %v2063 = vshra.s32 %v1867, 13
    %v2064 = vshra.s32 %v1868, 13
    %v2065 = vshra.s32 %v1869, 13
    %v2066 = vshra.s32 %v1870, 13
    %v2067 = vshra.s32 %v1871, 13
    %v2068 = vshra.s32 %v1872, 13
    %v2069 = vshra.s32 %v1873, 13
    %v2070 = vshra.s32 %v1874, 13
    %v2071 = vshra.s32 %v1875, 13
    %v2072 = vshra.s32 %v1876, 13
    %v2073 = vshra.s32 %v1877, 13
    %v2074 = vshra.s32 %v1878, 13
    %v2075 = vshra.s32 %v1879, 13
    %v2076 = vshra.s32 %v1880, 13
    %v2077 = vshra.s32 %v1881, 13
    %v2078 = vshra.s32 %v1882, 13
    %v2079 = vshra.s32 %v1883, 13
    %v2080 = vshra.s32 %v1884, 13
    %v2081 = vshra.s32 %v1885, 13
    %v2082 = vshra.s32 %v1886, 13
    %v2083 = vshra.s32 %v1887, 13
    %v2084 = vshra.s32 %v1888, 13
    %v2085 = vshra.s32 %v1889, 13
    %v2086 = vshra.s32 %v1890, 13
    %v2087 = vshra.s32 %v1891, 13
    %v2088 = vshra.s32 %v1892, 13
    %v2089 = vshra.s32 %v1893, 13
    %v2090 = vshra.s32 %v1894, 13
    %v2091 = vshra.s32 %v1895, 13
    %v2092 = vshra.s32 %v1896, 13
    %v2093 = vshra.s32 %v1897, 13
    %v2094 = vshra.s32 %v1898, 13
    %v2095 = vshra.s32 %v1899, 13
    %v2096 = vshra.s32 %v1900, 13
    %v2097 = vshra.s32 %v1901, 13
    %v2098 = vshra.s32 %v1902, 13
    %v2099 = vshra.s32 %v1903, 13
    %v2100 = vshra.s32 %v1904, 13
    %v2101 = vshra.s32 %v1905, 13
    %v2102 = vshra.s32 %v1906, 13
    %v2103 = vshra.s32 %v1907, 13
    %v2104 = vshra.s32 %v1908, 13
    %v2105 = vshra.s32 %v1909, 13
    %v2106 = vshra.s32 %v1910, 13
    %v2107 = vshra.s32 %v1911, 13
    %v2108 = vshra.s32 %v1912, 13
    %v2109 = vshra.s32 %v1913, 13
    %v2110 = vshra.s32 %v1914, 13
    %v2111 = vshra.s32 %v1915, 13
    %v2112 = vshra.s32 %v1916, 13
    %v2113 = vshra.s32 %v1917, 13
    %v2114 = vshra.s32 %v1918, 13
    %v2115 = vshra.s32 %v1919, 13
    %v2116 = vshra.s32 %v1920, 13
    %v2117 = vshra.s32 %v1921, 13
    %v2118 = vshra.s32 %v1922, 13
    %v2119 = vshra.s32 %v1923, 13
    %v2120 = vshra.s32 %v1924, 13
    %v2121 = vshra.s32 %v1925, 13
    %v2122 = vshra.s32 %v1926, 13
    %v2123 = vshra.s32 %v1927, 13
    %v2124 = vshra.s32 %v1928, 13
    %v2125 = vshra.s32 %v1929, 13
    %v2126 = vshra.s32 %v1930, 13
    %v2127 = vshra.s32 %v1931, 13
    %v2128 = vshra.s32 %v1932, 13
    %v2129 = vshra.s32 %v1933, 13
    %v2130 = vshra.s32 %v1934, 13
    %v2131 = vshra.s32 %v1935, 13
    %v2132 = vshra.s32 %v1936, 13
    %v2133 = vshra.s32 %v1937, 13
    %v2134 = vshra.s32 %v1938, 13
    %v2135 = vshra.s32 %v1939, 13
    %v2136 = vshra.s32 %v1940, 13
    %v2137 = vshra.s32 %v1941, 13
    %v2138 = vshra.s32 %v1942, 13
    %v2139 = vshra.s32 %v1943, 13
    %v2140 = vshra.s32 %v1944, 13
    %v2141 = vshra.s32 %v1945, 13
    %v2142 = vshra.s32 %v1946, 13
    %v2143 = vshra.s32 %v1947, 13
    %v2144 = vshra.s32 %v1948, 13
    %v2145 = vshra.s32 %v1949, 13
    %v2146 = vshra.s32 %v1950, 13
    %v2147 = vshra.s32 %v1951, 13
    %v2148 = vshra.s32 %v1952, 13
    %v2149 = vshra.s32 %v1953, 13
    %v2150 = vshra.s32 %v1954, 13
    %v2151 = vshra.s32 %v1955, 13
    %v2152 = vshra.s32 %v1956, 13
    %v2153 = vshra.s32 %v1957, 13
    %v2154 = vshra.s32 %v1958, 13
    %v2155 = vshra.s32 %v1959, 13
    %v2156 = vshra.s32 %v1960, 13
    %v2157 = vshra.s32 %v1961, 13
    %v2158 = vshra.s32 %v1962, 13
    %v2159 = vshra.s32 %v1963, 13
    %v2160 = vshra.s32 %v1964, 13
    %v2161 = vshra.s32 %v1965, 13
    %v2162 = vshra.s32 %v1966, 13
    %v2163 = vshra.s32 %v1967, 13
    %v2164 = vshra.s32 %v1968, 13
    %v2165 = vshra.s32 %v1969, 13
    %v2166 = vshra.s32 %v1970, 13
    %v2167 = vshra.s32 %v1971, 13
    %v2168 = vshra.s32 %v1972, 13
    %v2169 = vshra.s32 %v1973, 13
    %v2170 = vshra.s32 %v1974, 13
    %v2171 = vshra.s32 %v1975, 13
    %v2172 = vshra.s32 %v1976, 13
    %v2173 = vshra.s32 %v1977, 13
    %v2174 = vshra.s32 %v1978, 13
    %v2175 = vshra.s32 %v1979, 13
    %v2176 = vshra.s32 %v1980, 13
    %v2177 = vshra.s32 %v1981, 13
    %v2178 = vshra.s32 %v1982, 13
    %v2179 = vshra.s32 %v1983, 13
    %v2180 = vshra.s32 %v1984, 13
    %v2181 = vshra.s32 %v1985, 13
    %v2182 = vshra.s32 %v1986, 13
    %v2183 = vshra.s32 %v1987, 13
    %v2184 = vshra.s32 %v1988, 13
    %v2185 = vshra.s32 %v1989, 13
    %v2186 = vshra.s32 %v1990, 13
    %v2187 = vshra.s32 %v1991, 13
    %v2188 = vshra.s32 %v1992, 13
    %v2189 = vshra.s32 %v1993, 13
    %v2190 = vshra.s32 %v1994, 13
    %v2191 = vand.u32 %v1995, 524287
    %v2192 = vand.u32 %v1996, 524287
    %v2193 = vand.u32 %v1997, 524287
    %v2194 = vand.u32 %v1998, 524287
    %v2195 = vand.u32 %v1999, 524287
    %v2196 = vand.u32 %v2000, 524287
    %v2197 = vand.u32 %v2001, 524287
    %v2198 = vand.u32 %v2002, 524287
    %v2199 = vand.u32 %v2003, 524287
    %v2200 = vand.u32 %v2004, 524287
    %v2201 = vand.u32 %v2005, 524287
    %v2202 = vand.u32 %v2006, 524287
    %v2203 = vand.u32 %v2007, 524287
    %v2204 = vand.u32 %v2008, 524287
    %v2205 = vand.u32 %v2009, 524287
    %v2206 = vand.u32 %v2010, 524287
    %v2207 = vand.u32 %v2011, 524287
    %v2208 = vand.u32 %v2012, 524287
    %v2209 = vand.u32 %v2013, 524287
    %v2210 = vand.u32 %v2014, 524287
    %v2211 = vand.u32 %v2015, 524287
    %v2212 = vand.u32 %v2016, 524287
    %v2213 = vand.u32 %v2017, 524287
    %v2214 = vand.u32 %v2018, 524287
    %v2215 = vand.u32 %v2019, 524287
    %v2216 = vand.u32 %v2020, 524287
    %v2217 = vand.u32 %v2021, 524287
    %v2218 = vand.u32 %v2022, 524287
    %v2219 = vand.u32 %v2023, 524287
    %v2220 = vand.u32 %v2024, 524287
    %v2221 = vand.u32 %v2025, 524287
    %v2222 = vand.u32 %v2026, 524287
    %v2223 = vand.u32 %v2027, 524287
    %v2224 = vand.u32 %v2028, 524287
    %v2225 = vand.u32 %v2029, 524287
    %v2226 = vand.u32 %v2030, 524287
    %v2227 = vand.u32 %v2031, 524287
    %v2228 = vand.u32 %v2032, 524287
    %v2229 = vand.u32 %v2033, 524287
    %v2230 = vand.u32 %v2034, 524287
    %v2231 = vand.u32 %v2035, 524287
    %v2232 = vand.u32 %v2036, 524287
    %v2233 = vand.u32 %v2037, 524287
    %v2234 = vand.u32 %v2038, 524287
    %v2235 = vand.u32 %v2039, 524287
    %v2236 = vand.u32 %v2040, 524287
    %v2237 = vand.u32 %v2041, 524287
    %v2238 = vand.u32 %v2042, 524287
    %v2239 = vand.u32 %v2043, 524287
    %v2240 = vand.u32 %v2044, 524287
    %v2241 = vand.u32 %v2045, 524287
    %v2242 = vand.u32 %v2046, 524287
    %v2243 = vand.u32 %v2047, 524287
    %v2244 = vand.u32 %v2048, 524287
    %v2245 = vand.u32 %v2049, 524287
    %v2246 = vand.u32 %v2050, 524287
    %v2247 = vand.u32 %v2051, 524287
    %v2248 = vand.u32 %v2052, 524287
    %v2249 = vand.u32 %v2053, 524287
    %v2250 = vand.u32 %v2054, 524287
    %v2251 = vand.u32 %v2055, 524287
    %v2252 = vand.u32 %v2056, 524287
    %v2253 = vand.u32 %v2057, 524287
    %v2254 = vand.u32 %v2058, 524287
    %v2255 = vand.u32 %v2059, 524287
    %v2256 = vand.u32 %v2060, 524287
    %v2257 = vand.u32 %v2061, 524287
    %v2258 = vand.u32 %v2062, 524287
    %v2259 = vand.u32 %v2063, 524287
    %v2260 = vand.u32 %v2064, 524287
    %v2261 = vand.u32 %v2065, 524287
    %v2262 = vand.u32 %v2066, 524287
    %v2263 = vand.u32 %v2067, 524287
    %v2264 = vand.u32 %v2068, 524287
    %v2265 = vand.u32 %v2069, 524287
    %v2266 = vand.u32 %v2070, 524287
    %v2267 = vand.u32 %v2071, 524287
    %v2268 = vand.u32 %v2072, 524287
    %v2269 = vand.u32 %v2073, 524287
    %v2270 = vand.u32 %v2074, 524287
    %v2271 = vand.u32 %v2075, 524287
    %v2272 = vand.u32 %v2076, 524287
    %v2273 = vand.u32 %v2077, 524287
    %v2274 = vand.u32 %v2078, 524287
    %v2275 = vand.u32 %v2079, 524287
    %v2276 = vand.u32 %v2080, 524287
    %v2277 = vand.u32 %v2081, 524287
    %v2278 = vand.u32 %v2082, 524287
    %v2279 = vand.u32 %v2083, 524287
    %v2280 = vand.u32 %v2084, 524287
    %v2281 = vand.u32 %v2085, 524287
    %v2282 = vand.u32 %v2086, 524287
    %v2283 = vand.u32 %v2087, 524287
    %v2284 = vand.u32 %v2088, 524287
    %v2285 = vand.u32 %v2089, 524287
    %v2286 = vand.u32 %v2090, 524287
    %v2287 = vand.u32 %v2091, 524287
    %v2288 = vand.u32 %v2092, 524287
    %v2289 = vand.u32 %v2093, 524287
    %v2290 = vand.u32 %v2094, 524287
    %v2291 = vand.u32 %v2095, 524287
    %v2292 = vand.u32 %v2096, 524287
    %v2293 = vand.u32 %v2097, 524287
    %v2294 = vand.u32 %v2098, 524287
    %v2295 = vand.u32 %v2099, 524287
    %v2296 = vand.u32 %v2100, 524287
    %v2297 = vand.u32 %v2101, 524287
    %v2298 = vand.u32 %v2102, 524287
    %v2299 = vand.u32 %v2103, 524287
    %v2300 = vand.u32 %v2104, 524287
    %v2301 = vand.u32 %v2105, 524287
    %v2302 = vand.u32 %v2106, 524287
    %v2303 = vand.u32 %v2107, 524287
    %v2304 = vand.u32 %v2108, 524287
    %v2305 = vand.u32 %v2109, 524287
    %v2306 = vand.u32 %v2110, 524287
    %v2307 = vand.u32 %v2111, 524287
    %v2308 = vand.u32 %v2112, 524287
    %v2309 = vand.u32 %v2113, 524287
    %v2310 = vand.u32 %v2114, 524287
    %v2311 = vand.u32 %v2115, 524287
    %v2312 = vand.u32 %v2116, 524287
    %v2313 = vand.u32 %v2117, 524287
    %v2314 = vand.u32 %v2118, 524287
    %v2315 = vand.u32 %v2119, 524287
    %v2316 = vand.u32 %v2120, 524287
    %v2317 = vand.u32 %v2121, 524287
    %v2318 = vand.u32 %v2122, 524287
    %v2319 = vand.u32 %v2123, 524287
    %v2320 = vand.u32 %v2124, 524287
    %v2321 = vand.u32 %v2125, 524287
    %v2322 = vand.u32 %v2126, 524287
    %v2323 = vand.u32 %v2127, 524287
    %v2324 = vand.u32 %v2128, 524287
    %v2325 = vand.u32 %v2129, 524287
    %v2326 = vand.u32 %v2130, 524287
    %v2327 = vand.u32 %v2131, 524287
    %v2328 = vand.u32 %v2132, 524287
    %v2329 = vand.u32 %v2133, 524287
    %v2330 = vand.u32 %v2134, 524287
    %v2331 = vand.u32 %v2135, 524287
    %v2332 = vand.u32 %v2136, 524287
    %v2333 = vand.u32 %v2137, 524287
    %v2334 = vand.u32 %v2138, 524287
    %v2335 = vand.u32 %v2139, 524287
    %v2336 = vand.u32 %v2140, 524287
    %v2337 = vand.u32 %v2141, 524287
    %v2338 = vand.u32 %v2142, 524287
    %v2339 = vand.u32 %v2143, 524287
    %v2340 = vand.u32 %v2144, 524287
    %v2341 = vand.u32 %v2145, 524287
    %v2342 = vand.u32 %v2146, 524287
    %v2343 = vand.u32 %v2147, 524287
    %v2344 = vand.u32 %v2148, 524287
    %v2345 = vand.u32 %v2149, 524287
    %v2346 = vand.u32 %v2150, 524287
    %v2347 = vand.u32 %v2151, 524287
    %v2348 = vand.u32 %v2152, 524287
    %v2349 = vand.u32 %v2153, 524287
    %v2350 = vand.u32 %v2154, 524287
    %v2351 = vand.u32 %v2155, 524287
    %v2352 = vand.u32 %v2156, 524287
    %v2353 = vand.u32 %v2157, 524287
    %v2354 = vand.u32 %v2158, 524287
    %v2355 = vand.u32 %v2159, 524287
    %v2356 = vand.u32 %v2160, 524287
    %v2357 = vand.u32 %v2161, 524287
    %v2358 = vand.u32 %v2162, 524287
    %v2359 = vand.u32 %v2163, 524287
    %v2360 = vand.u32 %v2164, 524287
    %v2361 = vand.u32 %v2165, 524287
    %v2362 = vand.u32 %v2166, 524287
    %v2363 = vand.u32 %v2167, 524287
    %v2364 = vand.u32 %v2168, 524287
    %v2365 = vand.u32 %v2169, 524287
    %v2366 = vand.u32 %v2170, 524287
    %v2367 = vand.u32 %v2171, 524287
    %v2368 = vand.u32 %v2172, 524287
    %v2369 = vand.u32 %v2173, 524287
    %v2370 = vand.u32 %v2174, 524287
    %v2371 = vand.u32 %v2175, 524287
    %v2372 = vand.u32 %v2176, 524287
    %v2373 = vand.u32 %v2177, 524287
    %v2374 = vand.u32 %v2178, 524287
    %v2375 = vand.u32 %v2179, 524287
    %v2376 = vand.u32 %v2180, 524287
    %v2377 = vand.u32 %v2181, 524287
    %v2378 = vand.u32 %v2182, 524287
    %v2379 = vand.u32 %v2183, 524287
    %v2380 = vand.u32 %v2184, 524287
    %v2381 = vand.u32 %v2185, 524287
    %v2382 = vand.u32 %v2186, 524287
    %v2383 = vand.u32 %v2187, 524287
    %v2384 = vand.u32 %v2188, 524287
    %v2385 = vand.u32 %v2189, 524287
    %v2386 = vand.u32 %v2190, 524287
    %v2387 = vxor.u32 %v1799, %v2191
    %v2388 = vxor.u32 %v1800, %v2192
    %v2389 = vxor.u32 %v1801, %v2193
    %v2390 = vxor.u32 %v1802, %v2194
    %v2391 = vxor.u32 %v1803, %v2195
    %v2392 = vxor.u32 %v1804, %v2196
    %v2393 = vxor.u32 %v1805, %v2197
    %v2394 = vxor.u32 %v1806, %v2198
    %v2395 = vxor.u32 %v1807, %v2199
    %v2396 = vxor.u32 %v1808, %v2200
    %v2397 = vxor.u32 %v1809, %v2201
    %v2398 = vxor.u32 %v1810, %v2202
    %v2399 = vxor.u32 %v1811, %v2203
    %v2400 = vxor.u32 %v1812, %v2204
    %v2401 = vxor.u32 %v1813, %v2205
    %v2402 = vxor.u32 %v1814, %v2206
    %v2403 = vxor.u32 %v1815, %v2207
    %v2404 = vxor.u32 %v1816, %v2208
    %v2405 = vxor.u32 %v1817, %v2209
    %v2406 = vxor.u32 %v1818, %v2210
    %v2407 = vxor.u32 %v1819, %v2211
    %v2408 = vxor.u32 %v1820, %v2212
    %v2409 = vxor.u32 %v1821, %v2213
    %v2410 = vxor.u32 %v1822, %v2214
    %v2411 = vxor.u32 %v1823, %v2215
    %v2412 = vxor.u32 %v1824, %v2216
    %v2413 = vxor.u32 %v1825, %v2217
    %v2414 = vxor.u32 %v1826, %v2218
    %v2415 = vxor.u32 %v1827, %v2219
    %v2416 = vxor.u32 %v1828, %v2220
    %v2417 = vxor.u32 %v1829, %v2221
    %v2418 = vxor.u32 %v1830, %v2222
    %v2419 = vxor.u32 %v1831, %v2223
    %v2420 = vxor.u32 %v1832, %v2224
    %v2421 = vxor.u32 %v1833, %v2225
    %v2422 = vxor.u32 %v1834, %v2226
    %v2423 = vxor.u32 %v1835, %v2227
    %v2424 = vxor.u32 %v1836, %v2228
    %v2425 = vxor.u32 %v1837, %v2229
    %v2426 = vxor.u32 %v1838, %v2230
    %v2427 = vxor.u32 %v1839, %v2231
    %v2428 = vxor.u32 %v1840, %v2232
    %v2429 = vxor.u32 %v1841, %v2233
    %v2430 = vxor.u32 %v1842, %v2234
    %v2431 = vxor.u32 %v1843, %v2235
    %v2432 = vxor.u32 %v1844, %v2236
    %v2433 = vxor.u32 %v1845, %v2237
    %v2434 = vxor.u32 %v1846, %v2238
    %v2435 = vxor.u32 %v1847, %v2239
    %v2436 = vxor.u32 %v1848, %v2240
    %v2437 = vxor.u32 %v1849, %v2241
    %v2438 = vxor.u32 %v1850, %v2242
    %v2439 = vxor.u32 %v1851, %v2243
    %v2440 = vxor.u32 %v1852, %v2244
    %v2441 = vxor.u32 %v1853, %v2245
    %v2442 = vxor.u32 %v1854, %v2246
    %v2443 = vxor.u32 %v1855, %v2247
    %v2444 = vxor.u32 %v1856, %v2248
    %v2445 = vxor.u32 %v1857, %v2249
    %v2446 = vxor.u32 %v1858, %v2250
    %v2447 = vxor.u32 %v1859, %v2251
    %v2448 = vxor.u32 %v1860, %v2252
    %v2449 = vxor.u32 %v1861, %v2253
    %v2450 = vxor.u32 %v1862, %v2254
    %v2451 = vxor.u32 %v1863, %v2255
    %v2452 = vxor.u32 %v1864, %v2256
    %v2453 = vxor.u32 %v1865, %v2257
    %v2454 = vxor.u32 %v1866, %v2258
    %v2455 = vxor.u32 %v1867, %v2259
    %v2456 = vxor.u32 %v1868, %v2260
    %v2457 = vxor.u32 %v1869, %v2261
    %v2458 = vxor.u32 %v1870, %v2262
    %v2459 = vxor.u32 %v1871, %v2263
    %v2460 = vxor.u32 %v1872, %v2264
    %v2461 = vxor.u32 %v1873, %v2265
    %v2462 = vxor.u32 %v1874, %v2266
    %v2463 = vxor.u32 %v1875, %v2267
    %v2464 = vxor.u32 %v1876, %v2268
    %v2465 = vxor.u32 %v1877, %v2269
    %v2466 = vxor.u32 %v1878, %v2270
    %v2467 = vxor.u32 %v1879, %v2271
    %v2468 = vxor.u32 %v1880, %v2272
    %v2469 = vxor.u32 %v1881, %v2273
    %v2470 = vxor.u32 %v1882, %v2274
    %v2471 = vxor.u32 %v1883, %v2275
    %v2472 = vxor.u32 %v1884, %v2276
    %v2473 = vxor.u32 %v1885, %v2277
    %v2474 = vxor.u32 %v1886, %v2278
    %v2475 = vxor.u32 %v1887, %v2279
    %v2476 = vxor.u32 %v1888, %v2280
    %v2477 = vxor.u32 %v1889, %v2281
    %v2478 = vxor.u32 %v1890, %v2282
    %v2479 = vxor.u32 %v1891, %v2283
    %v2480 = vxor.u32 %v1892, %v2284
    %v2481 = vxor.u32 %v1893, %v2285
    %v2482 = vxor.u32 %v1894, %v2286
    %v2483 = vxor.u32 %v1895, %v2287
    %v2484 = vxor.u32 %v1896, %v2288
    %v2485 = vxor.u32 %v1897, %v2289
    %v2486 = vxor.u32 %v1898, %v2290
    %v2487 = vxor.u32 %v1899, %v2291
    %v2488 = vxor.u32 %v1900, %v2292
    %v2489 = vxor.u32 %v1901, %v2293
    %v2490 = vxor.u32 %v1902, %v2294
    %v2491 = vxor.u32 %v1903, %v2295
    %v2492 = vxor.u32 %v1904, %v2296
    %v2493 = vxor.u32 %v1905, %v2297
    %v2494 = vxor.u32 %v1906, %v2298
    %v2495 = vxor.u32 %v1907, %v2299
    %v2496 = vxor.u32 %v1908, %v2300
    %v2497 = vxor.u32 %v1909, %v2301
    %v2498 = vxor.u32 %v1910, %v2302
    %v2499 = vxor.u32 %v1911, %v2303
    %v2500 = vxor.u32 %v1912, %v2304
    %v2501 = vxor.u32 %v1913, %v2305
    %v2502 = vxor.u32 %v1914, %v2306
    %v2503 = vxor.u32 %v1915, %v2307
    %v2504 = vxor.u32 %v1916, %v2308
    %v2505 = vxor.u32 %v1917, %v2309
    %v2506 = vxor.u32 %v1918, %v2310
    %v2507 = vxor.u32 %v1919, %v2311
    %v2508 = vxor.u32 %v1920, %v2312
    %v2509 = vxor.u32 %v1921, %v2313
    %v2510 = vxor.u32 %v1922, %v2314
    %v2511 = vxor.u32 %v1923, %v2315
    %v2512 = vxor.u32 %v1924, %v2316
    %v2513 = vxor.u32 %v1925, %v2317
    %v2514 = vxor.u32 %v1926, %v2318
    %v2515 = vxor.u32 %v1927, %v2319
    %v2516 = vxor.u32 %v1928, %v2320
    %v2517 = vxor.u32 %v1929, %v2321
    %v2518 = vxor.u32 %v1930, %v2322
    %v2519 = vxor.u32 %v1931, %v2323
    %v2520 = vxor.u32 %v1932, %v2324
    %v2521 = vxor.u32 %v1933, %v2325
    %v2522 = vxor.u32 %v1934, %v2326
    %v2523 = vxor.u32 %v1935, %v2327
    %v2524 = vxor.u32 %v1936, %v2328
    %v2525 = vxor.u32 %v1937, %v2329
    %v2526 = vxor.u32 %v1938, %v2330
    %v2527 = vxor.u32 %v1939, %v2331
    %v2528 = vxor.u32 %v1940, %v2332
    %v2529 = vxor.u32 %v1941, %v2333
    %v2530 = vxor.u32 %v1942, %v2334
    %v2531 = vxor.u32 %v1943, %v2335
    %v2532 = vxor.u32 %v1944, %v2336
    %v2533 = vxor.u32 %v1945, %v2337
    %v2534 = vxor.u32 %v1946, %v2338
    %v2535 = vxor.u32 %v1947, %v2339
    %v2536 = vxor.u32 %v1948, %v2340
    %v2537 = vxor.u32 %v1949, %v2341
    %v2538 = vxor.u32 %v1950, %v2342
    %v2539 = vxor.u32 %v1951, %v2343
    %v2540 = vxor.u32 %v1952, %v2344
    %v2541 = vxor.u32 %v1953, %v2345
    %v2542 = vxor.u32 %v1954, %v2346
    %v2543 = vxor.u32 %v1955, %v2347
    %v2544 = vxor.u32 %v1956, %v2348
    %v2545 = vxor.u32 %v1957, %v2349
    %v2546 = vxor.u32 %v1958, %v2350
    %v2547 = vxor.u32 %v1959, %v2351
    %v2548 = vxor.u32 %v1960, %v2352
    %v2549 = vxor.u32 %v1961, %v2353
    %v2550 = vxor.u32 %v1962, %v2354
    %v2551 = vxor.u32 %v1963, %v2355
    %v2552 = vxor.u32 %v1964, %v2356
    %v2553 = vxor.u32 %v1965, %v2357
    %v2554 = vxor.u32 %v1966, %v2358
    %v2555 = vxor.u32 %v1967, %v2359
    %v2556 = vxor.u32 %v1968, %v2360
    %v2557 = vxor.u32 %v1969, %v2361
    %v2558 = vxor.u32 %v1970, %v2362
    %v2559 = vxor.u32 %v1971, %v2363
    %v2560 = vxor.u32 %v1972, %v2364
    %v2561 = vxor.u32 %v1973, %v2365
    %v2562 = vxor.u32 %v1974, %v2366
    %v2563 = vxor.u32 %v1975, %v2367
    %v2564 = vxor.u32 %v1976, %v2368
    %v2565 = vxor.u32 %v1977, %v2369
    %v2566 = vxor.u32 %v1978, %v2370
    %v2567 = vxor.u32 %v1979, %v2371
    %v2568 = vxor.u32 %v1980, %v2372
    %v2569 = vxor.u32 %v1981, %v2373
    %v2570 = vxor.u32 %v1982, %v2374
    %v2571 = vxor.u32 %v1983, %v2375
    %v2572 = vxor.u32 %v1984, %v2376
    %v2573 = vxor.u32 %v1985, %v2377
    %v2574 = vxor.u32 %v1986, %v2378
    %v2575 = vxor.u32 %v1987, %v2379
    %v2576 = vxor.u32 %v1988, %v2380
    %v2577 = vxor.u32 %v1989, %v2381
    %v2578 = vxor.u32 %v1990, %v2382
    %v2579 = vxor.u32 %v1991, %v2383
    %v2580 = vxor.u32 %v1992, %v2384
    %v2581 = vxor.u32 %v1993, %v2385
    %v2582 = vxor.u32 %v1994, %v2386
    %v2583 = vmul.u32 %v2387, 3266489909
    %v2584 = vmul.u32 %v2388, 3266489909
    %v2585 = vmul.u32 %v2389, 3266489909
    %v2586 = vmul.u32 %v2390, 3266489909
    %v2587 = vmul.u32 %v2391, 3266489909
    %v2588 = vmul.u32 %v2392, 3266489909
    %v2589 = vmul.u32 %v2393, 3266489909
    %v2590 = vmul.u32 %v2394, 3266489909
    %v2591 = vmul.u32 %v2395, 3266489909
    %v2592 = vmul.u32 %v2396, 3266489909
    %v2593 = vmul.u32 %v2397, 3266489909
    %v2594 = vmul.u32 %v2398, 3266489909
    %v2595 = vmul.u32 %v2399, 3266489909
    %v2596 = vmul.u32 %v2400, 3266489909
    %v2597 = vmul.u32 %v2401, 3266489909
    %v2598 = vmul.u32 %v2402, 3266489909
    %v2599 = vmul.u32 %v2403, 3266489909
    %v2600 = vmul.u32 %v2404, 3266489909
    %v2601 = vmul.u32 %v2405, 3266489909
    %v2602 = vmul.u32 %v2406, 3266489909
    %v2603 = vmul.u32 %v2407, 3266489909
    %v2604 = vmul.u32 %v2408, 3266489909
    %v2605 = vmul.u32 %v2409, 3266489909
    %v2606 = vmul.u32 %v2410, 3266489909
    %v2607 = vmul.u32 %v2411, 3266489909
    %v2608 = vmul.u32 %v2412, 3266489909
    %v2609 = vmul.u32 %v2413, 3266489909
    %v2610 = vmul.u32 %v2414, 3266489909
    %v2611 = vmul.u32 %v2415, 3266489909
    %v2612 = vmul.u32 %v2416, 3266489909
    %v2613 = vmul.u32 %v2417, 3266489909
    %v2614 = vmul.u32 %v2418, 3266489909
    %v2615 = vmul.u32 %v2419, 3266489909
    %v2616 = vmul.u32 %v2420, 3266489909
    %v2617 = vmul.u32 %v2421, 3266489909
    %v2618 = vmul.u32 %v2422, 3266489909
    %v2619 = vmul.u32 %v2423, 3266489909
    %v2620 = vmul.u32 %v2424, 3266489909
    %v2621 = vmul.u32 %v2425, 3266489909
    %v2622 = vmul.u32 %v2426, 3266489909
    %v2623 = vmul.u32 %v2427, 3266489909
    %v2624 = vmul.u32 %v2428, 3266489909
    %v2625 = vmul.u32 %v2429, 3266489909
    %v2626 = vmul.u32 %v2430, 3266489909
    %v2627 = vmul.u32 %v2431, 3266489909
    %v2628 = vmul.u32 %v2432, 3266489909
    %v2629 = vmul.u32 %v2433, 3266489909
    %v2630 = vmul.u32 %v2434, 3266489909
    %v2631 = vmul.u32 %v2435, 3266489909
    %v2632 = vmul.u32 %v2436, 3266489909
    %v2633 = vmul.u32 %v2437, 3266489909
    %v2634 = vmul.u32 %v2438, 3266489909
    %v2635 = vmul.u32 %v2439, 3266489909
    %v2636 = vmul.u32 %v2440, 3266489909
    %v2637 = vmul.u32 %v2441, 3266489909
    %v2638 = vmul.u32 %v2442, 3266489909
    %v2639 = vmul.u32 %v2443, 3266489909
    %v2640 = vmul.u32 %v2444, 3266489909
    %v2641 = vmul.u32 %v2445, 3266489909
    %v2642 = vmul.u32 %v2446, 3266489909
    %v2643 = vmul.u32 %v2447, 3266489909
    %v2644 = vmul.u32 %v2448, 3266489909
    %v2645 = vmul.u32 %v2449, 3266489909
    %v2646 = vmul.u32 %v2450, 3266489909
    %v2647 = vmul.u32 %v2451, 3266489909
    %v2648 = vmul.u32 %v2452, 3266489909
    %v2649 = vmul.u32 %v2453, 3266489909
    %v2650 = vmul.u32 %v2454, 3266489909
    %v2651 = vmul.u32 %v2455, 3266489909
    %v2652 = vmul.u32 %v2456, 3266489909
    %v2653 = vmul.u32 %v2457, 3266489909
    %v2654 = vmul.u32 %v2458, 3266489909
    %v2655 = vmul.u32 %v2459, 3266489909
    %v2656 = vmul.u32 %v2460, 3266489909
    %v2657 = vmul.u32 %v2461, 3266489909
    %v2658 = vmul.u32 %v2462, 3266489909
    %v2659 = vmul.u32 %v2463, 3266489909
    %v2660 = vmul.u32 %v2464, 3266489909
    %v2661 = vmul.u32 %v2465, 3266489909
    %v2662 = vmul.u32 %v2466, 3266489909
    %v2663 = vmul.u32 %v2467, 3266489909
    %v2664 = vmul.u32 %v2468, 3266489909
    %v2665 = vmul.u32 %v2469, 3266489909
    %v2666 = vmul.u32 %v2470, 3266489909
    %v2667 = vmul.u32 %v2471, 3266489909
    %v2668 = vmul.u32 %v2472, 3266489909
    %v2669 = vmul.u32 %v2473, 3266489909
    %v2670 = vmul.u32 %v2474, 3266489909
    %v2671 = vmul.u32 %v2475, 3266489909
    %v2672 = vmul.u32 %v2476, 3266489909
    %v2673 = vmul.u32 %v2477, 3266489909
    %v2674 = vmul.u32 %v2478, 3266489909
    %v2675 = vmul.u32 %v2479, 3266489909
    %v2676 = vmul.u32 %v2480, 3266489909
    %v2677 = vmul.u32 %v2481, 3266489909
    %v2678 = vmul.u32 %v2482, 3266489909
    %v2679 = vmul.u32 %v2483, 3266489909
    %v2680 = vmul.u32 %v2484, 3266489909
    %v2681 = vmul.u32 %v2485, 3266489909
    %v2682 = vmul.u32 %v2486, 3266489909
    %v2683 = vmul.u32 %v2487, 3266489909
    %v2684 = vmul.u32 %v2488, 3266489909
    %v2685 = vmul.u32 %v2489, 3266489909
    %v2686 = vmul.u32 %v2490, 3266489909
    %v2687 = vmul.u32 %v2491, 3266489909
    %v2688 = vmul.u32 %v2492, 3266489909
    %v2689 = vmul.u32 %v2493, 3266489909
    %v2690 = vmul.u32 %v2494, 3266489909
    %v2691 = vmul.u32 %v2495, 3266489909
    %v2692 = vmul.u32 %v2496, 3266489909
    %v2693 = vmul.u32 %v2497, 3266489909
    %v2694 = vmul.u32 %v2498, 3266489909
    %v2695 = vmul.u32 %v2499, 3266489909
    %v2696 = vmul.u32 %v2500, 3266489909
    %v2697 = vmul.u32 %v2501, 3266489909
    %v2698 = vmul.u32 %v2502, 3266489909
    %v2699 = vmul.u32 %v2503, 3266489909
    %v2700 = vmul.u32 %v2504, 3266489909
    %v2701 = vmul.u32 %v2505, 3266489909
    %v2702 = vmul.u32 %v2506, 3266489909
    %v2703 = vmul.u32 %v2507, 3266489909
    %v2704 = vmul.u32 %v2508, 3266489909
    %v2705 = vmul.u32 %v2509, 3266489909
    %v2706 = vmul.u32 %v2510, 3266489909
    %v2707 = vmul.u32 %v2511, 3266489909
    %v2708 = vmul.u32 %v2512, 3266489909
    %v2709 = vmul.u32 %v2513, 3266489909
    %v2710 = vmul.u32 %v2514, 3266489909
    %v2711 = vmul.u32 %v2515, 3266489909
    %v2712 = vmul.u32 %v2516, 3266489909
    %v2713 = vmul.u32 %v2517, 3266489909
    %v2714 = vmul.u32 %v2518, 3266489909
    %v2715 = vmul.u32 %v2519, 3266489909
    %v2716 = vmul.u32 %v2520, 3266489909
    %v2717 = vmul.u32 %v2521, 3266489909
    %v2718 = vmul.u32 %v2522, 3266489909
    %v2719 = vmul.u32 %v2523, 3266489909
    %v2720 = vmul.u32 %v2524, 3266489909
    %v2721 = vmul.u32 %v2525, 3266489909
    %v2722 = vmul.u32 %v2526, 3266489909
    %v2723 = vmul.u32 %v2527, 3266489909
    %v2724 = vmul.u32 %v2528, 3266489909
    %v2725 = vmul.u32 %v2529, 3266489909
    %v2726 = vmul.u32 %v2530, 3266489909
    %v2727 = vmul.u32 %v2531, 3266489909
    %v2728 = vmul.u32 %v2532, 3266489909
    %v2729 = vmul.u32 %v2533, 3266489909
    %v2730 = vmul.u32 %v2534, 3266489909
    %v2731 = vmul.u32 %v2535, 3266489909
    %v2732 = vmul.u32 %v2536, 3266489909
    %v2733 = vmul.u32 %v2537, 3266489909
    %v2734 = vmul.u32 %v2538, 3266489909
    %v2735 = vmul.u32 %v2539, 3266489909
    %v2736 = vmul.u32 %v2540, 3266489909
    %v2737 = vmul.u32 %v2541, 3266489909
    %v2738 = vmul.u32 %v2542, 3266489909
    %v2739 = vmul.u32 %v2543, 3266489909
    %v2740 = vmul.u32 %v2544, 3266489909
    %v2741 = vmul.u32 %v2545, 3266489909
    %v2742 = vmul.u32 %v2546, 3266489909
    %v2743 = vmul.u32 %v2547, 3266489909
    %v2744 = vmul.u32 %v2548, 3266489909
    %v2745 = vmul.u32 %v2549, 3266489909
    %v2746 = vmul.u32 %v2550, 3266489909
    %v2747 = vmul.u32 %v2551, 3266489909
    %v2748 = vmul.u32 %v2552, 3266489909
    %v2749 = vmul.u32 %v2553, 3266489909
    %v2750 = vmul.u32 %v2554, 3266489909
    %v2751 = vmul.u32 %v2555, 3266489909
    %v2752 = vmul.u32 %v2556, 3266489909
    %v2753 = vmul.u32 %v2557, 3266489909
    %v2754 = vmul.u32 %v2558, 3266489909
    %v2755 = vmul.u32 %v2559, 3266489909
    %v2756 = vmul.u32 %v2560, 3266489909
    %v2757 = vmul.u32 %v2561, 3266489909
    %v2758 = vmul.u32 %v2562, 3266489909
    %v2759 = vmul.u32 %v2563, 3266489909
    %v2760 = vmul.u32 %v2564, 3266489909
    %v2761 = vmul.u32 %v2565, 3266489909
    %v2762 = vmul.u32 %v2566, 3266489909
    %v2763 = vmul.u32 %v2567, 3266489909
    %v2764 = vmul.u32 %v2568, 3266489909
    %v2765 = vmul.u32 %v2569, 3266489909
    %v2766 = vmul.u32 %v2570, 3266489909
    %v2767 = vmul.u32 %v2571, 3266489909
    %v2768 = vmul.u32 %v2572, 3266489909
    %v2769 = vmul.u32 %v2573, 3266489909
    %v2770 = vmul.u32 %v2574, 3266489909
    %v2771 = vmul.u32 %v2575, 3266489909
    %v2772 = vmul.u32 %v2576, 3266489909
    %v2773 = vmul.u32 %v2577, 3266489909
    %v2774 = vmul.u32 %v2578, 3266489909
    %v2775 = vmul.u32 %v2579, 3266489909
    %v2776 = vmul.u32 %v2580, 3266489909
    %v2777 = vmul.u32 %v2581, 3266489909
    %v2778 = vmul.u32 %v2582, 3266489909
    %v2779 = vshra.s32 %v2583, 16
    %v2780 = vshra.s32 %v2584, 16
    %v2781 = vshra.s32 %v2585, 16
    %v2782 = vshra.s32 %v2586, 16
    %v2783 = vshra.s32 %v2587, 16
    %v2784 = vshra.s32 %v2588, 16
    %v2785 = vshra.s32 %v2589, 16
    %v2786 = vshra.s32 %v2590, 16
    %v2787 = vshra.s32 %v2591, 16
    %v2788 = vshra.s32 %v2592, 16
    %v2789 = vshra.s32 %v2593, 16
    %v2790 = vshra.s32 %v2594, 16
    %v2791 = vshra.s32 %v2595, 16
    %v2792 = vshra.s32 %v2596, 16
    %v2793 = vshra.s32 %v2597, 16
    %v2794 = vshra.s32 %v2598, 16
    %v2795 = vshra.s32 %v2599, 16
    %v2796 = vshra.s32 %v2600, 16
    %v2797 = vshra.s32 %v2601, 16
    %v2798 = vshra.s32 %v2602, 16
    %v2799 = vshra.s32 %v2603, 16
    %v2800 = vshra.s32 %v2604, 16
    %v2801 = vshra.s32 %v2605, 16
    %v2802 = vshra.s32 %v2606, 16
    %v2803 = vshra.s32 %v2607, 16
    %v2804 = vshra.s32 %v2608, 16
    %v2805 = vshra.s32 %v2609, 16
    %v2806 = vshra.s32 %v2610, 16
    %v2807 = vshra.s32 %v2611, 16
    %v2808 = vshra.s32 %v2612, 16
    %v2809 = vshra.s32 %v2613, 16
    %v2810 = vshra.s32 %v2614, 16
    %v2811 = vshra.s32 %v2615, 16
    %v2812 = vshra.s32 %v2616, 16
    %v2813 = vshra.s32 %v2617, 16
    %v2814 = vshra.s32 %v2618, 16
    %v2815 = vshra.s32 %v2619, 16
    %v2816 = vshra.s32 %v2620, 16
    %v2817 = vshra.s32 %v2621, 16
    %v2818 = vshra.s32 %v2622, 16
    %v2819 = vshra.s32 %v2623, 16
    %v2820 = vshra.s32 %v2624, 16
    %v2821 = vshra.s32 %v2625, 16
    %v2822 = vshra.s32 %v2626, 16
    %v2823 = vshra.s32 %v2627, 16
    %v2824 = vshra.s32 %v2628, 16
    %v2825 = vshra.s32 %v2629, 16
    %v2826 = vshra.s32 %v2630, 16
    %v2827 = vshra.s32 %v2631, 16
    %v2828 = vshra.s32 %v2632, 16
    %v2829 = vshra.s32 %v2633, 16
    %v2830 = vshra.s32 %v2634, 16
    %v2831 = vshra.s32 %v2635, 16
    %v2832 = vshra.s32 %v2636, 16
    %v2833 = vshra.s32 %v2637, 16
    %v2834 = vshra.s32 %v2638, 16
    %v2835 = vshra.s32 %v2639, 16
    %v2836 = vshra.s32 %v2640, 16
    %v2837 = vshra.s32 %v2641, 16
    %v2838 = vshra.s32 %v2642, 16
    %v2839 = vshra.s32 %v2643, 16
    %v2840 = vshra.s32 %v2644, 16
    %v2841 = vshra.s32 %v2645, 16
    %v2842 = vshra.s32 %v2646, 16
    %v2843 = vshra.s32 %v2647, 16
    %v2844 = vshra.s32 %v2648, 16
    %v2845 = vshra.s32 %v2649, 16
    %v2846 = vshra.s32 %v2650, 16
    %v2847 = vshra.s32 %v2651, 16
    %v2848 = vshra.s32 %v2652, 16
    %v2849 = vshra.s32 %v2653, 16
    %v2850 = vshra.s32 %v2654, 16
    %v2851 = vshra.s32 %v2655, 16
    %v2852 = vshra.s32 %v2656, 16
    %v2853 = vshra.s32 %v2657, 16
    %v2854 = vshra.s32 %v2658, 16
    %v2855 = vshra.s32 %v2659, 16
    %v2856 = vshra.s32 %v2660, 16
    %v2857 = vshra.s32 %v2661, 16
    %v2858 = vshra.s32 %v2662, 16
    %v2859 = vshra.s32 %v2663, 16
    %v2860 = vshra.s32 %v2664, 16
    %v2861 = vshra.s32 %v2665, 16
    %v2862 = vshra.s32 %v2666, 16
    %v2863 = vshra.s32 %v2667, 16
    %v2864 = vshra.s32 %v2668, 16
    %v2865 = vshra.s32 %v2669, 16
    %v2866 = vshra.s32 %v2670, 16
    %v2867 = vshra.s32 %v2671, 16
    %v2868 = vshra.s32 %v2672, 16
    %v2869 = vshra.s32 %v2673, 16
    %v2870 = vshra.s32 %v2674, 16
    %v2871 = vshra.s32 %v2675, 16
    %v2872 = vshra.s32 %v2676, 16
    %v2873 = vshra.s32 %v2677, 16
    %v2874 = vshra.s32 %v2678, 16
    %v2875 = vshra.s32 %v2679, 16
    %v2876 = vshra.s32 %v2680, 16
    %v2877 = vshra.s32 %v2681, 16
    %v2878 = vshra.s32 %v2682, 16
    %v2879 = vshra.s32 %v2683, 16
    %v2880 = vshra.s32 %v2684, 16
    %v2881 = vshra.s32 %v2685, 16
    %v2882 = vshra.s32 %v2686, 16
    %v2883 = vshra.s32 %v2687, 16
    %v2884 = vshra.s32 %v2688, 16
    %v2885 = vshra.s32 %v2689, 16
    %v2886 = vshra.s32 %v2690, 16
    %v2887 = vshra.s32 %v2691, 16
    %v2888 = vshra.s32 %v2692, 16
    %v2889 = vshra.s32 %v2693, 16
    %v2890 = vshra.s32 %v2694, 16
    %v2891 = vshra.s32 %v2695, 16
    %v2892 = vshra.s32 %v2696, 16
    %v2893 = vshra.s32 %v2697, 16
    %v2894 = vshra.s32 %v2698, 16
    %v2895 = vshra.s32 %v2699, 16
    %v2896 = vshra.s32 %v2700, 16
    %v2897 = vshra.s32 %v2701, 16
    %v2898 = vshra.s32 %v2702, 16
    %v2899 = vshra.s32 %v2703, 16
    %v2900 = vshra.s32 %v2704, 16
    %v2901 = vshra.s32 %v2705, 16
    %v2902 = vshra.s32 %v2706, 16
    %v2903 = vshra.s32 %v2707, 16
    %v2904 = vshra.s32 %v2708, 16
    %v2905 = vshra.s32 %v2709, 16
    %v2906 = vshra.s32 %v2710, 16
    %v2907 = vshra.s32 %v2711, 16
    %v2908 = vshra.s32 %v2712, 16
    %v2909 = vshra.s32 %v2713, 16
    %v2910 = vshra.s32 %v2714, 16
    %v2911 = vshra.s32 %v2715, 16
    %v2912 = vshra.s32 %v2716, 16
    %v2913 = vshra.s32 %v2717, 16
    %v2914 = vshra.s32 %v2718, 16
    %v2915 = vshra.s32 %v2719, 16
    %v2916 = vshra.s32 %v2720, 16
    %v2917 = vshra.s32 %v2721, 16
    %v2918 = vshra.s32 %v2722, 16
    %v2919 = vshra.s32 %v2723, 16
    %v2920 = vshra.s32 %v2724, 16
    %v2921 = vshra.s32 %v2725, 16
    %v2922 = vshra.s32 %v2726, 16
    %v2923 = vshra.s32 %v2727, 16
    %v2924 = vshra.s32 %v2728, 16
    %v2925 = vshra.s32 %v2729, 16
    %v2926 = vshra.s32 %v2730, 16
    %v2927 = vshra.s32 %v2731, 16
    %v2928 = vshra.s32 %v2732, 16
    %v2929 = vshra.s32 %v2733, 16
    %v2930 = vshra.s32 %v2734, 16
    %v2931 = vshra.s32 %v2735, 16
    %v2932 = vshra.s32 %v2736, 16
    %v2933 = vshra.s32 %v2737, 16
    %v2934 = vshra.s32 %v2738, 16
    %v2935 = vshra.s32 %v2739, 16
    %v2936 = vshra.s32 %v2740, 16
    %v2937 = vshra.s32 %v2741, 16
    %v2938 = vshra.s32 %v2742, 16
    %v2939 = vshra.s32 %v2743, 16
    %v2940 = vshra.s32 %v2744, 16
    %v2941 = vshra.s32 %v2745, 16
    %v2942 = vshra.s32 %v2746, 16
    %v2943 = vshra.s32 %v2747, 16
    %v2944 = vshra.s32 %v2748, 16
    %v2945 = vshra.s32 %v2749, 16
    %v2946 = vshra.s32 %v2750, 16
    %v2947 = vshra.s32 %v2751, 16
    %v2948 = vshra.s32 %v2752, 16
    %v2949 = vshra.s32 %v2753, 16
    %v2950 = vshra.s32 %v2754, 16
    %v2951 = vshra.s32 %v2755, 16
    %v2952 = vshra.s32 %v2756, 16
    %v2953 = vshra.s32 %v2757, 16
    %v2954 = vshra.s32 %v2758, 16
    %v2955 = vshra.s32 %v2759, 16
    %v2956 = vshra.s32 %v2760, 16
    %v2957 = vshra.s32 %v2761, 16
    %v2958 = vshra.s32 %v2762, 16
    %v2959 = vshra.s32 %v2763, 16
    %v2960 = vshra.s32 %v2764, 16
    %v2961 = vshra.s32 %v2765, 16
    %v2962 = vshra.s32 %v2766, 16
    %v2963 = vshra.s32 %v2767, 16
    %v2964 = vshra.s32 %v2768, 16
    %v2965 = vshra.s32 %v2769, 16
    %v2966 = vshra.s32 %v2770, 16
    %v2967 = vshra.s32 %v2771, 16
    %v2968 = vshra.s32 %v2772, 16
    %v2969 = vshra.s32 %v2773, 16
    %v2970 = vshra.s32 %v2774, 16
    %v2971 = vshra.s32 %v2775, 16
    %v2972 = vshra.s32 %v2776, 16
    %v2973 = vshra.s32 %v2777, 16
    %v2974 = vshra.s32 %v2778, 16
    %v2975 = vand.u32 %v2779, 65535
    %v2976 = vand.u32 %v2780, 65535
    %v2977 = vand.u32 %v2781, 65535
    %v2978 = vand.u32 %v2782, 65535
    %v2979 = vand.u32 %v2783, 65535
    %v2980 = vand.u32 %v2784, 65535
    %v2981 = vand.u32 %v2785, 65535
    %v2982 = vand.u32 %v2786, 65535
    %v2983 = vand.u32 %v2787, 65535
    %v2984 = vand.u32 %v2788, 65535
    %v2985 = vand.u32 %v2789, 65535
    %v2986 = vand.u32 %v2790, 65535
    %v2987 = vand.u32 %v2791, 65535
    %v2988 = vand.u32 %v2792, 65535
    %v2989 = vand.u32 %v2793, 65535
    %v2990 = vand.u32 %v2794, 65535
    %v2991 = vand.u32 %v2795, 65535
    %v2992 = vand.u32 %v2796, 65535
    %v2993 = vand.u32 %v2797, 65535
    %v2994 = vand.u32 %v2798, 65535
    %v2995 = vand.u32 %v2799, 65535
    %v2996 = vand.u32 %v2800, 65535
    %v2997 = vand.u32 %v2801, 65535
    %v2998 = vand.u32 %v2802, 65535
    %v2999 = vand.u32 %v2803, 65535
    %v3000 = vand.u32 %v2804, 65535
    %v3001 = vand.u32 %v2805, 65535
    %v3002 = vand.u32 %v2806, 65535
    %v3003 = vand.u32 %v2807, 65535
    %v3004 = vand.u32 %v2808, 65535
    %v3005 = vand.u32 %v2809, 65535
    %v3006 = vand.u32 %v2810, 65535
    %v3007 = vand.u32 %v2811, 65535
    %v3008 = vand.u32 %v2812, 65535
    %v3009 = vand.u32 %v2813, 65535
    %v3010 = vand.u32 %v2814, 65535
    %v3011 = vand.u32 %v2815, 65535
    %v3012 = vand.u32 %v2816, 65535
    %v3013 = vand.u32 %v2817, 65535
    %v3014 = vand.u32 %v2818, 65535
    %v3015 = vand.u32 %v2819, 65535
    %v3016 = vand.u32 %v2820, 65535
    %v3017 = vand.u32 %v2821, 65535
    %v3018 = vand.u32 %v2822, 65535
    %v3019 = vand.u32 %v2823, 65535
    %v3020 = vand.u32 %v2824, 65535
    %v3021 = vand.u32 %v2825, 65535
    %v3022 = vand.u32 %v2826, 65535
    %v3023 = vand.u32 %v2827, 65535
    %v3024 = vand.u32 %v2828, 65535
    %v3025 = vand.u32 %v2829, 65535
    %v3026 = vand.u32 %v2830, 65535
    %v3027 = vand.u32 %v2831, 65535
    %v3028 = vand.u32 %v2832, 65535
    %v3029 = vand.u32 %v2833, 65535
    %v3030 = vand.u32 %v2834, 65535
    %v3031 = vand.u32 %v2835, 65535
    %v3032 = vand.u32 %v2836, 65535
    %v3033 = vand.u32 %v2837, 65535
    %v3034 = vand.u32 %v2838, 65535
    %v3035 = vand.u32 %v2839, 65535
    %v3036 = vand.u32 %v2840, 65535
    %v3037 = vand.u32 %v2841, 65535
    %v3038 = vand.u32 %v2842, 65535
    %v3039 = vand.u32 %v2843, 65535
    %v3040 = vand.u32 %v2844, 65535
    %v3041 = vand.u32 %v2845, 65535
    %v3042 = vand.u32 %v2846, 65535
    %v3043 = vand.u32 %v2847, 65535
    %v3044 = vand.u32 %v2848, 65535
    %v3045 = vand.u32 %v2849, 65535
    %v3046 = vand.u32 %v2850, 65535
    %v3047 = vand.u32 %v2851, 65535
    %v3048 = vand.u32 %v2852, 65535
    %v3049 = vand.u32 %v2853, 65535
    %v3050 = vand.u32 %v2854, 65535
    %v3051 = vand.u32 %v2855, 65535
    %v3052 = vand.u32 %v2856, 65535
    %v3053 = vand.u32 %v2857, 65535
    %v3054 = vand.u32 %v2858, 65535
    %v3055 = vand.u32 %v2859, 65535
    %v3056 = vand.u32 %v2860, 65535
    %v3057 = vand.u32 %v2861, 65535
    %v3058 = vand.u32 %v2862, 65535
    %v3059 = vand.u32 %v2863, 65535
    %v3060 = vand.u32 %v2864, 65535
    %v3061 = vand.u32 %v2865, 65535
    %v3062 = vand.u32 %v2866, 65535
    %v3063 = vand.u32 %v2867, 65535
    %v3064 = vand.u32 %v2868, 65535
    %v3065 = vand.u32 %v2869, 65535
    %v3066 = vand.u32 %v2870, 65535
    %v3067 = vand.u32 %v2871, 65535
    %v3068 = vand.u32 %v2872, 65535
    %v3069 = vand.u32 %v2873, 65535
    %v3070 = vand.u32 %v2874, 65535
    %v3071 = vand.u32 %v2875, 65535
    %v3072 = vand.u32 %v2876, 65535
    %v3073 = vand.u32 %v2877, 65535
    %v3074 = vand.u32 %v2878, 65535
    %v3075 = vand.u32 %v2879, 65535
    %v3076 = vand.u32 %v2880, 65535
    %v3077 = vand.u32 %v2881, 65535
    %v3078 = vand.u32 %v2882, 65535
    %v3079 = vand.u32 %v2883, 65535
    %v3080 = vand.u32 %v2884, 65535
    %v3081 = vand.u32 %v2885, 65535
    %v3082 = vand.u32 %v2886, 65535
    %v3083 = vand.u32 %v2887, 65535
    %v3084 = vand.u32 %v2888, 65535
    %v3085 = vand.u32 %v2889, 65535
    %v3086 = vand.u32 %v2890, 65535
    %v3087 = vand.u32 %v2891, 65535
    %v3088 = vand.u32 %v2892, 65535
    %v3089 = vand.u32 %v2893, 65535
    %v3090 = vand.u32 %v2894, 65535
    %v3091 = vand.u32 %v2895, 65535
    %v3092 = vand.u32 %v2896, 65535
    %v3093 = vand.u32 %v2897, 65535
    %v3094 = vand.u32 %v2898, 65535
    %v3095 = vand.u32 %v2899, 65535
    %v3096 = vand.u32 %v2900, 65535
    %v3097 = vand.u32 %v2901, 65535
    %v3098 = vand.u32 %v2902, 65535
    %v3099 = vand.u32 %v2903, 65535
    %v3100 = vand.u32 %v2904, 65535
    %v3101 = vand.u32 %v2905, 65535
    %v3102 = vand.u32 %v2906, 65535
    %v3103 = vand.u32 %v2907, 65535
    %v3104 = vand.u32 %v2908, 65535
    %v3105 = vand.u32 %v2909, 65535
    %v3106 = vand.u32 %v2910, 65535
    %v3107 = vand.u32 %v2911, 65535
    %v3108 = vand.u32 %v2912, 65535
    %v3109 = vand.u32 %v2913, 65535
    %v3110 = vand.u32 %v2914, 65535
    %v3111 = vand.u32 %v2915, 65535
    %v3112 = vand.u32 %v2916, 65535
    %v3113 = vand.u32 %v2917, 65535
    %v3114 = vand.u32 %v2918, 65535
    %v3115 = vand.u32 %v2919, 65535
    %v3116 = vand.u32 %v2920, 65535
    %v3117 = vand.u32 %v2921, 65535
    %v3118 = vand.u32 %v2922, 65535
    %v3119 = vand.u32 %v2923, 65535
    %v3120 = vand.u32 %v2924, 65535
    %v3121 = vand.u32 %v2925, 65535
    %v3122 = vand.u32 %v2926, 65535
    %v3123 = vand.u32 %v2927, 65535
    %v3124 = vand.u32 %v2928, 65535
    %v3125 = vand.u32 %v2929, 65535
    %v3126 = vand.u32 %v2930, 65535
    %v3127 = vand.u32 %v2931, 65535
    %v3128 = vand.u32 %v2932, 65535
    %v3129 = vand.u32 %v2933, 65535
    %v3130 = vand.u32 %v2934, 65535
    %v3131 = vand.u32 %v2935, 65535
    %v3132 = vand.u32 %v2936, 65535
    %v3133 = vand.u32 %v2937, 65535
    %v3134 = vand.u32 %v2938, 65535
    %v3135 = vand.u32 %v2939, 65535
    %v3136 = vand.u32 %v2940, 65535
    %v3137 = vand.u32 %v2941, 65535
    %v3138 = vand.u32 %v2942, 65535
    %v3139 = vand.u32 %v2943, 65535
    %v3140 = vand.u32 %v2944, 65535
    %v3141 = vand.u32 %v2945, 65535
    %v3142 = vand.u32 %v2946, 65535
    %v3143 = vand.u32 %v2947, 65535
    %v3144 = vand.u32 %v2948, 65535
    %v3145 = vand.u32 %v2949, 65535
    %v3146 = vand.u32 %v2950, 65535
    %v3147 = vand.u32 %v2951, 65535
    %v3148 = vand.u32 %v2952, 65535
    %v3149 = vand.u32 %v2953, 65535
    %v3150 = vand.u32 %v2954, 65535
    %v3151 = vand.u32 %v2955, 65535
    %v3152 = vand.u32 %v2956, 65535
    %v3153 = vand.u32 %v2957, 65535
    %v3154 = vand.u32 %v2958, 65535
    %v3155 = vand.u32 %v2959, 65535
    %v3156 = vand.u32 %v2960, 65535
    %v3157 = vand.u32 %v2961, 65535
    %v3158 = vand.u32 %v2962, 65535
    %v3159 = vand.u32 %v2963, 65535
    %v3160 = vand.u32 %v2964, 65535
    %v3161 = vand.u32 %v2965, 65535
    %v3162 = vand.u32 %v2966, 65535
    %v3163 = vand.u32 %v2967, 65535
    %v3164 = vand.u32 %v2968, 65535
    %v3165 = vand.u32 %v2969, 65535
    %v3166 = vand.u32 %v2970, 65535
    %v3167 = vand.u32 %v2971, 65535
    %v3168 = vand.u32 %v2972, 65535
    %v3169 = vand.u32 %v2973, 65535
    %v3170 = vand.u32 %v2974, 65535
    %v3171 = vxor.u32 %v2583, %v2975
    %v3172 = vxor.u32 %v2584, %v2976
    %v3173 = vxor.u32 %v2585, %v2977
    %v3174 = vxor.u32 %v2586, %v2978
    %v3175 = vxor.u32 %v2587, %v2979
    %v3176 = vxor.u32 %v2588, %v2980
    %v3177 = vxor.u32 %v2589, %v2981
    %v3178 = vxor.u32 %v2590, %v2982
    %v3179 = vxor.u32 %v2591, %v2983
    %v3180 = vxor.u32 %v2592, %v2984
    %v3181 = vxor.u32 %v2593, %v2985
    %v3182 = vxor.u32 %v2594, %v2986
    %v3183 = vxor.u32 %v2595, %v2987
    %v3184 = vxor.u32 %v2596, %v2988
    %v3185 = vxor.u32 %v2597, %v2989
    %v3186 = vxor.u32 %v2598, %v2990
    %v3187 = vxor.u32 %v2599, %v2991
    %v3188 = vxor.u32 %v2600, %v2992
    %v3189 = vxor.u32 %v2601, %v2993
    %v3190 = vxor.u32 %v2602, %v2994
    %v3191 = vxor.u32 %v2603, %v2995
    %v3192 = vxor.u32 %v2604, %v2996
    %v3193 = vxor.u32 %v2605, %v2997
    %v3194 = vxor.u32 %v2606, %v2998
    %v3195 = vxor.u32 %v2607, %v2999
    %v3196 = vxor.u32 %v2608, %v3000
    %v3197 = vxor.u32 %v2609, %v3001
    %v3198 = vxor.u32 %v2610, %v3002
    %v3199 = vxor.u32 %v2611, %v3003
    %v3200 = vxor.u32 %v2612, %v3004
    %v3201 = vxor.u32 %v2613, %v3005
    %v3202 = vxor.u32 %v2614, %v3006
    %v3203 = vxor.u32 %v2615, %v3007
    %v3204 = vxor.u32 %v2616, %v3008
    %v3205 = vxor.u32 %v2617, %v3009
    %v3206 = vxor.u32 %v2618, %v3010
    %v3207 = vxor.u32 %v2619, %v3011
    %v3208 = vxor.u32 %v2620, %v3012
    %v3209 = vxor.u32 %v2621, %v3013
    %v3210 = vxor.u32 %v2622, %v3014
    %v3211 = vxor.u32 %v2623, %v3015
    %v3212 = vxor.u32 %v2624, %v3016
    %v3213 = vxor.u32 %v2625, %v3017
    %v3214 = vxor.u32 %v2626, %v3018
    %v3215 = vxor.u32 %v2627, %v3019
    %v3216 = vxor.u32 %v2628, %v3020
    %v3217 = vxor.u32 %v2629, %v3021
    %v3218 = vxor.u32 %v2630, %v3022
    %v3219 = vxor.u32 %v2631, %v3023
    %v3220 = vxor.u32 %v2632, %v3024
    %v3221 = vxor.u32 %v2633, %v3025
    %v3222 = vxor.u32 %v2634, %v3026
    %v3223 = vxor.u32 %v2635, %v3027
    %v3224 = vxor.u32 %v2636, %v3028
    %v3225 = vxor.u32 %v2637, %v3029
    %v3226 = vxor.u32 %v2638, %v3030
    %v3227 = vxor.u32 %v2639, %v3031
    %v3228 = vxor.u32 %v2640, %v3032
    %v3229 = vxor.u32 %v2641, %v3033
    %v3230 = vxor.u32 %v2642, %v3034
    %v3231 = vxor.u32 %v2643, %v3035
    %v3232 = vxor.u32 %v2644, %v3036
    %v3233 = vxor.u32 %v2645, %v3037
    %v3234 = vxor.u32 %v2646, %v3038
    %v3235 = vxor.u32 %v2647, %v3039
    %v3236 = vxor.u32 %v2648, %v3040
    %v3237 = vxor.u32 %v2649, %v3041
    %v3238 = vxor.u32 %v2650, %v3042
    %v3239 = vxor.u32 %v2651, %v3043
    %v3240 = vxor.u32 %v2652, %v3044
    %v3241 = vxor.u32 %v2653, %v3045
    %v3242 = vxor.u32 %v2654, %v3046
    %v3243 = vxor.u32 %v2655, %v3047
    %v3244 = vxor.u32 %v2656, %v3048
    %v3245 = vxor.u32 %v2657, %v3049
    %v3246 = vxor.u32 %v2658, %v3050
    %v3247 = vxor.u32 %v2659, %v3051
    %v3248 = vxor.u32 %v2660, %v3052
    %v3249 = vxor.u32 %v2661, %v3053
    %v3250 = vxor.u32 %v2662, %v3054
    %v3251 = vxor.u32 %v2663, %v3055
    %v3252 = vxor.u32 %v2664, %v3056
    %v3253 = vxor.u32 %v2665, %v3057
    %v3254 = vxor.u32 %v2666, %v3058
    %v3255 = vxor.u32 %v2667, %v3059
    %v3256 = vxor.u32 %v2668, %v3060
    %v3257 = vxor.u32 %v2669, %v3061
    %v3258 = vxor.u32 %v2670, %v3062
    %v3259 = vxor.u32 %v2671, %v3063
    %v3260 = vxor.u32 %v2672, %v3064
    %v3261 = vxor.u32 %v2673, %v3065
    %v3262 = vxor.u32 %v2674, %v3066
    %v3263 = vxor.u32 %v2675, %v3067
    %v3264 = vxor.u32 %v2676, %v3068
    %v3265 = vxor.u32 %v2677, %v3069
    %v3266 = vxor.u32 %v2678, %v3070
    %v3267 = vxor.u32 %v2679, %v3071
    %v3268 = vxor.u32 %v2680, %v3072
    %v3269 = vxor.u32 %v2681, %v3073
    %v3270 = vxor.u32 %v2682, %v3074
    %v3271 = vxor.u32 %v2683, %v3075
    %v3272 = vxor.u32 %v2684, %v3076
    %v3273 = vxor.u32 %v2685, %v3077
    %v3274 = vxor.u32 %v2686, %v3078
    %v3275 = vxor.u32 %v2687, %v3079
    %v3276 = vxor.u32 %v2688, %v3080
    %v3277 = vxor.u32 %v2689, %v3081
    %v3278 = vxor.u32 %v2690, %v3082
    %v3279 = vxor.u32 %v2691, %v3083
    %v3280 = vxor.u32 %v2692, %v3084
    %v3281 = vxor.u32 %v2693, %v3085
    %v3282 = vxor.u32 %v2694, %v3086
    %v3283 = vxor.u32 %v2695, %v3087
    %v3284 = vxor.u32 %v2696, %v3088
    %v3285 = vxor.u32 %v2697, %v3089
    %v3286 = vxor.u32 %v2698, %v3090
    %v3287 = vxor.u32 %v2699, %v3091
    %v3288 = vxor.u32 %v2700, %v3092
    %v3289 = vxor.u32 %v2701, %v3093
    %v3290 = vxor.u32 %v2702, %v3094
    %v3291 = vxor.u32 %v2703, %v3095
    %v3292 = vxor.u32 %v2704, %v3096
    %v3293 = vxor.u32 %v2705, %v3097
    %v3294 = vxor.u32 %v2706, %v3098
    %v3295 = vxor.u32 %v2707, %v3099
    %v3296 = vxor.u32 %v2708, %v3100
    %v3297 = vxor.u32 %v2709, %v3101
    %v3298 = vxor.u32 %v2710, %v3102
    %v3299 = vxor.u32 %v2711, %v3103
    %v3300 = vxor.u32 %v2712, %v3104
    %v3301 = vxor.u32 %v2713, %v3105
    %v3302 = vxor.u32 %v2714, %v3106
    %v3303 = vxor.u32 %v2715, %v3107
    %v3304 = vxor.u32 %v2716, %v3108
    %v3305 = vxor.u32 %v2717, %v3109
    %v3306 = vxor.u32 %v2718, %v3110
    %v3307 = vxor.u32 %v2719, %v3111
    %v3308 = vxor.u32 %v2720, %v3112
    %v3309 = vxor.u32 %v2721, %v3113
    %v3310 = vxor.u32 %v2722, %v3114
    %v3311 = vxor.u32 %v2723, %v3115
    %v3312 = vxor.u32 %v2724, %v3116
    %v3313 = vxor.u32 %v2725, %v3117
    %v3314 = vxor.u32 %v2726, %v3118
    %v3315 = vxor.u32 %v2727, %v3119
    %v3316 = vxor.u32 %v2728, %v3120
    %v3317 = vxor.u32 %v2729, %v3121
    %v3318 = vxor.u32 %v2730, %v3122
    %v3319 = vxor.u32 %v2731, %v3123
    %v3320 = vxor.u32 %v2732, %v3124
    %v3321 = vxor.u32 %v2733, %v3125
    %v3322 = vxor.u32 %v2734, %v3126
    %v3323 = vxor.u32 %v2735, %v3127
    %v3324 = vxor.u32 %v2736, %v3128
    %v3325 = vxor.u32 %v2737, %v3129
    %v3326 = vxor.u32 %v2738, %v3130
    %v3327 = vxor.u32 %v2739, %v3131
    %v3328 = vxor.u32 %v2740, %v3132
    %v3329 = vxor.u32 %v2741, %v3133
    %v3330 = vxor.u32 %v2742, %v3134
    %v3331 = vxor.u32 %v2743, %v3135
    %v3332 = vxor.u32 %v2744, %v3136
    %v3333 = vxor.u32 %v2745, %v3137
    %v3334 = vxor.u32 %v2746, %v3138
    %v3335 = vxor.u32 %v2747, %v3139
    %v3336 = vxor.u32 %v2748, %v3140
    %v3337 = vxor.u32 %v2749, %v3141
    %v3338 = vxor.u32 %v2750, %v3142
    %v3339 = vxor.u32 %v2751, %v3143
    %v3340 = vxor.u32 %v2752, %v3144
    %v3341 = vxor.u32 %v2753, %v3145
    %v3342 = vxor.u32 %v2754, %v3146
    %v3343 = vxor.u32 %v2755, %v3147
    %v3344 = vxor.u32 %v2756, %v3148
    %v3345 = vxor.u32 %v2757, %v3149
    %v3346 = vxor.u32 %v2758, %v3150
    %v3347 = vxor.u32 %v2759, %v3151
    %v3348 = vxor.u32 %v2760, %v3152
    %v3349 = vxor.u32 %v2761, %v3153
    %v3350 = vxor.u32 %v2762, %v3154
    %v3351 = vxor.u32 %v2763, %v3155
    %v3352 = vxor.u32 %v2764, %v3156
    %v3353 = vxor.u32 %v2765, %v3157
    %v3354 = vxor.u32 %v2766, %v3158
    %v3355 = vxor.u32 %v2767, %v3159
    %v3356 = vxor.u32 %v2768, %v3160
    %v3357 = vxor.u32 %v2769, %v3161
    %v3358 = vxor.u32 %v2770, %v3162
    %v3359 = vxor.u32 %v2771, %v3163
    %v3360 = vxor.u32 %v2772, %v3164
    %v3361 = vxor.u32 %v2773, %v3165
    %v3362 = vxor.u32 %v2774, %v3166
    %v3363 = vxor.u32 %v2775, %v3167
    %v3364 = vxor.u32 %v2776, %v3168
    %v3365 = vxor.u32 %v2777, %v3169
    %v3366 = vxor.u32 %v2778, %v3170
    %v3367 = vshra.s32 %v3171, 1
    %v3368 = vshra.s32 %v3172, 1
    %v3369 = vshra.s32 %v3173, 1
    %v3370 = vshra.s32 %v3174, 1
    %v3371 = vshra.s32 %v3175, 1
    %v3372 = vshra.s32 %v3176, 1
    %v3373 = vshra.s32 %v3177, 1
    %v3374 = vshra.s32 %v3178, 1
    %v3375 = vshra.s32 %v3179, 1
    %v3376 = vshra.s32 %v3180, 1
    %v3377 = vshra.s32 %v3181, 1
    %v3378 = vshra.s32 %v3182, 1
    %v3379 = vshra.s32 %v3183, 1
    %v3380 = vshra.s32 %v3184, 1
    %v3381 = vshra.s32 %v3185, 1
    %v3382 = vshra.s32 %v3186, 1
    %v3383 = vshra.s32 %v3187, 1
    %v3384 = vshra.s32 %v3188, 1
    %v3385 = vshra.s32 %v3189, 1
    %v3386 = vshra.s32 %v3190, 1
    %v3387 = vshra.s32 %v3191, 1
    %v3388 = vshra.s32 %v3192, 1
    %v3389 = vshra.s32 %v3193, 1
    %v3390 = vshra.s32 %v3194, 1
    %v3391 = vshra.s32 %v3195, 1
    %v3392 = vshra.s32 %v3196, 1
    %v3393 = vshra.s32 %v3197, 1
    %v3394 = vshra.s32 %v3198, 1
    %v3395 = vshra.s32 %v3199, 1
    %v3396 = vshra.s32 %v3200, 1
    %v3397 = vshra.s32 %v3201, 1
    %v3398 = vshra.s32 %v3202, 1
    %v3399 = vshra.s32 %v3203, 1
    %v3400 = vshra.s32 %v3204, 1
    %v3401 = vshra.s32 %v3205, 1
    %v3402 = vshra.s32 %v3206, 1
    %v3403 = vshra.s32 %v3207, 1
    %v3404 = vshra.s32 %v3208, 1
    %v3405 = vshra.s32 %v3209, 1
    %v3406 = vshra.s32 %v3210, 1
    %v3407 = vshra.s32 %v3211, 1
    %v3408 = vshra.s32 %v3212, 1
    %v3409 = vshra.s32 %v3213, 1
    %v3410 = vshra.s32 %v3214, 1
    %v3411 = vshra.s32 %v3215, 1
    %v3412 = vshra.s32 %v3216, 1
    %v3413 = vshra.s32 %v3217, 1
    %v3414 = vshra.s32 %v3218, 1
    %v3415 = vshra.s32 %v3219, 1
    %v3416 = vshra.s32 %v3220, 1
    %v3417 = vshra.s32 %v3221, 1
    %v3418 = vshra.s32 %v3222, 1
    %v3419 = vshra.s32 %v3223, 1
    %v3420 = vshra.s32 %v3224, 1
    %v3421 = vshra.s32 %v3225, 1
    %v3422 = vshra.s32 %v3226, 1
    %v3423 = vshra.s32 %v3227, 1
    %v3424 = vshra.s32 %v3228, 1
    %v3425 = vshra.s32 %v3229, 1
    %v3426 = vshra.s32 %v3230, 1
    %v3427 = vshra.s32 %v3231, 1
    %v3428 = vshra.s32 %v3232, 1
    %v3429 = vshra.s32 %v3233, 1
    %v3430 = vshra.s32 %v3234, 1
    %v3431 = vshra.s32 %v3235, 1
    %v3432 = vshra.s32 %v3236, 1
    %v3433 = vshra.s32 %v3237, 1
    %v3434 = vshra.s32 %v3238, 1
    %v3435 = vshra.s32 %v3239, 1
    %v3436 = vshra.s32 %v3240, 1
    %v3437 = vshra.s32 %v3241, 1
    %v3438 = vshra.s32 %v3242, 1
    %v3439 = vshra.s32 %v3243, 1
    %v3440 = vshra.s32 %v3244, 1
    %v3441 = vshra.s32 %v3245, 1
    %v3442 = vshra.s32 %v3246, 1
    %v3443 = vshra.s32 %v3247, 1
    %v3444 = vshra.s32 %v3248, 1
    %v3445 = vshra.s32 %v3249, 1
    %v3446 = vshra.s32 %v3250, 1
    %v3447 = vshra.s32 %v3251, 1
    %v3448 = vshra.s32 %v3252, 1
    %v3449 = vshra.s32 %v3253, 1
    %v3450 = vshra.s32 %v3254, 1
    %v3451 = vshra.s32 %v3255, 1
    %v3452 = vshra.s32 %v3256, 1
    %v3453 = vshra.s32 %v3257, 1
    %v3454 = vshra.s32 %v3258, 1
    %v3455 = vshra.s32 %v3259, 1
    %v3456 = vshra.s32 %v3260, 1
    %v3457 = vshra.s32 %v3261, 1
    %v3458 = vshra.s32 %v3262, 1
    %v3459 = vshra.s32 %v3263, 1
    %v3460 = vshra.s32 %v3264, 1
    %v3461 = vshra.s32 %v3265, 1
    %v3462 = vshra.s32 %v3266, 1
    %v3463 = vshra.s32 %v3267, 1
    %v3464 = vshra.s32 %v3268, 1
    %v3465 = vshra.s32 %v3269, 1
    %v3466 = vshra.s32 %v3270, 1
    %v3467 = vshra.s32 %v3271, 1
    %v3468 = vshra.s32 %v3272, 1
    %v3469 = vshra.s32 %v3273, 1
    %v3470 = vshra.s32 %v3274, 1
    %v3471 = vshra.s32 %v3275, 1
    %v3472 = vshra.s32 %v3276, 1
    %v3473 = vshra.s32 %v3277, 1
    %v3474 = vshra.s32 %v3278, 1
    %v3475 = vshra.s32 %v3279, 1
    %v3476 = vshra.s32 %v3280, 1
    %v3477 = vshra.s32 %v3281, 1
    %v3478 = vshra.s32 %v3282, 1
    %v3479 = vshra.s32 %v3283, 1
    %v3480 = vshra.s32 %v3284, 1
    %v3481 = vshra.s32 %v3285, 1
    %v3482 = vshra.s32 %v3286, 1
    %v3483 = vshra.s32 %v3287, 1
    %v3484 = vshra.s32 %v3288, 1
    %v3485 = vshra.s32 %v3289, 1
    %v3486 = vshra.s32 %v3290, 1
    %v3487 = vshra.s32 %v3291, 1
    %v3488 = vshra.s32 %v3292, 1
    %v3489 = vshra.s32 %v3293, 1
    %v3490 = vshra.s32 %v3294, 1
    %v3491 = vshra.s32 %v3295, 1
    %v3492 = vshra.s32 %v3296, 1
    %v3493 = vshra.s32 %v3297, 1
    %v3494 = vshra.s32 %v3298, 1
    %v3495 = vshra.s32 %v3299, 1
    %v3496 = vshra.s32 %v3300, 1
    %v3497 = vshra.s32 %v3301, 1
    %v3498 = vshra.s32 %v3302, 1
    %v3499 = vshra.s32 %v3303, 1
    %v3500 = vshra.s32 %v3304, 1
    %v3501 = vshra.s32 %v3305, 1
    %v3502 = vshra.s32 %v3306, 1
    %v3503 = vshra.s32 %v3307, 1
    %v3504 = vshra.s32 %v3308, 1
    %v3505 = vshra.s32 %v3309, 1
    %v3506 = vshra.s32 %v3310, 1
    %v3507 = vshra.s32 %v3311, 1
    %v3508 = vshra.s32 %v3312, 1
    %v3509 = vshra.s32 %v3313, 1
    %v3510 = vshra.s32 %v3314, 1
    %v3511 = vshra.s32 %v3315, 1
    %v3512 = vshra.s32 %v3316, 1
    %v3513 = vshra.s32 %v3317, 1
    %v3514 = vshra.s32 %v3318, 1
    %v3515 = vshra.s32 %v3319, 1
    %v3516 = vshra.s32 %v3320, 1
    %v3517 = vshra.s32 %v3321, 1
    %v3518 = vshra.s32 %v3322, 1
    %v3519 = vshra.s32 %v3323, 1
    %v3520 = vshra.s32 %v3324, 1
    %v3521 = vshra.s32 %v3325, 1
    %v3522 = vshra.s32 %v3326, 1
    %v3523 = vshra.s32 %v3327, 1
    %v3524 = vshra.s32 %v3328, 1
    %v3525 = vshra.s32 %v3329, 1
    %v3526 = vshra.s32 %v3330, 1
    %v3527 = vshra.s32 %v3331, 1
    %v3528 = vshra.s32 %v3332, 1
    %v3529 = vshra.s32 %v3333, 1
    %v3530 = vshra.s32 %v3334, 1
    %v3531 = vshra.s32 %v3335, 1
    %v3532 = vshra.s32 %v3336, 1
    %v3533 = vshra.s32 %v3337, 1
    %v3534 = vshra.s32 %v3338, 1
    %v3535 = vshra.s32 %v3339, 1
    %v3536 = vshra.s32 %v3340, 1
    %v3537 = vshra.s32 %v3341, 1
    %v3538 = vshra.s32 %v3342, 1
    %v3539 = vshra.s32 %v3343, 1
    %v3540 = vshra.s32 %v3344, 1
    %v3541 = vshra.s32 %v3345, 1
    %v3542 = vshra.s32 %v3346, 1
    %v3543 = vshra.s32 %v3347, 1
    %v3544 = vshra.s32 %v3348, 1
    %v3545 = vshra.s32 %v3349, 1
    %v3546 = vshra.s32 %v3350, 1
    %v3547 = vshra.s32 %v3351, 1
    %v3548 = vshra.s32 %v3352, 1
    %v3549 = vshra.s32 %v3353, 1
    %v3550 = vshra.s32 %v3354, 1
    %v3551 = vshra.s32 %v3355, 1
    %v3552 = vshra.s32 %v3356, 1
    %v3553 = vshra.s32 %v3357, 1
    %v3554 = vshra.s32 %v3358, 1
    %v3555 = vshra.s32 %v3359, 1
    %v3556 = vshra.s32 %v3360, 1
    %v3557 = vshra.s32 %v3361, 1
    %v3558 = vshra.s32 %v3362, 1
    %v3559 = vshra.s32 %v3363, 1
    %v3560 = vshra.s32 %v3364, 1
    %v3561 = vshra.s32 %v3365, 1
    %v3562 = vshra.s32 %v3366, 1
    %v3563 = vand.u32 %v3367, 2147483647
    %v3564 = vand.u32 %v3368, 2147483647
    %v3565 = vand.u32 %v3369, 2147483647
    %v3566 = vand.u32 %v3370, 2147483647
    %v3567 = vand.u32 %v3371, 2147483647
    %v3568 = vand.u32 %v3372, 2147483647
    %v3569 = vand.u32 %v3373, 2147483647
    %v3570 = vand.u32 %v3374, 2147483647
    %v3571 = vand.u32 %v3375, 2147483647
    %v3572 = vand.u32 %v3376, 2147483647
    %v3573 = vand.u32 %v3377, 2147483647
    %v3574 = vand.u32 %v3378, 2147483647
    %v3575 = vand.u32 %v3379, 2147483647
    %v3576 = vand.u32 %v3380, 2147483647
    %v3577 = vand.u32 %v3381, 2147483647
    %v3578 = vand.u32 %v3382, 2147483647
    %v3579 = vand.u32 %v3383, 2147483647
    %v3580 = vand.u32 %v3384, 2147483647
    %v3581 = vand.u32 %v3385, 2147483647
    %v3582 = vand.u32 %v3386, 2147483647
    %v3583 = vand.u32 %v3387, 2147483647
    %v3584 = vand.u32 %v3388, 2147483647
    %v3585 = vand.u32 %v3389, 2147483647
    %v3586 = vand.u32 %v3390, 2147483647
    %v3587 = vand.u32 %v3391, 2147483647
    %v3588 = vand.u32 %v3392, 2147483647
    %v3589 = vand.u32 %v3393, 2147483647
    %v3590 = vand.u32 %v3394, 2147483647
    %v3591 = vand.u32 %v3395, 2147483647
    %v3592 = vand.u32 %v3396, 2147483647
    %v3593 = vand.u32 %v3397, 2147483647
    %v3594 = vand.u32 %v3398, 2147483647
    %v3595 = vand.u32 %v3399, 2147483647
    %v3596 = vand.u32 %v3400, 2147483647
    %v3597 = vand.u32 %v3401, 2147483647
    %v3598 = vand.u32 %v3402, 2147483647
    %v3599 = vand.u32 %v3403, 2147483647
    %v3600 = vand.u32 %v3404, 2147483647
    %v3601 = vand.u32 %v3405, 2147483647
    %v3602 = vand.u32 %v3406, 2147483647
    %v3603 = vand.u32 %v3407, 2147483647
    %v3604 = vand.u32 %v3408, 2147483647
    %v3605 = vand.u32 %v3409, 2147483647
    %v3606 = vand.u32 %v3410, 2147483647
    %v3607 = vand.u32 %v3411, 2147483647
    %v3608 = vand.u32 %v3412, 2147483647
    %v3609 = vand.u32 %v3413, 2147483647
    %v3610 = vand.u32 %v3414, 2147483647
    %v3611 = vand.u32 %v3415, 2147483647
    %v3612 = vand.u32 %v3416, 2147483647
    %v3613 = vand.u32 %v3417, 2147483647
    %v3614 = vand.u32 %v3418, 2147483647
    %v3615 = vand.u32 %v3419, 2147483647
    %v3616 = vand.u32 %v3420, 2147483647
    %v3617 = vand.u32 %v3421, 2147483647
    %v3618 = vand.u32 %v3422, 2147483647
    %v3619 = vand.u32 %v3423, 2147483647
    %v3620 = vand.u32 %v3424, 2147483647
    %v3621 = vand.u32 %v3425, 2147483647
    %v3622 = vand.u32 %v3426, 2147483647
    %v3623 = vand.u32 %v3427, 2147483647
    %v3624 = vand.u32 %v3428, 2147483647
    %v3625 = vand.u32 %v3429, 2147483647
    %v3626 = vand.u32 %v3430, 2147483647
    %v3627 = vand.u32 %v3431, 2147483647
    %v3628 = vand.u32 %v3432, 2147483647
    %v3629 = vand.u32 %v3433, 2147483647
    %v3630 = vand.u32 %v3434, 2147483647
    %v3631 = vand.u32 %v3435, 2147483647
    %v3632 = vand.u32 %v3436, 2147483647
    %v3633 = vand.u32 %v3437, 2147483647
    %v3634 = vand.u32 %v3438, 2147483647
    %v3635 = vand.u32 %v3439, 2147483647
    %v3636 = vand.u32 %v3440, 2147483647
    %v3637 = vand.u32 %v3441, 2147483647
    %v3638 = vand.u32 %v3442, 2147483647
    %v3639 = vand.u32 %v3443, 2147483647
    %v3640 = vand.u32 %v3444, 2147483647
    %v3641 = vand.u32 %v3445, 2147483647
    %v3642 = vand.u32 %v3446, 2147483647
    %v3643 = vand.u32 %v3447, 2147483647
    %v3644 = vand.u32 %v3448, 2147483647
    %v3645 = vand.u32 %v3449, 2147483647
    %v3646 = vand.u32 %v3450, 2147483647
    %v3647 = vand.u32 %v3451, 2147483647
    %v3648 = vand.u32 %v3452, 2147483647
    %v3649 = vand.u32 %v3453, 2147483647
    %v3650 = vand.u32 %v3454, 2147483647
    %v3651 = vand.u32 %v3455, 2147483647
    %v3652 = vand.u32 %v3456, 2147483647
    %v3653 = vand.u32 %v3457, 2147483647
    %v3654 = vand.u32 %v3458, 2147483647
    %v3655 = vand.u32 %v3459, 2147483647
    %v3656 = vand.u32 %v3460, 2147483647
    %v3657 = vand.u32 %v3461, 2147483647
    %v3658 = vand.u32 %v3462, 2147483647
    %v3659 = vand.u32 %v3463, 2147483647
    %v3660 = vand.u32 %v3464, 2147483647
    %v3661 = vand.u32 %v3465, 2147483647
    %v3662 = vand.u32 %v3466, 2147483647
    %v3663 = vand.u32 %v3467, 2147483647
    %v3664 = vand.u32 %v3468, 2147483647
    %v3665 = vand.u32 %v3469, 2147483647
    %v3666 = vand.u32 %v3470, 2147483647
    %v3667 = vand.u32 %v3471, 2147483647
    %v3668 = vand.u32 %v3472, 2147483647
    %v3669 = vand.u32 %v3473, 2147483647
    %v3670 = vand.u32 %v3474, 2147483647
    %v3671 = vand.u32 %v3475, 2147483647
    %v3672 = vand.u32 %v3476, 2147483647
    %v3673 = vand.u32 %v3477, 2147483647
    %v3674 = vand.u32 %v3478, 2147483647
    %v3675 = vand.u32 %v3479, 2147483647
    %v3676 = vand.u32 %v3480, 2147483647
    %v3677 = vand.u32 %v3481, 2147483647
    %v3678 = vand.u32 %v3482, 2147483647
    %v3679 = vand.u32 %v3483, 2147483647
    %v3680 = vand.u32 %v3484, 2147483647
    %v3681 = vand.u32 %v3485, 2147483647
    %v3682 = vand.u32 %v3486, 2147483647
    %v3683 = vand.u32 %v3487, 2147483647
    %v3684 = vand.u32 %v3488, 2147483647
    %v3685 = vand.u32 %v3489, 2147483647
    %v3686 = vand.u32 %v3490, 2147483647
    %v3687 = vand.u32 %v3491, 2147483647
    %v3688 = vand.u32 %v3492, 2147483647
    %v3689 = vand.u32 %v3493, 2147483647
    %v3690 = vand.u32 %v3494, 2147483647
    %v3691 = vand.u32 %v3495, 2147483647
    %v3692 = vand.u32 %v3496, 2147483647
    %v3693 = vand.u32 %v3497, 2147483647
    %v3694 = vand.u32 %v3498, 2147483647
    %v3695 = vand.u32 %v3499, 2147483647
    %v3696 = vand.u32 %v3500, 2147483647
    %v3697 = vand.u32 %v3501, 2147483647
    %v3698 = vand.u32 %v3502, 2147483647
    %v3699 = vand.u32 %v3503, 2147483647
    %v3700 = vand.u32 %v3504, 2147483647
    %v3701 = vand.u32 %v3505, 2147483647
    %v3702 = vand.u32 %v3506, 2147483647
    %v3703 = vand.u32 %v3507, 2147483647
    %v3704 = vand.u32 %v3508, 2147483647
    %v3705 = vand.u32 %v3509, 2147483647
    %v3706 = vand.u32 %v3510, 2147483647
    %v3707 = vand.u32 %v3511, 2147483647
    %v3708 = vand.u32 %v3512, 2147483647
    %v3709 = vand.u32 %v3513, 2147483647
    %v3710 = vand.u32 %v3514, 2147483647
    %v3711 = vand.u32 %v3515, 2147483647
    %v3712 = vand.u32 %v3516, 2147483647
    %v3713 = vand.u32 %v3517, 2147483647
    %v3714 = vand.u32 %v3518, 2147483647
    %v3715 = vand.u32 %v3519, 2147483647
    %v3716 = vand.u32 %v3520, 2147483647
    %v3717 = vand.u32 %v3521, 2147483647
    %v3718 = vand.u32 %v3522, 2147483647
    %v3719 = vand.u32 %v3523, 2147483647
    %v3720 = vand.u32 %v3524, 2147483647
    %v3721 = vand.u32 %v3525, 2147483647
    %v3722 = vand.u32 %v3526, 2147483647
    %v3723 = vand.u32 %v3527, 2147483647
    %v3724 = vand.u32 %v3528, 2147483647
    %v3725 = vand.u32 %v3529, 2147483647
    %v3726 = vand.u32 %v3530, 2147483647
    %v3727 = vand.u32 %v3531, 2147483647
    %v3728 = vand.u32 %v3532, 2147483647
    %v3729 = vand.u32 %v3533, 2147483647
    %v3730 = vand.u32 %v3534, 2147483647
    %v3731 = vand.u32 %v3535, 2147483647
    %v3732 = vand.u32 %v3536, 2147483647
    %v3733 = vand.u32 %v3537, 2147483647
    %v3734 = vand.u32 %v3538, 2147483647
    %v3735 = vand.u32 %v3539, 2147483647
    %v3736 = vand.u32 %v3540, 2147483647
    %v3737 = vand.u32 %v3541, 2147483647
    %v3738 = vand.u32 %v3542, 2147483647
    %v3739 = vand.u32 %v3543, 2147483647
    %v3740 = vand.u32 %v3544, 2147483647
    %v3741 = vand.u32 %v3545, 2147483647
    %v3742 = vand.u32 %v3546, 2147483647
    %v3743 = vand.u32 %v3547, 2147483647
    %v3744 = vand.u32 %v3548, 2147483647
    %v3745 = vand.u32 %v3549, 2147483647
    %v3746 = vand.u32 %v3550, 2147483647
    %v3747 = vand.u32 %v3551, 2147483647
    %v3748 = vand.u32 %v3552, 2147483647
    %v3749 = vand.u32 %v3553, 2147483647
    %v3750 = vand.u32 %v3554, 2147483647
    %v3751 = vand.u32 %v3555, 2147483647
    %v3752 = vand.u32 %v3556, 2147483647
    %v3753 = vand.u32 %v3557, 2147483647
    %v3754 = vand.u32 %v3558, 2147483647
    %v3755 = vand.u32 %v3559, 2147483647
    %v3756 = vand.u32 %v3560, 2147483647
    %v3757 = vand.u32 %v3561, 2147483647
    %v3758 = vand.u32 %v3562, 2147483647
    %vm3759 = vcmp.ge.s32.totalorder %v3563, 214748365
    %vm3760 = vcmp.ge.s32.totalorder %v3564, 214748365
    %vm3761 = vcmp.ge.s32.totalorder %v3565, 214748365
    %vm3762 = vcmp.ge.s32.totalorder %v3566, 214748365
    %vm3763 = vcmp.ge.s32.totalorder %v3567, 214748365
    %vm3764 = vcmp.ge.s32.totalorder %v3568, 214748365
    %vm3765 = vcmp.ge.s32.totalorder %v3569, 214748365
    %vm3766 = vcmp.ge.s32.totalorder %v3570, 214748365
    %vm3767 = vcmp.ge.s32.totalorder %v3571, 214748365
    %vm3768 = vcmp.ge.s32.totalorder %v3572, 214748365
    %vm3769 = vcmp.ge.s32.totalorder %v3573, 214748365
    %vm3770 = vcmp.ge.s32.totalorder %v3574, 214748365
    %vm3771 = vcmp.ge.s32.totalorder %v3575, 214748365
    %vm3772 = vcmp.ge.s32.totalorder %v3576, 214748365
    %vm3773 = vcmp.ge.s32.totalorder %v3577, 214748365
    %vm3774 = vcmp.ge.s32.totalorder %v3578, 214748365
    %vm3775 = vcmp.ge.s32.totalorder %v3579, 214748365
    %vm3776 = vcmp.ge.s32.totalorder %v3580, 214748365
    %vm3777 = vcmp.ge.s32.totalorder %v3581, 214748365
    %vm3778 = vcmp.ge.s32.totalorder %v3582, 214748365
    %vm3779 = vcmp.ge.s32.totalorder %v3583, 214748365
    %vm3780 = vcmp.ge.s32.totalorder %v3584, 214748365
    %vm3781 = vcmp.ge.s32.totalorder %v3585, 214748365
    %vm3782 = vcmp.ge.s32.totalorder %v3586, 214748365
    %vm3783 = vcmp.ge.s32.totalorder %v3587, 214748365
    %vm3784 = vcmp.ge.s32.totalorder %v3588, 214748365
    %vm3785 = vcmp.ge.s32.totalorder %v3589, 214748365
    %vm3786 = vcmp.ge.s32.totalorder %v3590, 214748365
    %vm3787 = vcmp.ge.s32.totalorder %v3591, 214748365
    %vm3788 = vcmp.ge.s32.totalorder %v3592, 214748365
    %vm3789 = vcmp.ge.s32.totalorder %v3593, 214748365
    %vm3790 = vcmp.ge.s32.totalorder %v3594, 214748365
    %vm3791 = vcmp.ge.s32.totalorder %v3595, 214748365
    %vm3792 = vcmp.ge.s32.totalorder %v3596, 214748365
    %vm3793 = vcmp.ge.s32.totalorder %v3597, 214748365
    %vm3794 = vcmp.ge.s32.totalorder %v3598, 214748365
    %vm3795 = vcmp.ge.s32.totalorder %v3599, 214748365
    %vm3796 = vcmp.ge.s32.totalorder %v3600, 214748365
    %vm3797 = vcmp.ge.s32.totalorder %v3601, 214748365
    %vm3798 = vcmp.ge.s32.totalorder %v3602, 214748365
    %vm3799 = vcmp.ge.s32.totalorder %v3603, 214748365
    %vm3800 = vcmp.ge.s32.totalorder %v3604, 214748365
    %vm3801 = vcmp.ge.s32.totalorder %v3605, 214748365
    %vm3802 = vcmp.ge.s32.totalorder %v3606, 214748365
    %vm3803 = vcmp.ge.s32.totalorder %v3607, 214748365
    %vm3804 = vcmp.ge.s32.totalorder %v3608, 214748365
    %vm3805 = vcmp.ge.s32.totalorder %v3609, 214748365
    %vm3806 = vcmp.ge.s32.totalorder %v3610, 214748365
    %vm3807 = vcmp.ge.s32.totalorder %v3611, 214748365
    %vm3808 = vcmp.ge.s32.totalorder %v3612, 214748365
    %vm3809 = vcmp.ge.s32.totalorder %v3613, 214748365
    %vm3810 = vcmp.ge.s32.totalorder %v3614, 214748365
    %vm3811 = vcmp.ge.s32.totalorder %v3615, 214748365
    %vm3812 = vcmp.ge.s32.totalorder %v3616, 214748365
    %vm3813 = vcmp.ge.s32.totalorder %v3617, 214748365
    %vm3814 = vcmp.ge.s32.totalorder %v3618, 214748365
    %vm3815 = vcmp.ge.s32.totalorder %v3619, 214748365
    %vm3816 = vcmp.ge.s32.totalorder %v3620, 214748365
    %vm3817 = vcmp.ge.s32.totalorder %v3621, 214748365
    %vm3818 = vcmp.ge.s32.totalorder %v3622, 214748365
    %vm3819 = vcmp.ge.s32.totalorder %v3623, 214748365
    %vm3820 = vcmp.ge.s32.totalorder %v3624, 214748365
    %vm3821 = vcmp.ge.s32.totalorder %v3625, 214748365
    %vm3822 = vcmp.ge.s32.totalorder %v3626, 214748365
    %vm3823 = vcmp.ge.s32.totalorder %v3627, 214748365
    %vm3824 = vcmp.ge.s32.totalorder %v3628, 214748365
    %vm3825 = vcmp.ge.s32.totalorder %v3629, 214748365
    %vm3826 = vcmp.ge.s32.totalorder %v3630, 214748365
    %vm3827 = vcmp.ge.s32.totalorder %v3631, 214748365
    %vm3828 = vcmp.ge.s32.totalorder %v3632, 214748365
    %vm3829 = vcmp.ge.s32.totalorder %v3633, 214748365
    %vm3830 = vcmp.ge.s32.totalorder %v3634, 214748365
    %vm3831 = vcmp.ge.s32.totalorder %v3635, 214748365
    %vm3832 = vcmp.ge.s32.totalorder %v3636, 214748365
    %vm3833 = vcmp.ge.s32.totalorder %v3637, 214748365
    %vm3834 = vcmp.ge.s32.totalorder %v3638, 214748365
    %vm3835 = vcmp.ge.s32.totalorder %v3639, 214748365
    %vm3836 = vcmp.ge.s32.totalorder %v3640, 214748365
    %vm3837 = vcmp.ge.s32.totalorder %v3641, 214748365
    %vm3838 = vcmp.ge.s32.totalorder %v3642, 214748365
    %vm3839 = vcmp.ge.s32.totalorder %v3643, 214748365
    %vm3840 = vcmp.ge.s32.totalorder %v3644, 214748365
    %vm3841 = vcmp.ge.s32.totalorder %v3645, 214748365
    %vm3842 = vcmp.ge.s32.totalorder %v3646, 214748365
    %vm3843 = vcmp.ge.s32.totalorder %v3647, 214748365
    %vm3844 = vcmp.ge.s32.totalorder %v3648, 214748365
    %vm3845 = vcmp.ge.s32.totalorder %v3649, 214748365
    %vm3846 = vcmp.ge.s32.totalorder %v3650, 214748365
    %vm3847 = vcmp.ge.s32.totalorder %v3651, 214748365
    %vm3848 = vcmp.ge.s32.totalorder %v3652, 214748365
    %vm3849 = vcmp.ge.s32.totalorder %v3653, 214748365
    %vm3850 = vcmp.ge.s32.totalorder %v3654, 214748365
    %vm3851 = vcmp.ge.s32.totalorder %v3655, 214748365
    %vm3852 = vcmp.ge.s32.totalorder %v3656, 214748365
    %vm3853 = vcmp.ge.s32.totalorder %v3657, 214748365
    %vm3854 = vcmp.ge.s32.totalorder %v3658, 214748365
    %vm3855 = vcmp.ge.s32.totalorder %v3659, 214748365
    %vm3856 = vcmp.ge.s32.totalorder %v3660, 214748365
    %vm3857 = vcmp.ge.s32.totalorder %v3661, 214748365
    %vm3858 = vcmp.ge.s32.totalorder %v3662, 214748365
    %vm3859 = vcmp.ge.s32.totalorder %v3663, 214748365
    %vm3860 = vcmp.ge.s32.totalorder %v3664, 214748365
    %vm3861 = vcmp.ge.s32.totalorder %v3665, 214748365
    %vm3862 = vcmp.ge.s32.totalorder %v3666, 214748365
    %vm3863 = vcmp.ge.s32.totalorder %v3667, 214748365
    %vm3864 = vcmp.ge.s32.totalorder %v3668, 214748365
    %vm3865 = vcmp.ge.s32.totalorder %v3669, 214748365
    %vm3866 = vcmp.ge.s32.totalorder %v3670, 214748365
    %vm3867 = vcmp.ge.s32.totalorder %v3671, 214748365
    %vm3868 = vcmp.ge.s32.totalorder %v3672, 214748365
    %vm3869 = vcmp.ge.s32.totalorder %v3673, 214748365
    %vm3870 = vcmp.ge.s32.totalorder %v3674, 214748365
    %vm3871 = vcmp.ge.s32.totalorder %v3675, 214748365
    %vm3872 = vcmp.ge.s32.totalorder %v3676, 214748365
    %vm3873 = vcmp.ge.s32.totalorder %v3677, 214748365
    %vm3874 = vcmp.ge.s32.totalorder %v3678, 214748365
    %vm3875 = vcmp.ge.s32.totalorder %v3679, 214748365
    %vm3876 = vcmp.ge.s32.totalorder %v3680, 214748365
    %vm3877 = vcmp.ge.s32.totalorder %v3681, 214748365
    %vm3878 = vcmp.ge.s32.totalorder %v3682, 214748365
    %vm3879 = vcmp.ge.s32.totalorder %v3683, 214748365
    %vm3880 = vcmp.ge.s32.totalorder %v3684, 214748365
    %vm3881 = vcmp.ge.s32.totalorder %v3685, 214748365
    %vm3882 = vcmp.ge.s32.totalorder %v3686, 214748365
    %vm3883 = vcmp.ge.s32.totalorder %v3687, 214748365
    %vm3884 = vcmp.ge.s32.totalorder %v3688, 214748365
    %vm3885 = vcmp.ge.s32.totalorder %v3689, 214748365
    %vm3886 = vcmp.ge.s32.totalorder %v3690, 214748365
    %vm3887 = vcmp.ge.s32.totalorder %v3691, 214748365
    %vm3888 = vcmp.ge.s32.totalorder %v3692, 214748365
    %vm3889 = vcmp.ge.s32.totalorder %v3693, 214748365
    %vm3890 = vcmp.ge.s32.totalorder %v3694, 214748365
    %vm3891 = vcmp.ge.s32.totalorder %v3695, 214748365
    %vm3892 = vcmp.ge.s32.totalorder %v3696, 214748365
    %vm3893 = vcmp.ge.s32.totalorder %v3697, 214748365
    %vm3894 = vcmp.ge.s32.totalorder %v3698, 214748365
    %vm3895 = vcmp.ge.s32.totalorder %v3699, 214748365
    %vm3896 = vcmp.ge.s32.totalorder %v3700, 214748365
    %vm3897 = vcmp.ge.s32.totalorder %v3701, 214748365
    %vm3898 = vcmp.ge.s32.totalorder %v3702, 214748365
    %vm3899 = vcmp.ge.s32.totalorder %v3703, 214748365
    %vm3900 = vcmp.ge.s32.totalorder %v3704, 214748365
    %vm3901 = vcmp.ge.s32.totalorder %v3705, 214748365
    %vm3902 = vcmp.ge.s32.totalorder %v3706, 214748365
    %vm3903 = vcmp.ge.s32.totalorder %v3707, 214748365
    %vm3904 = vcmp.ge.s32.totalorder %v3708, 214748365
    %vm3905 = vcmp.ge.s32.totalorder %v3709, 214748365
    %vm3906 = vcmp.ge.s32.totalorder %v3710, 214748365
    %vm3907 = vcmp.ge.s32.totalorder %v3711, 214748365
    %vm3908 = vcmp.ge.s32.totalorder %v3712, 214748365
    %vm3909 = vcmp.ge.s32.totalorder %v3713, 214748365
    %vm3910 = vcmp.ge.s32.totalorder %v3714, 214748365
    %vm3911 = vcmp.ge.s32.totalorder %v3715, 214748365
    %vm3912 = vcmp.ge.s32.totalorder %v3716, 214748365
    %vm3913 = vcmp.ge.s32.totalorder %v3717, 214748365
    %vm3914 = vcmp.ge.s32.totalorder %v3718, 214748365
    %vm3915 = vcmp.ge.s32.totalorder %v3719, 214748365
    %vm3916 = vcmp.ge.s32.totalorder %v3720, 214748365
    %vm3917 = vcmp.ge.s32.totalorder %v3721, 214748365
    %vm3918 = vcmp.ge.s32.totalorder %v3722, 214748365
    %vm3919 = vcmp.ge.s32.totalorder %v3723, 214748365
    %vm3920 = vcmp.ge.s32.totalorder %v3724, 214748365
    %vm3921 = vcmp.ge.s32.totalorder %v3725, 214748365
    %vm3922 = vcmp.ge.s32.totalorder %v3726, 214748365
    %vm3923 = vcmp.ge.s32.totalorder %v3727, 214748365
    %vm3924 = vcmp.ge.s32.totalorder %v3728, 214748365
    %vm3925 = vcmp.ge.s32.totalorder %v3729, 214748365
    %vm3926 = vcmp.ge.s32.totalorder %v3730, 214748365
    %vm3927 = vcmp.ge.s32.totalorder %v3731, 214748365
    %vm3928 = vcmp.ge.s32.totalorder %v3732, 214748365
    %vm3929 = vcmp.ge.s32.totalorder %v3733, 214748365
    %vm3930 = vcmp.ge.s32.totalorder %v3734, 214748365
    %vm3931 = vcmp.ge.s32.totalorder %v3735, 214748365
    %vm3932 = vcmp.ge.s32.totalorder %v3736, 214748365
    %vm3933 = vcmp.ge.s32.totalorder %v3737, 214748365
    %vm3934 = vcmp.ge.s32.totalorder %v3738, 214748365
    %vm3935 = vcmp.ge.s32.totalorder %v3739, 214748365
    %vm3936 = vcmp.ge.s32.totalorder %v3740, 214748365
    %vm3937 = vcmp.ge.s32.totalorder %v3741, 214748365
    %vm3938 = vcmp.ge.s32.totalorder %v3742, 214748365
    %vm3939 = vcmp.ge.s32.totalorder %v3743, 214748365
    %vm3940 = vcmp.ge.s32.totalorder %v3744, 214748365
    %vm3941 = vcmp.ge.s32.totalorder %v3745, 214748365
    %vm3942 = vcmp.ge.s32.totalorder %v3746, 214748365
    %vm3943 = vcmp.ge.s32.totalorder %v3747, 214748365
    %vm3944 = vcmp.ge.s32.totalorder %v3748, 214748365
    %vm3945 = vcmp.ge.s32.totalorder %v3749, 214748365
    %vm3946 = vcmp.ge.s32.totalorder %v3750, 214748365
    %vm3947 = vcmp.ge.s32.totalorder %v3751, 214748365
    %vm3948 = vcmp.ge.s32.totalorder %v3752, 214748365
    %vm3949 = vcmp.ge.s32.totalorder %v3753, 214748365
    %vm3950 = vcmp.ge.s32.totalorder %v3754, 214748365
    %vm3951 = vcmp.ge.s32.totalorder %v3755, 214748365
    %vm3952 = vcmp.ge.s32.totalorder %v3756, 214748365
    %vm3953 = vcmp.ge.s32.totalorder %v3757, 214748365
    %vm3954 = vcmp.ge.s32.totalorder %v3758, 214748365
    %v3955 = vld [vmem:[#allocation3] sm:$0xff]
    %v3956 = vld [vmem:[#allocation3 + $0x8] sm:$0xff]
    %v3957 = vld [vmem:[#allocation3 + $0x10] sm:$0xff]
    %v3958 = vld [vmem:[#allocation3 + $0x18] sm:$0xff]
    %v3959 = vld [vmem:[#allocation3 + $0x20] sm:$0xff]
    %v3960 = vld [vmem:[#allocation3 + $0x28] sm:$0xff]
    %v3961 = vld [vmem:[#allocation3 + $0x30] sm:$0xff]
    %v3962 = vld [vmem:[#allocation3 + $0x38] sm:$0xff]
    %v3963 = vld [vmem:[#allocation3 + $0x40] sm:$0xff]
    %v3964 = vld [vmem:[#allocation3 + $0x48] sm:$0xff]
    %v3965 = vld [vmem:[#allocation3 + $0x50] sm:$0xff]
    %v3966 = vld [vmem:[#allocation3 + $0x58] sm:$0xff]
    %v3967 = vld [vmem:[#allocation3 + $0x60] sm:$0xff]
    %v3968 = vld [vmem:[#allocation3 + $0x68] sm:$0xff]
    %v3969 = vld [vmem:[#allocation3 + $0x70] sm:$0xff]
    %v3970 = vld [vmem:[#allocation3 + $0x78] sm:$0xff]
    %v3971 = vld [vmem:[#allocation3 + $0x80] sm:$0xff]
    %v3972 = vld [vmem:[#allocation3 + $0x88] sm:$0xff]
    %v3973 = vld [vmem:[#allocation3 + $0x90] sm:$0xff]
    %v3974 = vld [vmem:[#allocation3 + $0x98] sm:$0xff]
    %v3975 = vld [vmem:[#allocation3 + $0xa0] sm:$0xff]
    %v3976 = vld [vmem:[#allocation3 + $0xa8] sm:$0xff]
    %v3977 = vld [vmem:[#allocation3 + $0xb0] sm:$0xff]
    %v3978 = vld [vmem:[#allocation3 + $0xb8] sm:$0xff]
    %v3979 = vld [vmem:[#allocation3 + $0xc0] sm:$0xff]
    %v3980 = vld [vmem:[#allocation3 + $0xc8] sm:$0xff]
    %v3981 = vld [vmem:[#allocation3 + $0xd0] sm:$0xff]
    %v3982 = vld [vmem:[#allocation3 + $0xd8] sm:$0xff]
    %v3983 = vld [vmem:[#allocation3 + $0xe0] sm:$0xff]
    %v3984 = vld [vmem:[#allocation3 + $0xe8] sm:$0xff]
    %v3985 = vld [vmem:[#allocation3 + $0xf0] sm:$0xff]
    %v3986 = vld [vmem:[#allocation3 + $0xf8] sm:$0xff]
    %v3987 = vld [vmem:[#allocation3 + $0x100] sm:$0xff]
    %v3988 = vld [vmem:[#allocation3 + $0x108] sm:$0xff]
    %v3989 = vld [vmem:[#allocation3 + $0x110] sm:$0xff]
    %v3990 = vld [vmem:[#allocation3 + $0x118] sm:$0xff]
    %v3991 = vld [vmem:[#allocation3 + $0x120] sm:$0xff]
    %v3992 = vld [vmem:[#allocation3 + $0x128] sm:$0xff]
    %v3993 = vld [vmem:[#allocation3 + $0x130] sm:$0xff]
    %v3994 = vld [vmem:[#allocation3 + $0x138] sm:$0xff]
    %v3995 = vld [vmem:[#allocation3 + $0x140] sm:$0xff]
    %v3996 = vld [vmem:[#allocation3 + $0x148] sm:$0xff]
    %v3997 = vld [vmem:[#allocation3 + $0x150] sm:$0xff]
    %v3998 = vld [vmem:[#allocation3 + $0x158] sm:$0xff]
    %v3999 = vld [vmem:[#allocation3 + $0x160] sm:$0xff]
    %v4000 = vld [vmem:[#allocation3 + $0x168] sm:$0xff]
    %v4001 = vld [vmem:[#allocation3 + $0x170] sm:$0xff]
    %v4002 = vld [vmem:[#allocation3 + $0x178] sm:$0xff]
    %v4003 = vld [vmem:[#allocation3 + $0x180] sm:$0xff]
    %v4004 = vld [vmem:[#allocation3 + $0x188] sm:$0xff]
    %v4005 = vld [vmem:[#allocation3 + $0x190] sm:$0xff]
    %v4006 = vld [vmem:[#allocation3 + $0x198] sm:$0xff]
    %v4007 = vld [vmem:[#allocation3 + $0x1a0] sm:$0xff]
    %v4008 = vld [vmem:[#allocation3 + $0x1a8] sm:$0xff]
    %v4009 = vld [vmem:[#allocation3 + $0x1b0] sm:$0xff]
    %v4010 = vld [vmem:[#allocation3 + $0x1b8] sm:$0xff]
    %v4011 = vld [vmem:[#allocation3 + $0x1c0] sm:$0xff]
    %v4012 = vld [vmem:[#allocation3 + $0x1c8] sm:$0xff]
    %v4013 = vld [vmem:[#allocation3 + $0x1d0] sm:$0xff]
    %v4014 = vld [vmem:[#allocation3 + $0x1d8] sm:$0xff]
    %v4015 = vld [vmem:[#allocation3 + $0x1e0] sm:$0xff]
    %v4016 = vld [vmem:[#allocation3 + $0x1e8] sm:$0xff]
    %v4017 = vld [vmem:[#allocation3 + $0x1f0] sm:$0xff]
    %v4018 = vld [vmem:[#allocation3 + $0x1f8] sm:$0xff]
    %v4019 = vld [vmem:[#allocation3 + $0x200] sm:$0xff]
    %v4020 = vld [vmem:[#allocation3 + $0x208] sm:$0xff]
    %v4021 = vld [vmem:[#allocation3 + $0x210] sm:$0xff]
    %v4022 = vld [vmem:[#allocation3 + $0x218] sm:$0xff]
    %v4023 = vld [vmem:[#allocation3 + $0x220] sm:$0xff]
    %v4024 = vld [vmem:[#allocation3 + $0x228] sm:$0xff]
    %v4025 = vld [vmem:[#allocation3 + $0x230] sm:$0xff]
    %v4026 = vld [vmem:[#allocation3 + $0x238] sm:$0xff]
    %v4027 = vld [vmem:[#allocation3 + $0x240] sm:$0xff]
    %v4028 = vld [vmem:[#allocation3 + $0x248] sm:$0xff]
    %v4029 = vld [vmem:[#allocation3 + $0x250] sm:$0xff]
    %v4030 = vld [vmem:[#allocation3 + $0x258] sm:$0xff]
    %v4031 = vld [vmem:[#allocation3 + $0x260] sm:$0xff]
    %v4032 = vld [vmem:[#allocation3 + $0x268] sm:$0xff]
    %v4033 = vld [vmem:[#allocation3 + $0x270] sm:$0xff]
    %v4034 = vld [vmem:[#allocation3 + $0x278] sm:$0xff]
    %v4035 = vld [vmem:[#allocation3 + $0x280] sm:$0xff]
    %v4036 = vld [vmem:[#allocation3 + $0x288] sm:$0xff]
    %v4037 = vld [vmem:[#allocation3 + $0x290] sm:$0xff]
    %v4038 = vld [vmem:[#allocation3 + $0x298] sm:$0xff]
    %v4039 = vld [vmem:[#allocation3 + $0x2a0] sm:$0xff]
    %v4040 = vld [vmem:[#allocation3 + $0x2a8] sm:$0xff]
    %v4041 = vld [vmem:[#allocation3 + $0x2b0] sm:$0xff]
    %v4042 = vld [vmem:[#allocation3 + $0x2b8] sm:$0xff]
    %v4043 = vld [vmem:[#allocation3 + $0x2c0] sm:$0xff]
    %v4044 = vld [vmem:[#allocation3 + $0x2c8] sm:$0xff]
    %v4045 = vld [vmem:[#allocation3 + $0x2d0] sm:$0xff]
    %v4046 = vld [vmem:[#allocation3 + $0x2d8] sm:$0xff]
    %v4047 = vld [vmem:[#allocation3 + $0x2e0] sm:$0xff]
    %v4048 = vld [vmem:[#allocation3 + $0x2e8] sm:$0xff]
    %v4049 = vld [vmem:[#allocation3 + $0x2f0] sm:$0xff]
    %v4050 = vld [vmem:[#allocation3 + $0x2f8] sm:$0xff]
    %v4051 = vld [vmem:[#allocation3 + $0x300] sm:$0xff]
    %v4052 = vld [vmem:[#allocation3 + $0x308] sm:$0xff]
    %v4053 = vld [vmem:[#allocation3 + $0x310] sm:$0xff]
    %v4054 = vld [vmem:[#allocation3 + $0x318] sm:$0xff]
    %v4055 = vld [vmem:[#allocation3 + $0x320] sm:$0xff]
    %v4056 = vld [vmem:[#allocation3 + $0x328] sm:$0xff]
    %v4057 = vld [vmem:[#allocation3 + $0x330] sm:$0xff]
    %v4058 = vld [vmem:[#allocation3 + $0x338] sm:$0xff]
    %v4059 = vld [vmem:[#allocation3 + $0x340] sm:$0xff]
    %v4060 = vld [vmem:[#allocation3 + $0x348] sm:$0xff]
    %v4061 = vld [vmem:[#allocation3 + $0x350] sm:$0xff]
    %v4062 = vld [vmem:[#allocation3 + $0x358] sm:$0xff]
    %v4063 = vld [vmem:[#allocation3 + $0x360] sm:$0xff]
    %v4064 = vld [vmem:[#allocation3 + $0x368] sm:$0xff]
    %v4065 = vld [vmem:[#allocation3 + $0x370] sm:$0xff]
    %v4066 = vld [vmem:[#allocation3 + $0x378] sm:$0xff]
    %v4067 = vld [vmem:[#allocation3 + $0x380] sm:$0xff]
    %v4068 = vld [vmem:[#allocation3 + $0x388] sm:$0xff]
    %v4069 = vld [vmem:[#allocation3 + $0x390] sm:$0xff]
    %v4070 = vld [vmem:[#allocation3 + $0x398] sm:$0xff]
    %v4071 = vld [vmem:[#allocation3 + $0x3a0] sm:$0xff]
    %v4072 = vld [vmem:[#allocation3 + $0x3a8] sm:$0xff]
    %v4073 = vld [vmem:[#allocation3 + $0x3b0] sm:$0xff]
    %v4074 = vld [vmem:[#allocation3 + $0x3b8] sm:$0xff]
    %v4075 = vld [vmem:[#allocation3 + $0x3c0] sm:$0xff]
    %v4076 = vld [vmem:[#allocation3 + $0x3c8] sm:$0xff]
    %v4077 = vld [vmem:[#allocation3 + $0x3d0] sm:$0xff]
    %v4078 = vld [vmem:[#allocation3 + $0x3d8] sm:$0xff]
    %v4079 = vld [vmem:[#allocation3 + $0x3e0] sm:$0xff]
    %v4080 = vld [vmem:[#allocation3 + $0x3e8] sm:$0xff]
    %v4081 = vld [vmem:[#allocation3 + $0x3f0] sm:$0xff]
    %v4082 = vld [vmem:[#allocation3 + $0x3f8] sm:$0xff]
    %v4083 = vld [vmem:[#allocation3 + $0x400] sm:$0xff]
    %v4084 = vld [vmem:[#allocation3 + $0x408] sm:$0xff]
    %v4085 = vld [vmem:[#allocation3 + $0x410] sm:$0xff]
    %v4086 = vld [vmem:[#allocation3 + $0x418] sm:$0xff]
    %v4087 = vld [vmem:[#allocation3 + $0x420] sm:$0xff]
    %v4088 = vld [vmem:[#allocation3 + $0x428] sm:$0xff]
    %v4089 = vld [vmem:[#allocation3 + $0x430] sm:$0xff]
    %v4090 = vld [vmem:[#allocation3 + $0x438] sm:$0xff]
    %v4091 = vld [vmem:[#allocation3 + $0x440] sm:$0xff]
    %v4092 = vld [vmem:[#allocation3 + $0x448] sm:$0xff]
    %v4093 = vld [vmem:[#allocation3 + $0x450] sm:$0xff]
    %v4094 = vld [vmem:[#allocation3 + $0x458] sm:$0xff]
    %v4095 = vld [vmem:[#allocation3 + $0x460] sm:$0xff]
    %v4096 = vld [vmem:[#allocation3 + $0x468] sm:$0xff]
    %v4097 = vld [vmem:[#allocation3 + $0x470] sm:$0xff]
    %v4098 = vld [vmem:[#allocation3 + $0x478] sm:$0xff]
    %v4099 = vld [vmem:[#allocation3 + $0x480] sm:$0xff]
    %v4100 = vld [vmem:[#allocation3 + $0x488] sm:$0xff]
    %v4101 = vld [vmem:[#allocation3 + $0x490] sm:$0xff]
    %v4102 = vld [vmem:[#allocation3 + $0x498] sm:$0xff]
    %v4103 = vld [vmem:[#allocation3 + $0x4a0] sm:$0xff]
    %v4104 = vld [vmem:[#allocation3 + $0x4a8] sm:$0xff]
    %v4105 = vld [vmem:[#allocation3 + $0x4b0] sm:$0xff]
    %v4106 = vld [vmem:[#allocation3 + $0x4b8] sm:$0xff]
    %v4107 = vld [vmem:[#allocation3 + $0x4c0] sm:$0xff]
    %v4108 = vld [vmem:[#allocation3 + $0x4c8] sm:$0xff]
    %v4109 = vld [vmem:[#allocation3 + $0x4d0] sm:$0xff]
    %v4110 = vld [vmem:[#allocation3 + $0x4d8] sm:$0xff]
    %v4111 = vld [vmem:[#allocation3 + $0x4e0] sm:$0xff]
    %v4112 = vld [vmem:[#allocation3 + $0x4e8] sm:$0xff]
    %v4113 = vld [vmem:[#allocation3 + $0x4f0] sm:$0xff]
    %v4114 = vld [vmem:[#allocation3 + $0x4f8] sm:$0xff]
    %v4115 = vld [vmem:[#allocation3 + $0x500] sm:$0xff]
    %v4116 = vld [vmem:[#allocation3 + $0x508] sm:$0xff]
    %v4117 = vld [vmem:[#allocation3 + $0x510] sm:$0xff]
    %v4118 = vld [vmem:[#allocation3 + $0x518] sm:$0xff]
    %v4119 = vld [vmem:[#allocation3 + $0x520] sm:$0xff]
    %v4120 = vld [vmem:[#allocation3 + $0x528] sm:$0xff]
    %v4121 = vld [vmem:[#allocation3 + $0x530] sm:$0xff]
    %v4122 = vld [vmem:[#allocation3 + $0x538] sm:$0xff]
    %v4123 = vld [vmem:[#allocation3 + $0x540] sm:$0xff]
    %v4124 = vld [vmem:[#allocation3 + $0x548] sm:$0xff]
    %v4125 = vld [vmem:[#allocation3 + $0x550] sm:$0xff]
    %v4126 = vld [vmem:[#allocation3 + $0x558] sm:$0xff]
    %v4127 = vld [vmem:[#allocation3 + $0x560] sm:$0xff]
    %v4128 = vld [vmem:[#allocation3 + $0x568] sm:$0xff]
    %v4129 = vld [vmem:[#allocation3 + $0x570] sm:$0xff]
    %v4130 = vld [vmem:[#allocation3 + $0x578] sm:$0xff]
    %v4131 = vld [vmem:[#allocation3 + $0x580] sm:$0xff]
    %v4132 = vld [vmem:[#allocation3 + $0x588] sm:$0xff]
    %v4133 = vld [vmem:[#allocation3 + $0x590] sm:$0xff]
    %v4134 = vld [vmem:[#allocation3 + $0x598] sm:$0xff]
    %v4135 = vld [vmem:[#allocation3 + $0x5a0] sm:$0xff]
    %v4136 = vld [vmem:[#allocation3 + $0x5a8] sm:$0xff]
    %v4137 = vld [vmem:[#allocation3 + $0x5b0] sm:$0xff]
    %v4138 = vld [vmem:[#allocation3 + $0x5b8] sm:$0xff]
    %v4139 = vld [vmem:[#allocation3 + $0x5c0] sm:$0xff]
    %v4140 = vld [vmem:[#allocation3 + $0x5c8] sm:$0xff]
    %v4141 = vld [vmem:[#allocation3 + $0x5d0] sm:$0xff]
    %v4142 = vld [vmem:[#allocation3 + $0x5d8] sm:$0xff]
    %v4143 = vld [vmem:[#allocation3 + $0x5e0] sm:$0xff]
    %v4144 = vld [vmem:[#allocation3 + $0x5e8] sm:$0xff]
    %v4145 = vld [vmem:[#allocation3 + $0x5f0] sm:$0xff]
    %v4146 = vld [vmem:[#allocation3 + $0x5f8] sm:$0xff]
    %v4147 = vld [vmem:[#allocation3 + $0x600] sm:$0xff]
    %v4148 = vld [vmem:[#allocation3 + $0x608] sm:$0xff]
    %v4149 = vld [vmem:[#allocation3 + $0x610] sm:$0xff]
    %v4150 = vld [vmem:[#allocation3 + $0x618] sm:$0xff]
    %v4151 = vmul.f32 %v3955, 1.1111112
    %v4152 = vmul.f32 %v3956, 1.1111112
    %v4153 = vmul.f32 %v3957, 1.1111112
    %v4154 = vmul.f32 %v3958, 1.1111112
    %v4155 = vmul.f32 %v3959, 1.1111112
    %v4156 = vmul.f32 %v3960, 1.1111112
    %v4157 = vmul.f32 %v3961, 1.1111112
    %v4158 = vmul.f32 %v3962, 1.1111112
    %v4159 = vmul.f32 %v3963, 1.1111112
    %v4160 = vmul.f32 %v3964, 1.1111112
    %v4161 = vmul.f32 %v3965, 1.1111112
    %v4162 = vmul.f32 %v3966, 1.1111112
    %v4163 = vmul.f32 %v3967, 1.1111112
    %v4164 = vmul.f32 %v3968, 1.1111112
    %v4165 = vmul.f32 %v3969, 1.1111112
    %v4166 = vmul.f32 %v3970, 1.1111112
    %v4167 = vmul.f32 %v3971, 1.1111112
    %v4168 = vmul.f32 %v3972, 1.1111112
    %v4169 = vmul.f32 %v3973, 1.1111112
    %v4170 = vmul.f32 %v3974, 1.1111112
    %v4171 = vmul.f32 %v3975, 1.1111112
    %v4172 = vmul.f32 %v3976, 1.1111112
    %v4173 = vmul.f32 %v3977, 1.1111112
    %v4174 = vmul.f32 %v3978, 1.1111112
    %v4175 = vmul.f32 %v3979, 1.1111112
    %v4176 = vmul.f32 %v3980, 1.1111112
    %v4177 = vmul.f32 %v3981, 1.1111112
    %v4178 = vmul.f32 %v3982, 1.1111112
    %v4179 = vmul.f32 %v3983, 1.1111112
    %v4180 = vmul.f32 %v3984, 1.1111112
    %v4181 = vmul.f32 %v3985, 1.1111112
    %v4182 = vmul.f32 %v3986, 1.1111112
    %v4183 = vmul.f32 %v3987, 1.1111112
    %v4184 = vmul.f32 %v3988, 1.1111112
    %v4185 = vmul.f32 %v3989, 1.1111112
    %v4186 = vmul.f32 %v3990, 1.1111112
    %v4187 = vmul.f32 %v3991, 1.1111112
    %v4188 = vmul.f32 %v3992, 1.1111112
    %v4189 = vmul.f32 %v3993, 1.1111112
    %v4190 = vmul.f32 %v3994, 1.1111112
    %v4191 = vmul.f32 %v3995, 1.1111112
    %v4192 = vmul.f32 %v3996, 1.1111112
    %v4193 = vmul.f32 %v3997, 1.1111112
    %v4194 = vmul.f32 %v3998, 1.1111112
    %v4195 = vmul.f32 %v3999, 1.1111112
    %v4196 = vmul.f32 %v4000, 1.1111112
    %v4197 = vmul.f32 %v4001, 1.1111112
    %v4198 = vmul.f32 %v4002, 1.1111112
    %v4199 = vmul.f32 %v4003, 1.1111112
    %v4200 = vmul.f32 %v4004, 1.1111112
    %v4201 = vmul.f32 %v4005, 1.1111112
    %v4202 = vmul.f32 %v4006, 1.1111112
    %v4203 = vmul.f32 %v4007, 1.1111112
    %v4204 = vmul.f32 %v4008, 1.1111112
    %v4205 = vmul.f32 %v4009, 1.1111112
    %v4206 = vmul.f32 %v4010, 1.1111112
    %v4207 = vmul.f32 %v4011, 1.1111112
    %v4208 = vmul.f32 %v4012, 1.1111112
    %v4209 = vmul.f32 %v4013, 1.1111112
    %v4210 = vmul.f32 %v4014, 1.1111112
    %v4211 = vmul.f32 %v4015, 1.1111112
    %v4212 = vmul.f32 %v4016, 1.1111112
    %v4213 = vmul.f32 %v4017, 1.1111112
    %v4214 = vmul.f32 %v4018, 1.1111112
    %v4215 = vmul.f32 %v4019, 1.1111112
    %v4216 = vmul.f32 %v4020, 1.1111112
    %v4217 = vmul.f32 %v4021, 1.1111112
    %v4218 = vmul.f32 %v4022, 1.1111112
    %v4219 = vmul.f32 %v4023, 1.1111112
    %v4220 = vmul.f32 %v4024, 1.1111112
    %v4221 = vmul.f32 %v4025, 1.1111112
    %v4222 = vmul.f32 %v4026, 1.1111112
    %v4223 = vmul.f32 %v4027, 1.1111112
    %v4224 = vmul.f32 %v4028, 1.1111112
    %v4225 = vmul.f32 %v4029, 1.1111112
    %v4226 = vmul.f32 %v4030, 1.1111112
    %v4227 = vmul.f32 %v4031, 1.1111112
    %v4228 = vmul.f32 %v4032, 1.1111112
    %v4229 = vmul.f32 %v4033, 1.1111112
    %v4230 = vmul.f32 %v4034, 1.1111112
    %v4231 = vmul.f32 %v4035, 1.1111112
    %v4232 = vmul.f32 %v4036, 1.1111112
    %v4233 = vmul.f32 %v4037, 1.1111112
    %v4234 = vmul.f32 %v4038, 1.1111112
    %v4235 = vmul.f32 %v4039, 1.1111112
    %v4236 = vmul.f32 %v4040, 1.1111112
    %v4237 = vmul.f32 %v4041, 1.1111112
    %v4238 = vmul.f32 %v4042, 1.1111112
    %v4239 = vmul.f32 %v4043, 1.1111112
    %v4240 = vmul.f32 %v4044, 1.1111112
    %v4241 = vmul.f32 %v4045, 1.1111112
    %v4242 = vmul.f32 %v4046, 1.1111112
    %v4243 = vmul.f32 %v4047, 1.1111112
    %v4244 = vmul.f32 %v4048, 1.1111112
    %v4245 = vmul.f32 %v4049, 1.1111112
    %v4246 = vmul.f32 %v4050, 1.1111112
    %v4247 = vmul.f32 %v4051, 1.1111112
    %v4248 = vmul.f32 %v4052, 1.1111112
    %v4249 = vmul.f32 %v4053, 1.1111112
    %v4250 = vmul.f32 %v4054, 1.1111112
    %v4251 = vmul.f32 %v4055, 1.1111112
    %v4252 = vmul.f32 %v4056, 1.1111112
    %v4253 = vmul.f32 %v4057, 1.1111112
    %v4254 = vmul.f32 %v4058, 1.1111112
    %v4255 = vmul.f32 %v4059, 1.1111112
    %v4256 = vmul.f32 %v4060, 1.1111112
    %v4257 = vmul.f32 %v4061, 1.1111112
    %v4258 = vmul.f32 %v4062, 1.1111112
    %v4259 = vmul.f32 %v4063, 1.1111112
    %v4260 = vmul.f32 %v4064, 1.1111112
    %v4261 = vmul.f32 %v4065, 1.1111112
    %v4262 = vmul.f32 %v4066, 1.1111112
    %v4263 = vmul.f32 %v4067, 1.1111112
    %v4264 = vmul.f32 %v4068, 1.1111112
    %v4265 = vmul.f32 %v4069, 1.1111112
    %v4266 = vmul.f32 %v4070, 1.1111112
    %v4267 = vmul.f32 %v4071, 1.1111112
    %v4268 = vmul.f32 %v4072, 1.1111112
    %v4269 = vmul.f32 %v4073, 1.1111112
    %v4270 = vmul.f32 %v4074, 1.1111112
    %v4271 = vmul.f32 %v4075, 1.1111112
    %v4272 = vmul.f32 %v4076, 1.1111112
    %v4273 = vmul.f32 %v4077, 1.1111112
    %v4274 = vmul.f32 %v4078, 1.1111112
    %v4275 = vmul.f32 %v4079, 1.1111112
    %v4276 = vmul.f32 %v4080, 1.1111112
    %v4277 = vmul.f32 %v4081, 1.1111112
    %v4278 = vmul.f32 %v4082, 1.1111112
    %v4279 = vmul.f32 %v4083, 1.1111112
    %v4280 = vmul.f32 %v4084, 1.1111112
    %v4281 = vmul.f32 %v4085, 1.1111112
    %v4282 = vmul.f32 %v4086, 1.1111112
    %v4283 = vmul.f32 %v4087, 1.1111112
    %v4284 = vmul.f32 %v4088, 1.1111112
    %v4285 = vmul.f32 %v4089, 1.1111112
    %v4286 = vmul.f32 %v4090, 1.1111112
    %v4287 = vmul.f32 %v4091, 1.1111112
    %v4288 = vmul.f32 %v4092, 1.1111112
    %v4289 = vmul.f32 %v4093, 1.1111112
    %v4290 = vmul.f32 %v4094, 1.1111112
    %v4291 = vmul.f32 %v4095, 1.1111112
    %v4292 = vmul.f32 %v4096, 1.1111112
    %v4293 = vmul.f32 %v4097, 1.1111112
    %v4294 = vmul.f32 %v4098, 1.1111112
    %v4295 = vmul.f32 %v4099, 1.1111112
    %v4296 = vmul.f32 %v4100, 1.1111112
    %v4297 = vmul.f32 %v4101, 1.1111112
    %v4298 = vmul.f32 %v4102, 1.1111112
    %v4299 = vmul.f32 %v4103, 1.1111112
    %v4300 = vmul.f32 %v4104, 1.1111112
    %v4301 = vmul.f32 %v4105, 1.1111112
    %v4302 = vmul.f32 %v4106, 1.1111112
    %v4303 = vmul.f32 %v4107, 1.1111112
    %v4304 = vmul.f32 %v4108, 1.1111112
    %v4305 = vmul.f32 %v4109, 1.1111112
    %v4306 = vmul.f32 %v4110, 1.1111112
    %v4307 = vmul.f32 %v4111, 1.1111112
    %v4308 = vmul.f32 %v4112, 1.1111112
    %v4309 = vmul.f32 %v4113, 1.1111112
    %v4310 = vmul.f32 %v4114, 1.1111112
    %v4311 = vmul.f32 %v4115, 1.1111112
    %v4312 = vmul.f32 %v4116, 1.1111112
    %v4313 = vmul.f32 %v4117, 1.1111112
    %v4314 = vmul.f32 %v4118, 1.1111112
    %v4315 = vmul.f32 %v4119, 1.1111112
    %v4316 = vmul.f32 %v4120, 1.1111112
    %v4317 = vmul.f32 %v4121, 1.1111112
    %v4318 = vmul.f32 %v4122, 1.1111112
    %v4319 = vmul.f32 %v4123, 1.1111112
    %v4320 = vmul.f32 %v4124, 1.1111112
    %v4321 = vmul.f32 %v4125, 1.1111112
    %v4322 = vmul.f32 %v4126, 1.1111112
    %v4323 = vmul.f32 %v4127, 1.1111112
    %v4324 = vmul.f32 %v4128, 1.1111112
    %v4325 = vmul.f32 %v4129, 1.1111112
    %v4326 = vmul.f32 %v4130, 1.1111112
    %v4327 = vmul.f32 %v4131, 1.1111112
    %v4328 = vmul.f32 %v4132, 1.1111112
    %v4329 = vmul.f32 %v4133, 1.1111112
    %v4330 = vmul.f32 %v4134, 1.1111112
    %v4331 = vmul.f32 %v4135, 1.1111112
    %v4332 = vmul.f32 %v4136, 1.1111112
    %v4333 = vmul.f32 %v4137, 1.1111112
    %v4334 = vmul.f32 %v4138, 1.1111112
    %v4335 = vmul.f32 %v4139, 1.1111112
    %v4336 = vmul.f32 %v4140, 1.1111112
    %v4337 = vmul.f32 %v4141, 1.1111112
    %v4338 = vmul.f32 %v4142, 1.1111112
    %v4339 = vmul.f32 %v4143, 1.1111112
    %v4340 = vmul.f32 %v4144, 1.1111112
    %v4341 = vmul.f32 %v4145, 1.1111112
    %v4342 = vmul.f32 %v4146, 1.1111112
    %v4343 = vmul.f32 %v4147, 1.1111112
    %v4344 = vmul.f32 %v4148, 1.1111112
    %v4345 = vmul.f32 %v4149, 1.1111112
    %v4346 = vmul.f32 %v4150, 1.1111112
    %v4347 = vsel %vm3759, %v4151, 0.0
    %v4348 = vsel %vm3760, %v4152, 0.0
    %v4349 = vsel %vm3761, %v4153, 0.0
    %v4350 = vsel %vm3762, %v4154, 0.0
    %v4351 = vsel %vm3763, %v4155, 0.0
    %v4352 = vsel %vm3764, %v4156, 0.0
    %v4353 = vsel %vm3765, %v4157, 0.0
    %v4354 = vsel %vm3766, %v4158, 0.0
    %v4355 = vsel %vm3767, %v4159, 0.0
    %v4356 = vsel %vm3768, %v4160, 0.0
    %v4357 = vsel %vm3769, %v4161, 0.0
    %v4358 = vsel %vm3770, %v4162, 0.0
    %v4359 = vsel %vm3771, %v4163, 0.0
    %v4360 = vsel %vm3772, %v4164, 0.0
    %v4361 = vsel %vm3773, %v4165, 0.0
    %v4362 = vsel %vm3774, %v4166, 0.0
    %v4363 = vsel %vm3775, %v4167, 0.0
    %v4364 = vsel %vm3776, %v4168, 0.0
    %v4365 = vsel %vm3777, %v4169, 0.0
    %v4366 = vsel %vm3778, %v4170, 0.0
    %v4367 = vsel %vm3779, %v4171, 0.0
    %v4368 = vsel %vm3780, %v4172, 0.0
    %v4369 = vsel %vm3781, %v4173, 0.0
    %v4370 = vsel %vm3782, %v4174, 0.0
    %v4371 = vsel %vm3783, %v4175, 0.0
    %v4372 = vsel %vm3784, %v4176, 0.0
    %v4373 = vsel %vm3785, %v4177, 0.0
    %v4374 = vsel %vm3786, %v4178, 0.0
    %v4375 = vsel %vm3787, %v4179, 0.0
    %v4376 = vsel %vm3788, %v4180, 0.0
    %v4377 = vsel %vm3789, %v4181, 0.0
    %v4378 = vsel %vm3790, %v4182, 0.0
    %v4379 = vsel %vm3791, %v4183, 0.0
    %v4380 = vsel %vm3792, %v4184, 0.0
    %v4381 = vsel %vm3793, %v4185, 0.0
    %v4382 = vsel %vm3794, %v4186, 0.0
    %v4383 = vsel %vm3795, %v4187, 0.0
    %v4384 = vsel %vm3796, %v4188, 0.0
    %v4385 = vsel %vm3797, %v4189, 0.0
    %v4386 = vsel %vm3798, %v4190, 0.0
    %v4387 = vsel %vm3799, %v4191, 0.0
    %v4388 = vsel %vm3800, %v4192, 0.0
    %v4389 = vsel %vm3801, %v4193, 0.0
    %v4390 = vsel %vm3802, %v4194, 0.0
    %v4391 = vsel %vm3803, %v4195, 0.0
    %v4392 = vsel %vm3804, %v4196, 0.0
    %v4393 = vsel %vm3805, %v4197, 0.0
    %v4394 = vsel %vm3806, %v4198, 0.0
    %v4395 = vsel %vm3807, %v4199, 0.0
    %v4396 = vsel %vm3808, %v4200, 0.0
    %v4397 = vsel %vm3809, %v4201, 0.0
    %v4398 = vsel %vm3810, %v4202, 0.0
    %v4399 = vsel %vm3811, %v4203, 0.0
    %v4400 = vsel %vm3812, %v4204, 0.0
    %v4401 = vsel %vm3813, %v4205, 0.0
    %v4402 = vsel %vm3814, %v4206, 0.0
    %v4403 = vsel %vm3815, %v4207, 0.0
    %v4404 = vsel %vm3816, %v4208, 0.0
    %v4405 = vsel %vm3817, %v4209, 0.0
    %v4406 = vsel %vm3818, %v4210, 0.0
    %v4407 = vsel %vm3819, %v4211, 0.0
    %v4408 = vsel %vm3820, %v4212, 0.0
    %v4409 = vsel %vm3821, %v4213, 0.0
    %v4410 = vsel %vm3822, %v4214, 0.0
    %v4411 = vsel %vm3823, %v4215, 0.0
    %v4412 = vsel %vm3824, %v4216, 0.0
    %v4413 = vsel %vm3825, %v4217, 0.0
    %v4414 = vsel %vm3826, %v4218, 0.0
    %v4415 = vsel %vm3827, %v4219, 0.0
    %v4416 = vsel %vm3828, %v4220, 0.0
    %v4417 = vsel %vm3829, %v4221, 0.0
    %v4418 = vsel %vm3830, %v4222, 0.0
    %v4419 = vsel %vm3831, %v4223, 0.0
    %v4420 = vsel %vm3832, %v4224, 0.0
    %v4421 = vsel %vm3833, %v4225, 0.0
    %v4422 = vsel %vm3834, %v4226, 0.0
    %v4423 = vsel %vm3835, %v4227, 0.0
    %v4424 = vsel %vm3836, %v4228, 0.0
    %v4425 = vsel %vm3837, %v4229, 0.0
    %v4426 = vsel %vm3838, %v4230, 0.0
    %v4427 = vsel %vm3839, %v4231, 0.0
    %v4428 = vsel %vm3840, %v4232, 0.0
    %v4429 = vsel %vm3841, %v4233, 0.0
    %v4430 = vsel %vm3842, %v4234, 0.0
    %v4431 = vsel %vm3843, %v4235, 0.0
    %v4432 = vsel %vm3844, %v4236, 0.0
    %v4433 = vsel %vm3845, %v4237, 0.0
    %v4434 = vsel %vm3846, %v4238, 0.0
    %v4435 = vsel %vm3847, %v4239, 0.0
    %v4436 = vsel %vm3848, %v4240, 0.0
    %v4437 = vsel %vm3849, %v4241, 0.0
    %v4438 = vsel %vm3850, %v4242, 0.0
    %v4439 = vsel %vm3851, %v4243, 0.0
    %v4440 = vsel %vm3852, %v4244, 0.0
    %v4441 = vsel %vm3853, %v4245, 0.0
    %v4442 = vsel %vm3854, %v4246, 0.0
    %v4443 = vsel %vm3855, %v4247, 0.0
    %v4444 = vsel %vm3856, %v4248, 0.0
    %v4445 = vsel %vm3857, %v4249, 0.0
    %v4446 = vsel %vm3858, %v4250, 0.0
    %v4447 = vsel %vm3859, %v4251, 0.0
    %v4448 = vsel %vm3860, %v4252, 0.0
    %v4449 = vsel %vm3861, %v4253, 0.0
    %v4450 = vsel %vm3862, %v4254, 0.0
    %v4451 = vsel %vm3863, %v4255, 0.0
    %v4452 = vsel %vm3864, %v4256, 0.0
    %v4453 = vsel %vm3865, %v4257, 0.0
    %v4454 = vsel %vm3866, %v4258, 0.0
    %v4455 = vsel %vm3867, %v4259, 0.0
    %v4456 = vsel %vm3868, %v4260, 0.0
    %v4457 = vsel %vm3869, %v4261, 0.0
    %v4458 = vsel %vm3870, %v4262, 0.0
    %v4459 = vsel %vm3871, %v4263, 0.0
    %v4460 = vsel %vm3872, %v4264, 0.0
    %v4461 = vsel %vm3873, %v4265, 0.0
    %v4462 = vsel %vm3874, %v4266, 0.0
    %v4463 = vsel %vm3875, %v4267, 0.0
    %v4464 = vsel %vm3876, %v4268, 0.0
    %v4465 = vsel %vm3877, %v4269, 0.0
    %v4466 = vsel %vm3878, %v4270, 0.0
    %v4467 = vsel %vm3879, %v4271, 0.0
    %v4468 = vsel %vm3880, %v4272, 0.0
    %v4469 = vsel %vm3881, %v4273, 0.0
    %v4470 = vsel %vm3882, %v4274, 0.0
    %v4471 = vsel %vm3883, %v4275, 0.0
    %v4472 = vsel %vm3884, %v4276, 0.0
    %v4473 = vsel %vm3885, %v4277, 0.0
    %v4474 = vsel %vm3886, %v4278, 0.0
    %v4475 = vsel %vm3887, %v4279, 0.0
    %v4476 = vsel %vm3888, %v4280, 0.0
    %v4477 = vsel %vm3889, %v4281, 0.0
    %v4478 = vsel %vm3890, %v4282, 0.0
    %v4479 = vsel %vm3891, %v4283, 0.0
    %v4480 = vsel %vm3892, %v4284, 0.0
    %v4481 = vsel %vm3893, %v4285, 0.0
    %v4482 = vsel %vm3894, %v4286, 0.0
    %v4483 = vsel %vm3895, %v4287, 0.0
    %v4484 = vsel %vm3896, %v4288, 0.0
    %v4485 = vsel %vm3897, %v4289, 0.0
    %v4486 = vsel %vm3898, %v4290, 0.0
    %v4487 = vsel %vm3899, %v4291, 0.0
    %v4488 = vsel %vm3900, %v4292, 0.0
    %v4489 = vsel %vm3901, %v4293, 0.0
    %v4490 = vsel %vm3902, %v4294, 0.0
    %v4491 = vsel %vm3903, %v4295, 0.0
    %v4492 = vsel %vm3904, %v4296, 0.0
    %v4493 = vsel %vm3905, %v4297, 0.0
    %v4494 = vsel %vm3906, %v4298, 0.0
    %v4495 = vsel %vm3907, %v4299, 0.0
    %v4496 = vsel %vm3908, %v4300, 0.0
    %v4497 = vsel %vm3909, %v4301, 0.0
    %v4498 = vsel %vm3910, %v4302, 0.0
    %v4499 = vsel %vm3911, %v4303, 0.0
    %v4500 = vsel %vm3912, %v4304, 0.0
    %v4501 = vsel %vm3913, %v4305, 0.0
    %v4502 = vsel %vm3914, %v4306, 0.0
    %v4503 = vsel %vm3915, %v4307, 0.0
    %v4504 = vsel %vm3916, %v4308, 0.0
    %v4505 = vsel %vm3917, %v4309, 0.0
    %v4506 = vsel %vm3918, %v4310, 0.0
    %v4507 = vsel %vm3919, %v4311, 0.0
    %v4508 = vsel %vm3920, %v4312, 0.0
    %v4509 = vsel %vm3921, %v4313, 0.0
    %v4510 = vsel %vm3922, %v4314, 0.0
    %v4511 = vsel %vm3923, %v4315, 0.0
    %v4512 = vsel %vm3924, %v4316, 0.0
    %v4513 = vsel %vm3925, %v4317, 0.0
    %v4514 = vsel %vm3926, %v4318, 0.0
    %v4515 = vsel %vm3927, %v4319, 0.0
    %v4516 = vsel %vm3928, %v4320, 0.0
    %v4517 = vsel %vm3929, %v4321, 0.0
    %v4518 = vsel %vm3930, %v4322, 0.0
    %v4519 = vsel %vm3931, %v4323, 0.0
    %v4520 = vsel %vm3932, %v4324, 0.0
    %v4521 = vsel %vm3933, %v4325, 0.0
    %v4522 = vsel %vm3934, %v4326, 0.0
    %v4523 = vsel %vm3935, %v4327, 0.0
    %v4524 = vsel %vm3936, %v4328, 0.0
    %v4525 = vsel %vm3937, %v4329, 0.0
    %v4526 = vsel %vm3938, %v4330, 0.0
    %v4527 = vsel %vm3939, %v4331, 0.0
    %v4528 = vsel %vm3940, %v4332, 0.0
    %v4529 = vsel %vm3941, %v4333, 0.0
    %v4530 = vsel %vm3942, %v4334, 0.0
    %v4531 = vsel %vm3943, %v4335, 0.0
    %v4532 = vsel %vm3944, %v4336, 0.0
    %v4533 = vsel %vm3945, %v4337, 0.0
    %v4534 = vsel %vm3946, %v4338, 0.0
    %v4535 = vsel %vm3947, %v4339, 0.0
    %v4536 = vsel %vm3948, %v4340, 0.0
    %v4537 = vsel %vm3949, %v4341, 0.0
    %v4538 = vsel %vm3950, %v4342, 0.0
    %v4539 = vsel %vm3951, %v4343, 0.0
    %v4540 = vsel %vm3952, %v4344, 0.0
    %v4541 = vsel %vm3953, %v4345, 0.0
    %v4542 = vsel %vm3954, %v4346, 0.0
    %4543 = vst [vmem:[#allocation6] sm:$0xff] %v4347
    %4544 = vst [vmem:[#allocation6 + $0x8] sm:$0xff] %v4348
    %4545 = vst [vmem:[#allocation6 + $0x10] sm:$0xff] %v4349
    %4546 = vst [vmem:[#allocation6 + $0x18] sm:$0xff] %v4350
    %4547 = vst [vmem:[#allocation6 + $0x20] sm:$0xff] %v4351
    %4548 = vst [vmem:[#allocation6 + $0x28] sm:$0xff] %v4352
    %4549 = vst [vmem:[#allocation6 + $0x30] sm:$0xff] %v4353
    %4550 = vst [vmem:[#allocation6 + $0x38] sm:$0xff] %v4354
    %4551 = vst [vmem:[#allocation6 + $0x40] sm:$0xff] %v4355
    %4552 = vst [vmem:[#allocation6 + $0x48] sm:$0xff] %v4356
    %4553 = vst [vmem:[#allocation6 + $0x50] sm:$0xff] %v4357
    %4554 = vst [vmem:[#allocation6 + $0x58] sm:$0xff] %v4358
    %4555 = vst [vmem:[#allocation6 + $0x60] sm:$0xff] %v4359
    %4556 = vst [vmem:[#allocation6 + $0x68] sm:$0xff] %v4360
    %4557 = vst [vmem:[#allocation6 + $0x70] sm:$0xff] %v4361
    %4558 = vst [vmem:[#allocation6 + $0x78] sm:$0xff] %v4362
    %4559 = vst [vmem:[#allocation6 + $0x80] sm:$0xff] %v4363
    %4560 = vst [vmem:[#allocation6 + $0x88] sm:$0xff] %v4364
    %4561 = vst [vmem:[#allocation6 + $0x90] sm:$0xff] %v4365
    %4562 = vst [vmem:[#allocation6 + $0x98] sm:$0xff] %v4366
    %4563 = vst [vmem:[#allocation6 + $0xa0] sm:$0xff] %v4367
    %4564 = vst [vmem:[#allocation6 + $0xa8] sm:$0xff] %v4368
    %4565 = vst [vmem:[#allocation6 + $0xb0] sm:$0xff] %v4369
    %4566 = vst [vmem:[#allocation6 + $0xb8] sm:$0xff] %v4370
    %4567 = vst [vmem:[#allocation6 + $0xc0] sm:$0xff] %v4371
    %4568 = vst [vmem:[#allocation6 + $0xc8] sm:$0xff] %v4372
    %4569 = vst [vmem:[#allocation6 + $0xd0] sm:$0xff] %v4373
    %4570 = vst [vmem:[#allocation6 + $0xd8] sm:$0xff] %v4374
    %4571 = vst [vmem:[#allocation6 + $0xe0] sm:$0xff] %v4375
    %4572 = vst [vmem:[#allocation6 + $0xe8] sm:$0xff] %v4376
    %4573 = vst [vmem:[#allocation6 + $0xf0] sm:$0xff] %v4377
    %4574 = vst [vmem:[#allocation6 + $0xf8] sm:$0xff] %v4378
    %4575 = vst [vmem:[#allocation6 + $0x100] sm:$0xff] %v4379
    %4576 = vst [vmem:[#allocation6 + $0x108] sm:$0xff] %v4380
    %4577 = vst [vmem:[#allocation6 + $0x110] sm:$0xff] %v4381
    %4578 = vst [vmem:[#allocation6 + $0x118] sm:$0xff] %v4382
    %4579 = vst [vmem:[#allocation6 + $0x120] sm:$0xff] %v4383
    %4580 = vst [vmem:[#allocation6 + $0x128] sm:$0xff] %v4384
    %4581 = vst [vmem:[#allocation6 + $0x130] sm:$0xff] %v4385
    %4582 = vst [vmem:[#allocation6 + $0x138] sm:$0xff] %v4386
    %4583 = vst [vmem:[#allocation6 + $0x140] sm:$0xff] %v4387
    %4584 = vst [vmem:[#allocation6 + $0x148] sm:$0xff] %v4388
    %4585 = vst [vmem:[#allocation6 + $0x150] sm:$0xff] %v4389
    %4586 = vst [vmem:[#allocation6 + $0x158] sm:$0xff] %v4390
    %4587 = vst [vmem:[#allocation6 + $0x160] sm:$0xff] %v4391
    %4588 = vst [vmem:[#allocation6 + $0x168] sm:$0xff] %v4392
    %4589 = vst [vmem:[#allocation6 + $0x170] sm:$0xff] %v4393
    %4590 = vst [vmem:[#allocation6 + $0x178] sm:$0xff] %v4394
    %4591 = vst [vmem:[#allocation6 + $0x180] sm:$0xff] %v4395
    %4592 = vst [vmem:[#allocation6 + $0x188] sm:$0xff] %v4396
    %4593 = vst [vmem:[#allocation6 + $0x190] sm:$0xff] %v4397
    %4594 = vst [vmem:[#allocation6 + $0x198] sm:$0xff] %v4398
    %4595 = vst [vmem:[#allocation6 + $0x1a0] sm:$0xff] %v4399
    %4596 = vst [vmem:[#allocation6 + $0x1a8] sm:$0xff] %v4400
    %4597 = vst [vmem:[#allocation6 + $0x1b0] sm:$0xff] %v4401
    %4598 = vst [vmem:[#allocation6 + $0x1b8] sm:$0xff] %v4402
    %4599 = vst [vmem:[#allocation6 + $0x1c0] sm:$0xff] %v4403
    %4600 = vst [vmem:[#allocation6 + $0x1c8] sm:$0xff] %v4404
    %4601 = vst [vmem:[#allocation6 + $0x1d0] sm:$0xff] %v4405
    %4602 = vst [vmem:[#allocation6 + $0x1d8] sm:$0xff] %v4406
    %4603 = vst [vmem:[#allocation6 + $0x1e0] sm:$0xff] %v4407
    %4604 = vst [vmem:[#allocation6 + $0x1e8] sm:$0xff] %v4408
    %4605 = vst [vmem:[#allocation6 + $0x1f0] sm:$0xff] %v4409
    %4606 = vst [vmem:[#allocation6 + $0x1f8] sm:$0xff] %v4410
    %4607 = vst [vmem:[#allocation6 + $0x200] sm:$0xff] %v4411
    %4608 = vst [vmem:[#allocation6 + $0x208] sm:$0xff] %v4412
    %4609 = vst [vmem:[#allocation6 + $0x210] sm:$0xff] %v4413
    %4610 = vst [vmem:[#allocation6 + $0x218] sm:$0xff] %v4414
    %4611 = vst [vmem:[#allocation6 + $0x220] sm:$0xff] %v4415
    %4612 = vst [vmem:[#allocation6 + $0x228] sm:$0xff] %v4416
    %4613 = vst [vmem:[#allocation6 + $0x230] sm:$0xff] %v4417
    %4614 = vst [vmem:[#allocation6 + $0x238] sm:$0xff] %v4418
    %4615 = vst [vmem:[#allocation6 + $0x240] sm:$0xff] %v4419
    %4616 = vst [vmem:[#allocation6 + $0x248] sm:$0xff] %v4420
    %4617 = vst [vmem:[#allocation6 + $0x250] sm:$0xff] %v4421
    %4618 = vst [vmem:[#allocation6 + $0x258] sm:$0xff] %v4422
    %4619 = vst [vmem:[#allocation6 + $0x260] sm:$0xff] %v4423
    %4620 = vst [vmem:[#allocation6 + $0x268] sm:$0xff] %v4424
    %4621 = vst [vmem:[#allocation6 + $0x270] sm:$0xff] %v4425
    %4622 = vst [vmem:[#allocation6 + $0x278] sm:$0xff] %v4426
    %4623 = vst [vmem:[#allocation6 + $0x280] sm:$0xff] %v4427
    %4624 = vst [vmem:[#allocation6 + $0x288] sm:$0xff] %v4428
    %4625 = vst [vmem:[#allocation6 + $0x290] sm:$0xff] %v4429
    %4626 = vst [vmem:[#allocation6 + $0x298] sm:$0xff] %v4430
    %4627 = vst [vmem:[#allocation6 + $0x2a0] sm:$0xff] %v4431
    %4628 = vst [vmem:[#allocation6 + $0x2a8] sm:$0xff] %v4432
    %4629 = vst [vmem:[#allocation6 + $0x2b0] sm:$0xff] %v4433
    %4630 = vst [vmem:[#allocation6 + $0x2b8] sm:$0xff] %v4434
    %4631 = vst [vmem:[#allocation6 + $0x2c0] sm:$0xff] %v4435
    %4632 = vst [vmem:[#allocation6 + $0x2c8] sm:$0xff] %v4436
    %4633 = vst [vmem:[#allocation6 + $0x2d0] sm:$0xff] %v4437
    %4634 = vst [vmem:[#allocation6 + $0x2d8] sm:$0xff] %v4438
    %4635 = vst [vmem:[#allocation6 + $0x2e0] sm:$0xff] %v4439
    %4636 = vst [vmem:[#allocation6 + $0x2e8] sm:$0xff] %v4440
    %4637 = vst [vmem:[#allocation6 + $0x2f0] sm:$0xff] %v4441
    %4638 = vst [vmem:[#allocation6 + $0x2f8] sm:$0xff] %v4442
    %4639 = vst [vmem:[#allocation6 + $0x300] sm:$0xff] %v4443
    %4640 = vst [vmem:[#allocation6 + $0x308] sm:$0xff] %v4444
    %4641 = vst [vmem:[#allocation6 + $0x310] sm:$0xff] %v4445
    %4642 = vst [vmem:[#allocation6 + $0x318] sm:$0xff] %v4446
    %4643 = vst [vmem:[#allocation6 + $0x320] sm:$0xff] %v4447
    %4644 = vst [vmem:[#allocation6 + $0x328] sm:$0xff] %v4448
    %4645 = vst [vmem:[#allocation6 + $0x330] sm:$0xff] %v4449
    %4646 = vst [vmem:[#allocation6 + $0x338] sm:$0xff] %v4450
    %4647 = vst [vmem:[#allocation6 + $0x340] sm:$0xff] %v4451
    %4648 = vst [vmem:[#allocation6 + $0x348] sm:$0xff] %v4452
    %4649 = vst [vmem:[#allocation6 + $0x350] sm:$0xff] %v4453
    %4650 = vst [vmem:[#allocation6 + $0x358] sm:$0xff] %v4454
    %4651 = vst [vmem:[#allocation6 + $0x360] sm:$0xff] %v4455
    %4652 = vst [vmem:[#allocation6 + $0x368] sm:$0xff] %v4456
    %4653 = vst [vmem:[#allocation6 + $0x370] sm:$0xff] %v4457
    %4654 = vst [vmem:[#allocation6 + $0x378] sm:$0xff] %v4458
    %4655 = vst [vmem:[#allocation6 + $0x380] sm:$0xff] %v4459
    %4656 = vst [vmem:[#allocation6 + $0x388] sm:$0xff] %v4460
    %4657 = vst [vmem:[#allocation6 + $0x390] sm:$0xff] %v4461
    %4658 = vst [vmem:[#allocation6 + $0x398] sm:$0xff] %v4462
    %4659 = vst [vmem:[#allocation6 + $0x3a0] sm:$0xff] %v4463
    %4660 = vst [vmem:[#allocation6 + $0x3a8] sm:$0xff] %v4464
    %4661 = vst [vmem:[#allocation6 + $0x3b0] sm:$0xff] %v4465
    %4662 = vst [vmem:[#allocation6 + $0x3b8] sm:$0xff] %v4466
    %4663 = vst [vmem:[#allocation6 + $0x3c0] sm:$0xff] %v4467
    %4664 = vst [vmem:[#allocation6 + $0x3c8] sm:$0xff] %v4468
    %4665 = vst [vmem:[#allocation6 + $0x3d0] sm:$0xff] %v4469
    %4666 = vst [vmem:[#allocation6 + $0x3d8] sm:$0xff] %v4470
    %4667 = vst [vmem:[#allocation6 + $0x3e0] sm:$0xff] %v4471
    %4668 = vst [vmem:[#allocation6 + $0x3e8] sm:$0xff] %v4472
    %4669 = vst [vmem:[#allocation6 + $0x3f0] sm:$0xff] %v4473
    %4670 = vst [vmem:[#allocation6 + $0x3f8] sm:$0xff] %v4474
    %4671 = vst [vmem:[#allocation6 + $0x400] sm:$0xff] %v4475
    %4672 = vst [vmem:[#allocation6 + $0x408] sm:$0xff] %v4476
    %4673 = vst [vmem:[#allocation6 + $0x410] sm:$0xff] %v4477
    %4674 = vst [vmem:[#allocation6 + $0x418] sm:$0xff] %v4478
    %4675 = vst [vmem:[#allocation6 + $0x420] sm:$0xff] %v4479
    %4676 = vst [vmem:[#allocation6 + $0x428] sm:$0xff] %v4480
    %4677 = vst [vmem:[#allocation6 + $0x430] sm:$0xff] %v4481
    %4678 = vst [vmem:[#allocation6 + $0x438] sm:$0xff] %v4482
    %4679 = vst [vmem:[#allocation6 + $0x440] sm:$0xff] %v4483
    %4680 = vst [vmem:[#allocation6 + $0x448] sm:$0xff] %v4484
    %4681 = vst [vmem:[#allocation6 + $0x450] sm:$0xff] %v4485
    %4682 = vst [vmem:[#allocation6 + $0x458] sm:$0xff] %v4486
    %4683 = vst [vmem:[#allocation6 + $0x460] sm:$0xff] %v4487
    %4684 = vst [vmem:[#allocation6 + $0x468] sm:$0xff] %v4488
    %4685 = vst [vmem:[#allocation6 + $0x470] sm:$0xff] %v4489
    %4686 = vst [vmem:[#allocation6 + $0x478] sm:$0xff] %v4490
    %4687 = vst [vmem:[#allocation6 + $0x480] sm:$0xff] %v4491
    %4688 = vst [vmem:[#allocation6 + $0x488] sm:$0xff] %v4492
    %4689 = vst [vmem:[#allocation6 + $0x490] sm:$0xff] %v4493
    %4690 = vst [vmem:[#allocation6 + $0x498] sm:$0xff] %v4494
    %4691 = vst [vmem:[#allocation6 + $0x4a0] sm:$0xff] %v4495
    %4692 = vst [vmem:[#allocation6 + $0x4a8] sm:$0xff] %v4496
    %4693 = vst [vmem:[#allocation6 + $0x4b0] sm:$0xff] %v4497
    %4694 = vst [vmem:[#allocation6 + $0x4b8] sm:$0xff] %v4498
    %4695 = vst [vmem:[#allocation6 + $0x4c0] sm:$0xff] %v4499
    %4696 = vst [vmem:[#allocation6 + $0x4c8] sm:$0xff] %v4500
    %4697 = vst [vmem:[#allocation6 + $0x4d0] sm:$0xff] %v4501
    %4698 = vst [vmem:[#allocation6 + $0x4d8] sm:$0xff] %v4502
    %4699 = vst [vmem:[#allocation6 + $0x4e0] sm:$0xff] %v4503
    %4700 = vst [vmem:[#allocation6 + $0x4e8] sm:$0xff] %v4504
    %4701 = vst [vmem:[#allocation6 + $0x4f0] sm:$0xff] %v4505
    %4702 = vst [vmem:[#allocation6 + $0x4f8] sm:$0xff] %v4506
    %4703 = vst [vmem:[#allocation6 + $0x500] sm:$0xff] %v4507
    %4704 = vst [vmem:[#allocation6 + $0x508] sm:$0xff] %v4508
    %4705 = vst [vmem:[#allocation6 + $0x510] sm:$0xff] %v4509
    %4706 = vst [vmem:[#allocation6 + $0x518] sm:$0xff] %v4510
    %4707 = vst [vmem:[#allocation6 + $0x520] sm:$0xff] %v4511
    %4708 = vst [vmem:[#allocation6 + $0x528] sm:$0xff] %v4512
    %4709 = vst [vmem:[#allocation6 + $0x530] sm:$0xff] %v4513
    %4710 = vst [vmem:[#allocation6 + $0x538] sm:$0xff] %v4514
    %4711 = vst [vmem:[#allocation6 + $0x540] sm:$0xff] %v4515
    %4712 = vst [vmem:[#allocation6 + $0x548] sm:$0xff] %v4516
    %4713 = vst [vmem:[#allocation6 + $0x550] sm:$0xff] %v4517
    %4714 = vst [vmem:[#allocation6 + $0x558] sm:$0xff] %v4518
    %4715 = vst [vmem:[#allocation6 + $0x560] sm:$0xff] %v4519
    %4716 = vst [vmem:[#allocation6 + $0x568] sm:$0xff] %v4520
    %4717 = vst [vmem:[#allocation6 + $0x570] sm:$0xff] %v4521
    %4718 = vst [vmem:[#allocation6 + $0x578] sm:$0xff] %v4522
    %4719 = vst [vmem:[#allocation6 + $0x580] sm:$0xff] %v4523
    %4720 = vst [vmem:[#allocation6 + $0x588] sm:$0xff] %v4524
    %4721 = vst [vmem:[#allocation6 + $0x590] sm:$0xff] %v4525
    %4722 = vst [vmem:[#allocation6 + $0x598] sm:$0xff] %v4526
    %4723 = vst [vmem:[#allocation6 + $0x5a0] sm:$0xff] %v4527
    %4724 = vst [vmem:[#allocation6 + $0x5a8] sm:$0xff] %v4528
    %4725 = vst [vmem:[#allocation6 + $0x5b0] sm:$0xff] %v4529
    %4726 = vst [vmem:[#allocation6 + $0x5b8] sm:$0xff] %v4530
    %4727 = vst [vmem:[#allocation6 + $0x5c0] sm:$0xff] %v4531
    %4728 = vst [vmem:[#allocation6 + $0x5c8] sm:$0xff] %v4532
    %4729 = vst [vmem:[#allocation6 + $0x5d0] sm:$0xff] %v4533
    %4730 = vst [vmem:[#allocation6 + $0x5d8] sm:$0xff] %v4534
    %4731 = vst [vmem:[#allocation6 + $0x5e0] sm:$0xff] %v4535
    %4732 = vst [vmem:[#allocation6 + $0x5e8] sm:$0xff] %v4536
    %4733 = vst [vmem:[#allocation6 + $0x5f0] sm:$0xff] %v4537
    %4734 = vst [vmem:[#allocation6 + $0x5f8] sm:$0xff] %v4538
    %4735 = vst [vmem:[#allocation6 + $0x600] sm:$0xff] %v4539
    %4736 = vst [vmem:[#allocation6 + $0x608] sm:$0xff] %v4540
    %4737 = vst [vmem:[#allocation6 + $0x610] sm:$0xff] %v4541
    %4738 = vst [vmem:[#allocation6 + $0x618] sm:$0xff] %v4542
    // Predicated region
    $region14: #{tpu_custom_call.1} parent=1 // pred_check
      _
    $region15: #{tpu_custom_call.1} parent=1 // pred_check_branch
      %4740 = sbr.rel (0) target = $region17
    $region16: #{tpu_custom_call.1} parent=1 // pred_region
      %s4742 = ssub.s32 25088, 25088
      %4743 = vsyncadd [#allocation5], %s4742
      %s4744 = sshll.u32 [#allocation6], 4
      %s4745 = int_to_ptr.vmem [resolvable:$true] %s4744
      %4750 = dma.vmem_to_hbm [thread:$0]  %s4745, 25088, %s2, [#allocation5], 128, 128, 8
    $region17: #{tpu_custom_call.1} parent=1 // pred_fallthru
      _
    // Predicated region
    $region18: #{tpu_custom_call.1} parent=1 // pred_check
      _
    $region19: #{tpu_custom_call.1} parent=1 // pred_check_branch
      %4752 = sbr.rel (0) target = $region21
    $region20: #{tpu_custom_call.1} parent=1 // pred_region
      %4753 = dma.done [#allocation5], 25088
    $region21: #{tpu_custom_call.1} parent=1 // pred_fallthru
      _
    %4754 = vsyncpa [#allocation4], 1
    %4755 = vsyncpa [#allocation5], 1

</llo_original>
